<compile_context>
chip_gen: v6e
topology: v6e:2x2x1
jax: 0.10.0
libtpu: 0.0.40
codegen_flags: <defaults>
</compile_context>

<pallas_src>
import functools

import jax
import jax.numpy as jnp
from jax import lax
from jax.experimental import pallas as pl
from jax.experimental.pallas import tpu as pltpu

NUM_CHANNELS = 3
DILATION_DEPTH = 2
NUM_REPEAT = 2
KERNEL_SIZE = 2
DILATIONS = tuple([2 ** d for d in range(DILATION_DEPTH)] * NUM_REPEAT)  # (1, 2, 1, 2)
INTERNAL = NUM_CHANNELS * 2
NUM_LAYERS = len(DILATIONS)

BATCH_TILE = 8      # batch rows per grid step (sublane axis)
CHUNK = 128         # inner strip-mine width (one vreg of lanes); also the halo size
MAX_T_TILE = 2048   # default grid time tile

# ---- flat-weight ("theta") offsets (f32 elements, row-major flattening) ----
_OFF_W_IN = 0
_OFF_B_IN = _OFF_W_IN + NUM_CHANNELS
_OFF_WH0 = _OFF_B_IN + NUM_CHANNELS
_OFF_WH1 = _OFF_WH0 + NUM_LAYERS * INTERNAL * NUM_CHANNELS
_OFF_BH = _OFF_WH1 + NUM_LAYERS * INTERNAL * NUM_CHANNELS
_OFF_WR = _OFF_BH + NUM_LAYERS * INTERNAL
_OFF_BR = _OFF_WR + NUM_LAYERS * NUM_CHANNELS * NUM_CHANNELS
_OFF_WMIX = _OFF_BR + NUM_LAYERS * NUM_CHANNELS
_OFF_BMIX = _OFF_WMIX + NUM_LAYERS * NUM_CHANNELS
THETA_SIZE = _OFF_BMIX + 1


def _sigmoid(x):
    # sigmoid(x) == 0.5 * tanh(0.5 x) + 0.5  (one EUP push instead of exp + recip)
    return 0.5 * jnp.tanh(0.5 * x) + 0.5


def wavenet_kernel(theta_ref, x_ref, xh_ref, out_ref):
    # theta_ref: (THETA_SIZE,) f32 in SMEM (all weights, read as scalars)
    # x_ref:     (8, t_tile)  current time tile, 8 batch rows on sublanes
    # xh_ref:    (8, 128)     raw input just before the tile (only used for t>0)
    # out_ref:   (8, t_tile)
    t_idx = pl.program_id(1)
    t_tile = out_ref.shape[-1]
    n_chunks = t_tile // CHUNK

    # ---- hoist all weight scalars out of the chunk loop (SMEM reads, once) ----
    w_in = [theta_ref[_OFF_W_IN + c] for c in range(NUM_CHANNELS)]
    b_in = [theta_ref[_OFF_B_IN + c] for c in range(NUM_CHANNELS)]
    wh0 = [[[theta_ref[_OFF_WH0 + (i * INTERNAL + o) * NUM_CHANNELS + k]
             for k in range(NUM_CHANNELS)] for o in range(INTERNAL)]
           for i in range(NUM_LAYERS)]
    wh1 = [[[theta_ref[_OFF_WH1 + (i * INTERNAL + o) * NUM_CHANNELS + k]
             for k in range(NUM_CHANNELS)] for o in range(INTERNAL)]
           for i in range(NUM_LAYERS)]
    bh = [[theta_ref[_OFF_BH + i * INTERNAL + o] for o in range(INTERNAL)]
          for i in range(NUM_LAYERS)]
    wr = [[[theta_ref[_OFF_WR + (i * NUM_CHANNELS + c) * NUM_CHANNELS + k]
            for k in range(NUM_CHANNELS)] for c in range(NUM_CHANNELS)]
          for i in range(NUM_LAYERS)]
    br = [[theta_ref[_OFF_BR + i * NUM_CHANNELS + c] for c in range(NUM_CHANNELS)]
          for i in range(NUM_LAYERS)]
    wmix = [[theta_ref[_OFF_WMIX + i * NUM_CHANNELS + c] for c in range(NUM_CHANNELS)]
            for i in range(NUM_LAYERS)]
    bmix = theta_ref[_OFF_BMIX]

    # "take the last d lanes from the previous chunk" masks (only d in {1, 2})
    lane = lax.broadcasted_iota(jnp.int32, (BATCH_TILE, CHUNK), 1)
    tail_mask = {d: lane >= (CHUNK - d) for d in sorted(set(DILATIONS))}

    def process_chunk(x_chunk, carries, want_mixed):
        """Run one (8, CHUNK) chunk through the full stack.

        carries[i][k]: layer-i input (channel k) of the PREVIOUS chunk; its last
        d lanes supply the causal dilated tap across the chunk boundary.
        Returns (mixed or None, new_carries).
        """
        cur = [w_in[c] * x_chunk + b_in[c] for c in range(NUM_CHANNELS)]
        mixed = bmix
        new_carries = []
        for i, d in enumerate(DILATIONS):
            new_carries.append(tuple(cur))          # this layer's input -> next chunk's carry
            if not want_mixed and i == NUM_LAYERS - 1:
                break                                # warm-up only needs the carries
            # Causal shift by d across the chunk boundary: splice the previous
            # chunk's last d lanes into the top of the window, then rotate by d
            # (XLU).  shifted[t] = cur[t-d] (previous chunk / zeros for t < d).
            shifted = [
                pltpu.roll(jnp.where(tail_mask[d], carries[i][k], cur[k]),
                           shift=d, axis=1)
                for k in range(NUM_CHANNELS)
            ]
            gate = []
            for c in range(NUM_CHANNELS):
                acc_t = bh[i][c]
                acc_s = bh[i][NUM_CHANNELS + c]
                for k in range(NUM_CHANNELS):
                    acc_t = acc_t + wh0[i][c][k] * shifted[k] + wh1[i][c][k] * cur[k]
                    acc_s = (acc_s + wh0[i][NUM_CHANNELS + c][k] * shifted[k]
                             + wh1[i][NUM_CHANNELS + c][k] * cur[k])
                g = jnp.tanh(acc_t) * _sigmoid(acc_s)
                gate.append(g)
                if want_mixed:
                    mixed = mixed + wmix[i][c] * g   # skip -> linear_mix, on the fly
            new_cur = []
            for c in range(NUM_CHANNELS):
                r = br[i][c]
                for k in range(NUM_CHANNELS):
                    r = r + wr[i][c][k] * gate[k]
                new_cur.append(r + cur[c])           # residual conv + skip connection
            cur = new_cur
        return (mixed if want_mixed else None), tuple(new_carries)

    # ---- warm-up: seed the carries from the 128-lane raw-input halo ----------
    zeros = jnp.zeros((BATCH_TILE, CHUNK), jnp.float32)
    zero_carries = tuple(tuple(zeros for _ in range(NUM_CHANNELS))
                         for _ in range(NUM_LAYERS))
    _, warm = process_chunk(xh_ref[...].astype(jnp.float32), zero_carries,
                            want_mixed=False)
    # For the very first tile the correct causal padding is ZERO hidden
    # activations at every layer, i.e. zero carries (matches the reference).
    # Warm-up errors are confined to lanes < 6 of the halo (receptive field 6),
    # far from the extracted last-2-lane carries.
    keep = (t_idx > 0).astype(jnp.float32)
    carries0 = tuple(tuple(c * keep for c in layer) for layer in warm)

    # ---- strip-mined main loop: one 128-lane output vreg per iteration -------
    def body(c, carries):
        off = pl.multiple_of(c * CHUNK, CHUNK)
        x_chunk = x_ref[:, pl.ds(off, CHUNK)].astype(jnp.float32)
        mixed, new_carries = process_chunk(x_chunk, carries, want_mixed=True)
        out_ref[:, pl.ds(off, CHUNK)] = mixed.astype(out_ref.dtype)
        return new_carries

    lax.fori_loop(0, n_chunks, body, carries0, unroll=2)


# ------------------------------- wrapper -----------------------------------

def _round_up(n, m):
    return ((n + m - 1) // m) * m


def _pack_params(params):
    parts = [params["w_in"], params["b_in"], params["wh0"], params["wh1"],
             params["bh"], params["wr"], params["br"],
             params["wmix"], params["bmix"]]
    theta = jnp.concatenate([p.reshape(-1).astype(jnp.float32) for p in parts])
    assert theta.shape[0] == THETA_SIZE
    return theta


@functools.partial(jax.jit, static_argnames=("t_tile",))
def wavenet_forward(x, params, t_tile=MAX_T_TILE):
    # x: (B, 1, T) float32  ->  (B, 1, T) float32
    B, _, T = x.shape
    b_pad = _round_up(B, BATCH_TILE)
    # Pick the time tile first, pad T up to a multiple of it (at most one extra
    # tile of padding); never fall back to tiny tiles for awkward T.
    t_tile = max(CHUNK, min(_round_up(t_tile, CHUNK), _round_up(T, CHUNK)))
    t_pad = _round_up(T, t_tile)
    n_lane_blocks = t_tile // CHUNK
    assert t_tile % CHUNK == 0 and t_pad % t_tile == 0

    xb = jnp.pad(x[:, 0, :].astype(jnp.float32),
                 ((0, b_pad - B), (0, t_pad - T)))
    theta = _pack_params(params)

    grid = (b_pad // BATCH_TILE, t_pad // t_tile)

    # TODO(synk): for streaming B=1 use, a time-on-sublanes layout would recover
    # the idle 7/8 of each vreg; not implemented here (batch layout kept).
    in_specs = [
        # all weights, flattened 1-D, live in SMEM (scalar reads, no DMA churn)
        pl.BlockSpec(memory_space=pltpu.MemorySpace.SMEM),
        # current time tile, 8 batch rows per step
        pl.BlockSpec((BATCH_TILE, t_tile), lambda b, t: (b, t)),
        # 128-lane raw-input halo just before the tile (clamped to block 0 for
        # t==0; its contribution is zeroed inside the kernel for the first tile)
        pl.BlockSpec((BATCH_TILE, CHUNK),
                     lambda b, t: (b, jnp.maximum(t * n_lane_blocks - 1, 0))),
    ]
    out_specs = pl.BlockSpec((BATCH_TILE, t_tile), lambda b, t: (b, t))

    out = pl.pallas_call(
        wavenet_kernel,
        out_shape=jax.ShapeDtypeStruct((b_pad, t_pad), jnp.float32),
        grid=grid,
        in_specs=in_specs,
        out_specs=out_specs,
        compiler_params=pltpu.CompilerParams(
            dimension_semantics=("parallel", "parallel")),
    )(theta, xb, xb)

    return out[:B, :T].reshape(B, 1, T)


# ------------------------- params & JAX reference ---------------------------

def make_params(key):
    ks = jax.random.split(key, 10)
    std = 0.7
    params = {}
    params["w_in"] = (jax.random.normal(ks[0], (NUM_CHANNELS, 1)) * std).astype(jnp.float32)
    params["b_in"] = (jax.random.normal(ks[1], (NUM_CHANNELS, 1)) * 0.1).astype(jnp.float32)
    wh = jax.random.normal(ks[2], (NUM_LAYERS, INTERNAL, NUM_CHANNELS, KERNEL_SIZE)) * std
    params["wh0"] = wh[..., 0].astype(jnp.float32)   # tap at t - d
    params["wh1"] = wh[..., 1].astype(jnp.float32)   # tap at t
    params["bh"] = (jax.random.normal(ks[3], (NUM_LAYERS, INTERNAL, 1)) * 0.1).astype(jnp.float32)
    params["wr"] = (jax.random.normal(ks[4], (NUM_LAYERS, NUM_CHANNELS, NUM_CHANNELS)) * std
                    ).astype(jnp.float32)
    params["br"] = (jax.random.normal(ks[5], (NUM_LAYERS, NUM_CHANNELS, 1)) * 0.1
                    ).astype(jnp.float32)
    params["wmix"] = (jax.random.normal(ks[6], (1, NUM_CHANNELS * NUM_LAYERS)) * std
                      ).astype(jnp.float32)
    params["bmix"] = (jax.random.normal(ks[7], (1, 1)) * 0.1).astype(jnp.float32)
    return params


def wavenet_ref(x, params):
    """Plain-JAX reference mirroring the PyTorch forward, for validation."""
    B, _, T = x.shape

    def conv1x1(w, b, inp):  # w: (out, in), b: (out, 1), inp: (B, in, T)
        return jnp.einsum("oi,bit->bot", w, inp) + b[None]

    cur = conv1x1(params["w_in"], params["b_in"], x)
    skips = []
    for i, d in enumerate(DILATIONS):
        shifted = jnp.concatenate(
            [jnp.zeros((B, NUM_CHANNELS, d), jnp.float32), cur[:, :, :T - d]], axis=-1)
        hid = (jnp.einsum("oi,bit->bot", params["wh0"][i], shifted)
               + jnp.einsum("oi,bit->bot", params["wh1"][i], cur)
               + params["bh"][i][None])
        gate = jnp.tanh(hid[:, :NUM_CHANNELS]) * jax.nn.sigmoid(hid[:, NUM_CHANNELS:])
        skips.append(gate)
        cur = conv1x1(params["wr"][i], params["br"][i], gate) + cur
    cat = jnp.concatenate(skips, axis=1)
    return conv1x1(params["wmix"], params["bmix"], cat)


if __name__ == "__main__":
    key = jax.random.PRNGKey(0)

    # Config 0: batch padding (5 -> 8 rows), several time tiles -> exercises the
    #           cross-tile halo warm-up plus the in-kernel chunk loop.
    # Config 1: larger grid tile, multiple inner chunks per tile.
    configs = [
        dict(B=5, T=700, t_tile=256),
        dict(B=2, T=900, t_tile=512),
    ]
    for idx, cfg in enumerate(configs):
        k_x, k_p = jax.random.split(jax.random.fold_in(key, idx))
        x = jax.random.normal(k_x, (cfg["B"], 1, cfg["T"]), dtype=jnp.float32)
        params = make_params(k_p)

        out = jax.block_until_ready(wavenet_forward(x, params, t_tile=cfg["t_tile"]))
        ref = wavenet_ref(x, params)

        assert out.shape == (cfg["B"], 1, cfg["T"]), out.shape
        max_err = float(jnp.max(jnp.abs(out - ref)))
        assert jnp.allclose(out, ref, rtol=1e-4, atol=5e-4), (idx, max_err)

    print("KERNEL_OK")
</pallas_src>

<mosaic_0001>
module attributes {stable_mosaic.version = 11 : i64} {
  func.func @wavenet_kernel(%arg0: i32, %arg1: i32, %arg2: memref<235xf32, #tpu.memory_space<smem>>, %arg3: memref<8x256xf32, #tpu.memory_space<vmem>>, %arg4: memref<8x128xf32, #tpu.memory_space<vmem>>, %arg5: memref<8x256xf32, #tpu.memory_space<vmem>>) attributes {dimension_semantics = [#tpu.dimension_semantics<parallel>, #tpu.dimension_semantics<parallel>], iteration_bounds = array<i64: 1, 3>, scalar_prefetch = 0 : i64, scratch_operands = 0 : i64, tpu.core_type = #tpu.core_type<tc>, window_params = [{transform_indices = @transform_0, window_bounds = array<i64: 235>}, {transform_indices = @transform_1, window_bounds = array<i64: 8, 256>}, {transform_indices = @transform_2, window_bounds = array<i64: 8, 128>}, {transform_indices = @transform_3, window_bounds = array<i64: 8, 256>}]} {
    %c0 = arith.constant 0 : index
    %0 = memref.load %arg2[%c0] : memref<235xf32, #tpu.memory_space<smem>>
    %c1 = arith.constant 1 : index
    %1 = memref.load %arg2[%c1] : memref<235xf32, #tpu.memory_space<smem>>
    %c2 = arith.constant 2 : index
    %2 = memref.load %arg2[%c2] : memref<235xf32, #tpu.memory_space<smem>>
    %c3 = arith.constant 3 : index
    %3 = memref.load %arg2[%c3] : memref<235xf32, #tpu.memory_space<smem>>
    %c4 = arith.constant 4 : index
    %4 = memref.load %arg2[%c4] : memref<235xf32, #tpu.memory_space<smem>>
    %c5 = arith.constant 5 : index
    %5 = memref.load %arg2[%c5] : memref<235xf32, #tpu.memory_space<smem>>
    %c6 = arith.constant 6 : index
    %6 = memref.load %arg2[%c6] : memref<235xf32, #tpu.memory_space<smem>>
    %c7 = arith.constant 7 : index
    %7 = memref.load %arg2[%c7] : memref<235xf32, #tpu.memory_space<smem>>
    %c8 = arith.constant 8 : index
    %8 = memref.load %arg2[%c8] : memref<235xf32, #tpu.memory_space<smem>>
    %c9 = arith.constant 9 : index
    %9 = memref.load %arg2[%c9] : memref<235xf32, #tpu.memory_space<smem>>
    %c10 = arith.constant 10 : index
    %10 = memref.load %arg2[%c10] : memref<235xf32, #tpu.memory_space<smem>>
    %c11 = arith.constant 11 : index
    %11 = memref.load %arg2[%c11] : memref<235xf32, #tpu.memory_space<smem>>
    %c12 = arith.constant 12 : index
    %12 = memref.load %arg2[%c12] : memref<235xf32, #tpu.memory_space<smem>>
    %c13 = arith.constant 13 : index
    %13 = memref.load %arg2[%c13] : memref<235xf32, #tpu.memory_space<smem>>
    %c14 = arith.constant 14 : index
    %14 = memref.load %arg2[%c14] : memref<235xf32, #tpu.memory_space<smem>>
    %c15 = arith.constant 15 : index
    %15 = memref.load %arg2[%c15] : memref<235xf32, #tpu.memory_space<smem>>
    %c16 = arith.constant 16 : index
    %16 = memref.load %arg2[%c16] : memref<235xf32, #tpu.memory_space<smem>>
    %c17 = arith.constant 17 : index
    %17 = memref.load %arg2[%c17] : memref<235xf32, #tpu.memory_space<smem>>
    %c18 = arith.constant 18 : index
    %18 = memref.load %arg2[%c18] : memref<235xf32, #tpu.memory_space<smem>>
    %c19 = arith.constant 19 : index
    %19 = memref.load %arg2[%c19] : memref<235xf32, #tpu.memory_space<smem>>
    %c20 = arith.constant 20 : index
    %20 = memref.load %arg2[%c20] : memref<235xf32, #tpu.memory_space<smem>>
    %c21 = arith.constant 21 : index
    %21 = memref.load %arg2[%c21] : memref<235xf32, #tpu.memory_space<smem>>
    %c22 = arith.constant 22 : index
    %22 = memref.load %arg2[%c22] : memref<235xf32, #tpu.memory_space<smem>>
    %c23 = arith.constant 23 : index
    %23 = memref.load %arg2[%c23] : memref<235xf32, #tpu.memory_space<smem>>
    %c24 = arith.constant 24 : index
    %24 = memref.load %arg2[%c24] : memref<235xf32, #tpu.memory_space<smem>>
    %c25 = arith.constant 25 : index
    %25 = memref.load %arg2[%c25] : memref<235xf32, #tpu.memory_space<smem>>
    %c26 = arith.constant 26 : index
    %26 = memref.load %arg2[%c26] : memref<235xf32, #tpu.memory_space<smem>>
    %c27 = arith.constant 27 : index
    %27 = memref.load %arg2[%c27] : memref<235xf32, #tpu.memory_space<smem>>
    %c28 = arith.constant 28 : index
    %28 = memref.load %arg2[%c28] : memref<235xf32, #tpu.memory_space<smem>>
    %c29 = arith.constant 29 : index
    %29 = memref.load %arg2[%c29] : memref<235xf32, #tpu.memory_space<smem>>
    %c30 = arith.constant 30 : index
    %30 = memref.load %arg2[%c30] : memref<235xf32, #tpu.memory_space<smem>>
    %c31 = arith.constant 31 : index
    %31 = memref.load %arg2[%c31] : memref<235xf32, #tpu.memory_space<smem>>
    %c32 = arith.constant 32 : index
    %32 = memref.load %arg2[%c32] : memref<235xf32, #tpu.memory_space<smem>>
    %c33 = arith.constant 33 : index
    %33 = memref.load %arg2[%c33] : memref<235xf32, #tpu.memory_space<smem>>
    %c34 = arith.constant 34 : index
    %34 = memref.load %arg2[%c34] : memref<235xf32, #tpu.memory_space<smem>>
    %c35 = arith.constant 35 : index
    %35 = memref.load %arg2[%c35] : memref<235xf32, #tpu.memory_space<smem>>
    %c36 = arith.constant 36 : index
    %36 = memref.load %arg2[%c36] : memref<235xf32, #tpu.memory_space<smem>>
    %c37 = arith.constant 37 : index
    %37 = memref.load %arg2[%c37] : memref<235xf32, #tpu.memory_space<smem>>
    %c38 = arith.constant 38 : index
    %38 = memref.load %arg2[%c38] : memref<235xf32, #tpu.memory_space<smem>>
    %c39 = arith.constant 39 : index
    %39 = memref.load %arg2[%c39] : memref<235xf32, #tpu.memory_space<smem>>
    %c40 = arith.constant 40 : index
    %40 = memref.load %arg2[%c40] : memref<235xf32, #tpu.memory_space<smem>>
    %c41 = arith.constant 41 : index
    %41 = memref.load %arg2[%c41] : memref<235xf32, #tpu.memory_space<smem>>
    %c42 = arith.constant 42 : index
    %42 = memref.load %arg2[%c42] : memref<235xf32, #tpu.memory_space<smem>>
    %c43 = arith.constant 43 : index
    %43 = memref.load %arg2[%c43] : memref<235xf32, #tpu.memory_space<smem>>
    %c44 = arith.constant 44 : index
    %44 = memref.load %arg2[%c44] : memref<235xf32, #tpu.memory_space<smem>>
    %c45 = arith.constant 45 : index
    %45 = memref.load %arg2[%c45] : memref<235xf32, #tpu.memory_space<smem>>
    %c46 = arith.constant 46 : index
    %46 = memref.load %arg2[%c46] : memref<235xf32, #tpu.memory_space<smem>>
    %c47 = arith.constant 47 : index
    %47 = memref.load %arg2[%c47] : memref<235xf32, #tpu.memory_space<smem>>
    %c48 = arith.constant 48 : index
    %48 = memref.load %arg2[%c48] : memref<235xf32, #tpu.memory_space<smem>>
    %c49 = arith.constant 49 : index
    %49 = memref.load %arg2[%c49] : memref<235xf32, #tpu.memory_space<smem>>
    %c50 = arith.constant 50 : index
    %50 = memref.load %arg2[%c50] : memref<235xf32, #tpu.memory_space<smem>>
    %c51 = arith.constant 51 : index
    %51 = memref.load %arg2[%c51] : memref<235xf32, #tpu.memory_space<smem>>
    %c52 = arith.constant 52 : index
    %52 = memref.load %arg2[%c52] : memref<235xf32, #tpu.memory_space<smem>>
    %c53 = arith.constant 53 : index
    %53 = memref.load %arg2[%c53] : memref<235xf32, #tpu.memory_space<smem>>
    %c54 = arith.constant 54 : index
    %54 = memref.load %arg2[%c54] : memref<235xf32, #tpu.memory_space<smem>>
    %c55 = arith.constant 55 : index
    %55 = memref.load %arg2[%c55] : memref<235xf32, #tpu.memory_space<smem>>
    %c56 = arith.constant 56 : index
    %56 = memref.load %arg2[%c56] : memref<235xf32, #tpu.memory_space<smem>>
    %c57 = arith.constant 57 : index
    %57 = memref.load %arg2[%c57] : memref<235xf32, #tpu.memory_space<smem>>
    %c58 = arith.constant 58 : index
    %58 = memref.load %arg2[%c58] : memref<235xf32, #tpu.memory_space<smem>>
    %c59 = arith.constant 59 : index
    %59 = memref.load %arg2[%c59] : memref<235xf32, #tpu.memory_space<smem>>
    %c60 = arith.constant 60 : index
    %60 = memref.load %arg2[%c60] : memref<235xf32, #tpu.memory_space<smem>>
    %c61 = arith.constant 61 : index
    %61 = memref.load %arg2[%c61] : memref<235xf32, #tpu.memory_space<smem>>
    %c62 = arith.constant 62 : index
    %62 = memref.load %arg2[%c62] : memref<235xf32, #tpu.memory_space<smem>>
    %c63 = arith.constant 63 : index
    %63 = memref.load %arg2[%c63] : memref<235xf32, #tpu.memory_space<smem>>
    %c64 = arith.constant 64 : index
    %64 = memref.load %arg2[%c64] : memref<235xf32, #tpu.memory_space<smem>>
    %c65 = arith.constant 65 : index
    %65 = memref.load %arg2[%c65] : memref<235xf32, #tpu.memory_space<smem>>
    %c66 = arith.constant 66 : index
    %66 = memref.load %arg2[%c66] : memref<235xf32, #tpu.memory_space<smem>>
    %c67 = arith.constant 67 : index
    %67 = memref.load %arg2[%c67] : memref<235xf32, #tpu.memory_space<smem>>
    %c68 = arith.constant 68 : index
    %68 = memref.load %arg2[%c68] : memref<235xf32, #tpu.memory_space<smem>>
    %c69 = arith.constant 69 : index
    %69 = memref.load %arg2[%c69] : memref<235xf32, #tpu.memory_space<smem>>
    %c70 = arith.constant 70 : index
    %70 = memref.load %arg2[%c70] : memref<235xf32, #tpu.memory_space<smem>>
    %c71 = arith.constant 71 : index
    %71 = memref.load %arg2[%c71] : memref<235xf32, #tpu.memory_space<smem>>
    %c72 = arith.constant 72 : index
    %72 = memref.load %arg2[%c72] : memref<235xf32, #tpu.memory_space<smem>>
    %c73 = arith.constant 73 : index
    %73 = memref.load %arg2[%c73] : memref<235xf32, #tpu.memory_space<smem>>
    %c74 = arith.constant 74 : index
    %74 = memref.load %arg2[%c74] : memref<235xf32, #tpu.memory_space<smem>>
    %c75 = arith.constant 75 : index
    %75 = memref.load %arg2[%c75] : memref<235xf32, #tpu.memory_space<smem>>
    %c76 = arith.constant 76 : index
    %76 = memref.load %arg2[%c76] : memref<235xf32, #tpu.memory_space<smem>>
    %c77 = arith.constant 77 : index
    %77 = memref.load %arg2[%c77] : memref<235xf32, #tpu.memory_space<smem>>
    %c78 = arith.constant 78 : index
    %78 = memref.load %arg2[%c78] : memref<235xf32, #tpu.memory_space<smem>>
    %c79 = arith.constant 79 : index
    %79 = memref.load %arg2[%c79] : memref<235xf32, #tpu.memory_space<smem>>
    %c80 = arith.constant 80 : index
    %80 = memref.load %arg2[%c80] : memref<235xf32, #tpu.memory_space<smem>>
    %c81 = arith.constant 81 : index
    %81 = memref.load %arg2[%c81] : memref<235xf32, #tpu.memory_space<smem>>
    %c82 = arith.constant 82 : index
    %82 = memref.load %arg2[%c82] : memref<235xf32, #tpu.memory_space<smem>>
    %c83 = arith.constant 83 : index
    %83 = memref.load %arg2[%c83] : memref<235xf32, #tpu.memory_space<smem>>
    %c84 = arith.constant 84 : index
    %84 = memref.load %arg2[%c84] : memref<235xf32, #tpu.memory_space<smem>>
    %c85 = arith.constant 85 : index
    %85 = memref.load %arg2[%c85] : memref<235xf32, #tpu.memory_space<smem>>
    %c86 = arith.constant 86 : index
    %86 = memref.load %arg2[%c86] : memref<235xf32, #tpu.memory_space<smem>>
    %c87 = arith.constant 87 : index
    %87 = memref.load %arg2[%c87] : memref<235xf32, #tpu.memory_space<smem>>
    %c88 = arith.constant 88 : index
    %88 = memref.load %arg2[%c88] : memref<235xf32, #tpu.memory_space<smem>>
    %c89 = arith.constant 89 : index
    %89 = memref.load %arg2[%c89] : memref<235xf32, #tpu.memory_space<smem>>
    %c90 = arith.constant 90 : index
    %90 = memref.load %arg2[%c90] : memref<235xf32, #tpu.memory_space<smem>>
    %c91 = arith.constant 91 : index
    %91 = memref.load %arg2[%c91] : memref<235xf32, #tpu.memory_space<smem>>
    %c92 = arith.constant 92 : index
    %92 = memref.load %arg2[%c92] : memref<235xf32, #tpu.memory_space<smem>>
    %c93 = arith.constant 93 : index
    %93 = memref.load %arg2[%c93] : memref<235xf32, #tpu.memory_space<smem>>
    %c94 = arith.constant 94 : index
    %94 = memref.load %arg2[%c94] : memref<235xf32, #tpu.memory_space<smem>>
    %c95 = arith.constant 95 : index
    %95 = memref.load %arg2[%c95] : memref<235xf32, #tpu.memory_space<smem>>
    %c96 = arith.constant 96 : index
    %96 = memref.load %arg2[%c96] : memref<235xf32, #tpu.memory_space<smem>>
    %c97 = arith.constant 97 : index
    %97 = memref.load %arg2[%c97] : memref<235xf32, #tpu.memory_space<smem>>
    %c98 = arith.constant 98 : index
    %98 = memref.load %arg2[%c98] : memref<235xf32, #tpu.memory_space<smem>>
    %c99 = arith.constant 99 : index
    %99 = memref.load %arg2[%c99] : memref<235xf32, #tpu.memory_space<smem>>
    %c100 = arith.constant 100 : index
    %100 = memref.load %arg2[%c100] : memref<235xf32, #tpu.memory_space<smem>>
    %c101 = arith.constant 101 : index
    %101 = memref.load %arg2[%c101] : memref<235xf32, #tpu.memory_space<smem>>
    %c102 = arith.constant 102 : index
    %102 = memref.load %arg2[%c102] : memref<235xf32, #tpu.memory_space<smem>>
    %c103 = arith.constant 103 : index
    %103 = memref.load %arg2[%c103] : memref<235xf32, #tpu.memory_space<smem>>
    %c104 = arith.constant 104 : index
    %104 = memref.load %arg2[%c104] : memref<235xf32, #tpu.memory_space<smem>>
    %c105 = arith.constant 105 : index
    %105 = memref.load %arg2[%c105] : memref<235xf32, #tpu.memory_space<smem>>
    %c106 = arith.constant 106 : index
    %106 = memref.load %arg2[%c106] : memref<235xf32, #tpu.memory_space<smem>>
    %c107 = arith.constant 107 : index
    %107 = memref.load %arg2[%c107] : memref<235xf32, #tpu.memory_space<smem>>
    %c108 = arith.constant 108 : index
    %108 = memref.load %arg2[%c108] : memref<235xf32, #tpu.memory_space<smem>>
    %c109 = arith.constant 109 : index
    %109 = memref.load %arg2[%c109] : memref<235xf32, #tpu.memory_space<smem>>
    %c110 = arith.constant 110 : index
    %110 = memref.load %arg2[%c110] : memref<235xf32, #tpu.memory_space<smem>>
    %c111 = arith.constant 111 : index
    %111 = memref.load %arg2[%c111] : memref<235xf32, #tpu.memory_space<smem>>
    %c112 = arith.constant 112 : index
    %112 = memref.load %arg2[%c112] : memref<235xf32, #tpu.memory_space<smem>>
    %c113 = arith.constant 113 : index
    %113 = memref.load %arg2[%c113] : memref<235xf32, #tpu.memory_space<smem>>
    %c114 = arith.constant 114 : index
    %114 = memref.load %arg2[%c114] : memref<235xf32, #tpu.memory_space<smem>>
    %c115 = arith.constant 115 : index
    %115 = memref.load %arg2[%c115] : memref<235xf32, #tpu.memory_space<smem>>
    %c116 = arith.constant 116 : index
    %116 = memref.load %arg2[%c116] : memref<235xf32, #tpu.memory_space<smem>>
    %c117 = arith.constant 117 : index
    %117 = memref.load %arg2[%c117] : memref<235xf32, #tpu.memory_space<smem>>
    %c118 = arith.constant 118 : index
    %118 = memref.load %arg2[%c118] : memref<235xf32, #tpu.memory_space<smem>>
    %c119 = arith.constant 119 : index
    %119 = memref.load %arg2[%c119] : memref<235xf32, #tpu.memory_space<smem>>
    %c120 = arith.constant 120 : index
    %120 = memref.load %arg2[%c120] : memref<235xf32, #tpu.memory_space<smem>>
    %c121 = arith.constant 121 : index
    %121 = memref.load %arg2[%c121] : memref<235xf32, #tpu.memory_space<smem>>
    %c122 = arith.constant 122 : index
    %122 = memref.load %arg2[%c122] : memref<235xf32, #tpu.memory_space<smem>>
    %c123 = arith.constant 123 : index
    %123 = memref.load %arg2[%c123] : memref<235xf32, #tpu.memory_space<smem>>
    %c124 = arith.constant 124 : index
    %124 = memref.load %arg2[%c124] : memref<235xf32, #tpu.memory_space<smem>>
    %c125 = arith.constant 125 : index
    %125 = memref.load %arg2[%c125] : memref<235xf32, #tpu.memory_space<smem>>
    %c126 = arith.constant 126 : index
    %126 = memref.load %arg2[%c126] : memref<235xf32, #tpu.memory_space<smem>>
    %c127 = arith.constant 127 : index
    %127 = memref.load %arg2[%c127] : memref<235xf32, #tpu.memory_space<smem>>
    %c128 = arith.constant 128 : index
    %128 = memref.load %arg2[%c128] : memref<235xf32, #tpu.memory_space<smem>>
    %c129 = arith.constant 129 : index
    %129 = memref.load %arg2[%c129] : memref<235xf32, #tpu.memory_space<smem>>
    %c130 = arith.constant 130 : index
    %130 = memref.load %arg2[%c130] : memref<235xf32, #tpu.memory_space<smem>>
    %c131 = arith.constant 131 : index
    %131 = memref.load %arg2[%c131] : memref<235xf32, #tpu.memory_space<smem>>
    %c132 = arith.constant 132 : index
    %132 = memref.load %arg2[%c132] : memref<235xf32, #tpu.memory_space<smem>>
    %c133 = arith.constant 133 : index
    %133 = memref.load %arg2[%c133] : memref<235xf32, #tpu.memory_space<smem>>
    %c134 = arith.constant 134 : index
    %134 = memref.load %arg2[%c134] : memref<235xf32, #tpu.memory_space<smem>>
    %c135 = arith.constant 135 : index
    %135 = memref.load %arg2[%c135] : memref<235xf32, #tpu.memory_space<smem>>
    %c136 = arith.constant 136 : index
    %136 = memref.load %arg2[%c136] : memref<235xf32, #tpu.memory_space<smem>>
    %c137 = arith.constant 137 : index
    %137 = memref.load %arg2[%c137] : memref<235xf32, #tpu.memory_space<smem>>
    %c138 = arith.constant 138 : index
    %138 = memref.load %arg2[%c138] : memref<235xf32, #tpu.memory_space<smem>>
    %c139 = arith.constant 139 : index
    %139 = memref.load %arg2[%c139] : memref<235xf32, #tpu.memory_space<smem>>
    %c140 = arith.constant 140 : index
    %140 = memref.load %arg2[%c140] : memref<235xf32, #tpu.memory_space<smem>>
    %c141 = arith.constant 141 : index
    %141 = memref.load %arg2[%c141] : memref<235xf32, #tpu.memory_space<smem>>
    %c142 = arith.constant 142 : index
    %142 = memref.load %arg2[%c142] : memref<235xf32, #tpu.memory_space<smem>>
    %c143 = arith.constant 143 : index
    %143 = memref.load %arg2[%c143] : memref<235xf32, #tpu.memory_space<smem>>
    %c144 = arith.constant 144 : index
    %144 = memref.load %arg2[%c144] : memref<235xf32, #tpu.memory_space<smem>>
    %c145 = arith.constant 145 : index
    %145 = memref.load %arg2[%c145] : memref<235xf32, #tpu.memory_space<smem>>
    %c146 = arith.constant 146 : index
    %146 = memref.load %arg2[%c146] : memref<235xf32, #tpu.memory_space<smem>>
    %c147 = arith.constant 147 : index
    %147 = memref.load %arg2[%c147] : memref<235xf32, #tpu.memory_space<smem>>
    %c148 = arith.constant 148 : index
    %148 = memref.load %arg2[%c148] : memref<235xf32, #tpu.memory_space<smem>>
    %c149 = arith.constant 149 : index
    %149 = memref.load %arg2[%c149] : memref<235xf32, #tpu.memory_space<smem>>
    %c150 = arith.constant 150 : index
    %150 = memref.load %arg2[%c150] : memref<235xf32, #tpu.memory_space<smem>>
    %c151 = arith.constant 151 : index
    %151 = memref.load %arg2[%c151] : memref<235xf32, #tpu.memory_space<smem>>
    %c152 = arith.constant 152 : index
    %152 = memref.load %arg2[%c152] : memref<235xf32, #tpu.memory_space<smem>>
    %c153 = arith.constant 153 : index
    %153 = memref.load %arg2[%c153] : memref<235xf32, #tpu.memory_space<smem>>
    %c154 = arith.constant 154 : index
    %154 = memref.load %arg2[%c154] : memref<235xf32, #tpu.memory_space<smem>>
    %c155 = arith.constant 155 : index
    %155 = memref.load %arg2[%c155] : memref<235xf32, #tpu.memory_space<smem>>
    %c156 = arith.constant 156 : index
    %156 = memref.load %arg2[%c156] : memref<235xf32, #tpu.memory_space<smem>>
    %c157 = arith.constant 157 : index
    %157 = memref.load %arg2[%c157] : memref<235xf32, #tpu.memory_space<smem>>
    %c158 = arith.constant 158 : index
    %158 = memref.load %arg2[%c158] : memref<235xf32, #tpu.memory_space<smem>>
    %c159 = arith.constant 159 : index
    %159 = memref.load %arg2[%c159] : memref<235xf32, #tpu.memory_space<smem>>
    %c160 = arith.constant 160 : index
    %160 = memref.load %arg2[%c160] : memref<235xf32, #tpu.memory_space<smem>>
    %c161 = arith.constant 161 : index
    %161 = memref.load %arg2[%c161] : memref<235xf32, #tpu.memory_space<smem>>
    %c162 = arith.constant 162 : index
    %162 = memref.load %arg2[%c162] : memref<235xf32, #tpu.memory_space<smem>>
    %c163 = arith.constant 163 : index
    %163 = memref.load %arg2[%c163] : memref<235xf32, #tpu.memory_space<smem>>
    %c164 = arith.constant 164 : index
    %164 = memref.load %arg2[%c164] : memref<235xf32, #tpu.memory_space<smem>>
    %c165 = arith.constant 165 : index
    %165 = memref.load %arg2[%c165] : memref<235xf32, #tpu.memory_space<smem>>
    %c166 = arith.constant 166 : index
    %166 = memref.load %arg2[%c166] : memref<235xf32, #tpu.memory_space<smem>>
    %c167 = arith.constant 167 : index
    %167 = memref.load %arg2[%c167] : memref<235xf32, #tpu.memory_space<smem>>
    %c168 = arith.constant 168 : index
    %168 = memref.load %arg2[%c168] : memref<235xf32, #tpu.memory_space<smem>>
    %c169 = arith.constant 169 : index
    %169 = memref.load %arg2[%c169] : memref<235xf32, #tpu.memory_space<smem>>
    %c170 = arith.constant 170 : index
    %170 = memref.load %arg2[%c170] : memref<235xf32, #tpu.memory_space<smem>>
    %c171 = arith.constant 171 : index
    %171 = memref.load %arg2[%c171] : memref<235xf32, #tpu.memory_space<smem>>
    %c172 = arith.constant 172 : index
    %172 = memref.load %arg2[%c172] : memref<235xf32, #tpu.memory_space<smem>>
    %c173 = arith.constant 173 : index
    %173 = memref.load %arg2[%c173] : memref<235xf32, #tpu.memory_space<smem>>
    %c174 = arith.constant 174 : index
    %174 = memref.load %arg2[%c174] : memref<235xf32, #tpu.memory_space<smem>>
    %c175 = arith.constant 175 : index
    %175 = memref.load %arg2[%c175] : memref<235xf32, #tpu.memory_space<smem>>
    %c176 = arith.constant 176 : index
    %176 = memref.load %arg2[%c176] : memref<235xf32, #tpu.memory_space<smem>>
    %c177 = arith.constant 177 : index
    %177 = memref.load %arg2[%c177] : memref<235xf32, #tpu.memory_space<smem>>
    %c178 = arith.constant 178 : index
    %178 = memref.load %arg2[%c178] : memref<235xf32, #tpu.memory_space<smem>>
    %c179 = arith.constant 179 : index
    %179 = memref.load %arg2[%c179] : memref<235xf32, #tpu.memory_space<smem>>
    %c180 = arith.constant 180 : index
    %180 = memref.load %arg2[%c180] : memref<235xf32, #tpu.memory_space<smem>>
    %c181 = arith.constant 181 : index
    %181 = memref.load %arg2[%c181] : memref<235xf32, #tpu.memory_space<smem>>
    %c182 = arith.constant 182 : index
    %182 = memref.load %arg2[%c182] : memref<235xf32, #tpu.memory_space<smem>>
    %c183 = arith.constant 183 : index
    %183 = memref.load %arg2[%c183] : memref<235xf32, #tpu.memory_space<smem>>
    %c184 = arith.constant 184 : index
    %184 = memref.load %arg2[%c184] : memref<235xf32, #tpu.memory_space<smem>>
    %c185 = arith.constant 185 : index
    %185 = memref.load %arg2[%c185] : memref<235xf32, #tpu.memory_space<smem>>
    %c186 = arith.constant 186 : index
    %186 = memref.load %arg2[%c186] : memref<235xf32, #tpu.memory_space<smem>>
    %c187 = arith.constant 187 : index
    %187 = memref.load %arg2[%c187] : memref<235xf32, #tpu.memory_space<smem>>
    %c188 = arith.constant 188 : index
    %188 = memref.load %arg2[%c188] : memref<235xf32, #tpu.memory_space<smem>>
    %c189 = arith.constant 189 : index
    %189 = memref.load %arg2[%c189] : memref<235xf32, #tpu.memory_space<smem>>
    %c190 = arith.constant 190 : index
    %190 = memref.load %arg2[%c190] : memref<235xf32, #tpu.memory_space<smem>>
    %c191 = arith.constant 191 : index
    %191 = memref.load %arg2[%c191] : memref<235xf32, #tpu.memory_space<smem>>
    %c192 = arith.constant 192 : index
    %192 = memref.load %arg2[%c192] : memref<235xf32, #tpu.memory_space<smem>>
    %c193 = arith.constant 193 : index
    %193 = memref.load %arg2[%c193] : memref<235xf32, #tpu.memory_space<smem>>
    %c194 = arith.constant 194 : index
    %194 = memref.load %arg2[%c194] : memref<235xf32, #tpu.memory_space<smem>>
    %c195 = arith.constant 195 : index
    %195 = memref.load %arg2[%c195] : memref<235xf32, #tpu.memory_space<smem>>
    %c196 = arith.constant 196 : index
    %196 = memref.load %arg2[%c196] : memref<235xf32, #tpu.memory_space<smem>>
    %c197 = arith.constant 197 : index
    %197 = memref.load %arg2[%c197] : memref<235xf32, #tpu.memory_space<smem>>
    %c198 = arith.constant 198 : index
    %198 = memref.load %arg2[%c198] : memref<235xf32, #tpu.memory_space<smem>>
    %c199 = arith.constant 199 : index
    %199 = memref.load %arg2[%c199] : memref<235xf32, #tpu.memory_space<smem>>
    %c200 = arith.constant 200 : index
    %200 = memref.load %arg2[%c200] : memref<235xf32, #tpu.memory_space<smem>>
    %c210 = arith.constant 210 : index
    %201 = memref.load %arg2[%c210] : memref<235xf32, #tpu.memory_space<smem>>
    %c211 = arith.constant 211 : index
    %202 = memref.load %arg2[%c211] : memref<235xf32, #tpu.memory_space<smem>>
    %c212 = arith.constant 212 : index
    %203 = memref.load %arg2[%c212] : memref<235xf32, #tpu.memory_space<smem>>
    %c213 = arith.constant 213 : index
    %204 = memref.load %arg2[%c213] : memref<235xf32, #tpu.memory_space<smem>>
    %c214 = arith.constant 214 : index
    %205 = memref.load %arg2[%c214] : memref<235xf32, #tpu.memory_space<smem>>
    %c215 = arith.constant 215 : index
    %206 = memref.load %arg2[%c215] : memref<235xf32, #tpu.memory_space<smem>>
    %c216 = arith.constant 216 : index
    %207 = memref.load %arg2[%c216] : memref<235xf32, #tpu.memory_space<smem>>
    %c217 = arith.constant 217 : index
    %208 = memref.load %arg2[%c217] : memref<235xf32, #tpu.memory_space<smem>>
    %c218 = arith.constant 218 : index
    %209 = memref.load %arg2[%c218] : memref<235xf32, #tpu.memory_space<smem>>
    %c222 = arith.constant 222 : index
    %210 = memref.load %arg2[%c222] : memref<235xf32, #tpu.memory_space<smem>>
    %c223 = arith.constant 223 : index
    %211 = memref.load %arg2[%c223] : memref<235xf32, #tpu.memory_space<smem>>
    %c224 = arith.constant 224 : index
    %212 = memref.load %arg2[%c224] : memref<235xf32, #tpu.memory_space<smem>>
    %c225 = arith.constant 225 : index
    %213 = memref.load %arg2[%c225] : memref<235xf32, #tpu.memory_space<smem>>
    %c226 = arith.constant 226 : index
    %214 = memref.load %arg2[%c226] : memref<235xf32, #tpu.memory_space<smem>>
    %c227 = arith.constant 227 : index
    %215 = memref.load %arg2[%c227] : memref<235xf32, #tpu.memory_space<smem>>
    %c228 = arith.constant 228 : index
    %216 = memref.load %arg2[%c228] : memref<235xf32, #tpu.memory_space<smem>>
    %c229 = arith.constant 229 : index
    %217 = memref.load %arg2[%c229] : memref<235xf32, #tpu.memory_space<smem>>
    %c230 = arith.constant 230 : index
    %218 = memref.load %arg2[%c230] : memref<235xf32, #tpu.memory_space<smem>>
    %c231 = arith.constant 231 : index
    %219 = memref.load %arg2[%c231] : memref<235xf32, #tpu.memory_space<smem>>
    %c232 = arith.constant 232 : index
    %220 = memref.load %arg2[%c232] : memref<235xf32, #tpu.memory_space<smem>>
    %c233 = arith.constant 233 : index
    %221 = memref.load %arg2[%c233] : memref<235xf32, #tpu.memory_space<smem>>
    %c234 = arith.constant 234 : index
    %222 = memref.load %arg2[%c234] : memref<235xf32, #tpu.memory_space<smem>>
    %223 = tpu.iota {dimensions = array<i32: 1>} : vector<8x128xi32>
    %c127_i32 = arith.constant 127 : i32
    %224 = vector.broadcast %c127_i32 : i32 to vector<8x128xi32>
    %225 = arith.cmpi sge, %223, %224 : vector<8x128xi32>
    %c126_i32 = arith.constant 126 : i32
    %226 = vector.broadcast %c126_i32 : i32 to vector<8x128xi32>
    %227 = arith.cmpi sge, %223, %226 : vector<8x128xi32>
    %cst = arith.constant 0.000000e+00 : f32
    %228 = vector.broadcast %cst : f32 to vector<8x128xf32>
    %c0_0 = arith.constant 0 : index
    %c0_1 = arith.constant 0 : index
    %229 = vector.load %arg4[%c0_0, %c0_1] : memref<8x128xf32, #tpu.memory_space<vmem>>, vector<8x128xf32>
    %230 = vector.broadcast %0 : f32 to vector<8x128xf32>
    %231 = arith.mulf %230, %229 : vector<8x128xf32>
    %232 = vector.broadcast %3 : f32 to vector<8x128xf32>
    %233 = arith.addf %231, %232 : vector<8x128xf32>
    %234 = vector.broadcast %1 : f32 to vector<8x128xf32>
    %235 = arith.mulf %234, %229 : vector<8x128xf32>
    %236 = vector.broadcast %4 : f32 to vector<8x128xf32>
    %237 = arith.addf %235, %236 : vector<8x128xf32>
    %238 = vector.broadcast %2 : f32 to vector<8x128xf32>
    %239 = arith.mulf %238, %229 : vector<8x128xf32>
    %240 = vector.broadcast %5 : f32 to vector<8x128xf32>
    %241 = arith.addf %239, %240 : vector<8x128xf32>
    %242 = arith.select %225, %228, %233 : vector<8x128xi1>, vector<8x128xf32>
    %c1_i32 = arith.constant 1 : i32
    %243 = tpu.dynamic_rotate %242 by %c1_i32 dim 1 : vector<8x128xf32>, i32 -> vector<8x128xf32>
    %244 = arith.select %225, %228, %237 : vector<8x128xi1>, vector<8x128xf32>
    %c1_i32_2 = arith.constant 1 : i32
    %245 = tpu.dynamic_rotate %244 by %c1_i32_2 dim 1 : vector<8x128xf32>, i32 -> vector<8x128xf32>
    %246 = arith.select %225, %228, %241 : vector<8x128xi1>, vector<8x128xf32>
    %c1_i32_3 = arith.constant 1 : i32
    %247 = tpu.dynamic_rotate %246 by %c1_i32_3 dim 1 : vector<8x128xf32>, i32 -> vector<8x128xf32>
    %248 = vector.broadcast %6 : f32 to vector<8x128xf32>
    %249 = arith.mulf %248, %243 : vector<8x128xf32>
    %250 = vector.broadcast %150 : f32 to vector<8x128xf32>
    %251 = arith.addf %250, %249 : vector<8x128xf32>
    %252 = vector.broadcast %78 : f32 to vector<8x128xf32>
    %253 = arith.mulf %252, %233 : vector<8x128xf32>
    %254 = arith.addf %251, %253 : vector<8x128xf32>
    %255 = vector.broadcast %15 : f32 to vector<8x128xf32>
    %256 = arith.mulf %255, %243 : vector<8x128xf32>
    %257 = vector.broadcast %153 : f32 to vector<8x128xf32>
    %258 = arith.addf %257, %256 : vector<8x128xf32>
    %259 = vector.broadcast %87 : f32 to vector<8x128xf32>
    %260 = arith.mulf %259, %233 : vector<8x128xf32>
    %261 = arith.addf %258, %260 : vector<8x128xf32>
    %262 = vector.broadcast %7 : f32 to vector<8x128xf32>
    %263 = arith.mulf %262, %245 : vector<8x128xf32>
    %264 = arith.addf %254, %263 : vector<8x128xf32>
    %265 = vector.broadcast %79 : f32 to vector<8x128xf32>
    %266 = arith.mulf %265, %237 : vector<8x128xf32>
    %267 = arith.addf %264, %266 : vector<8x128xf32>
    %268 = vector.broadcast %16 : f32 to vector<8x128xf32>
    %269 = arith.mulf %268, %245 : vector<8x128xf32>
    %270 = arith.addf %261, %269 : vector<8x128xf32>
    %271 = vector.broadcast %88 : f32 to vector<8x128xf32>
    %272 = arith.mulf %271, %237 : vector<8x128xf32>
    %273 = arith.addf %270, %272 : vector<8x128xf32>
    %274 = vector.broadcast %8 : f32 to vector<8x128xf32>
    %275 = arith.mulf %274, %247 : vector<8x128xf32>
    %276 = arith.addf %267, %275 : vector<8x128xf32>
    %277 = vector.broadcast %80 : f32 to vector<8x128xf32>
    %278 = arith.mulf %277, %241 : vector<8x128xf32>
    %279 = arith.addf %276, %278 : vector<8x128xf32>
    %280 = vector.broadcast %17 : f32 to vector<8x128xf32>
    %281 = arith.mulf %280, %247 : vector<8x128xf32>
    %282 = arith.addf %273, %281 : vector<8x128xf32>
    %283 = vector.broadcast %89 : f32 to vector<8x128xf32>
    %284 = arith.mulf %283, %241 : vector<8x128xf32>
    %285 = arith.addf %282, %284 : vector<8x128xf32>
    %286 = math.tanh %279 : vector<8x128xf32>
    %cst_4 = arith.constant 5.000000e-01 : f32
    %287 = vector.broadcast %cst_4 : f32 to vector<8x128xf32>
    %288 = arith.mulf %287, %285 : vector<8x128xf32>
    %289 = math.tanh %288 : vector<8x128xf32>
    %cst_5 = arith.constant 5.000000e-01 : f32
    %290 = vector.broadcast %cst_5 : f32 to vector<8x128xf32>
    %291 = arith.mulf %290, %289 : vector<8x128xf32>
    %cst_6 = arith.constant 5.000000e-01 : f32
    %292 = vector.broadcast %cst_6 : f32 to vector<8x128xf32>
    %293 = arith.addf %291, %292 : vector<8x128xf32>
    %294 = arith.mulf %286, %293 : vector<8x128xf32>
    %295 = vector.broadcast %9 : f32 to vector<8x128xf32>
    %296 = arith.mulf %295, %243 : vector<8x128xf32>
    %297 = vector.broadcast %151 : f32 to vector<8x128xf32>
    %298 = arith.addf %297, %296 : vector<8x128xf32>
    %299 = vector.broadcast %81 : f32 to vector<8x128xf32>
    %300 = arith.mulf %299, %233 : vector<8x128xf32>
    %301 = arith.addf %298, %300 : vector<8x128xf32>
    %302 = vector.broadcast %18 : f32 to vector<8x128xf32>
    %303 = arith.mulf %302, %243 : vector<8x128xf32>
    %304 = vector.broadcast %154 : f32 to vector<8x128xf32>
    %305 = arith.addf %304, %303 : vector<8x128xf32>
    %306 = vector.broadcast %90 : f32 to vector<8x128xf32>
    %307 = arith.mulf %306, %233 : vector<8x128xf32>
    %308 = arith.addf %305, %307 : vector<8x128xf32>
    %309 = vector.broadcast %10 : f32 to vector<8x128xf32>
    %310 = arith.mulf %309, %245 : vector<8x128xf32>
    %311 = arith.addf %301, %310 : vector<8x128xf32>
    %312 = vector.broadcast %82 : f32 to vector<8x128xf32>
    %313 = arith.mulf %312, %237 : vector<8x128xf32>
    %314 = arith.addf %311, %313 : vector<8x128xf32>
    %315 = vector.broadcast %19 : f32 to vector<8x128xf32>
    %316 = arith.mulf %315, %245 : vector<8x128xf32>
    %317 = arith.addf %308, %316 : vector<8x128xf32>
    %318 = vector.broadcast %91 : f32 to vector<8x128xf32>
    %319 = arith.mulf %318, %237 : vector<8x128xf32>
    %320 = arith.addf %317, %319 : vector<8x128xf32>
    %321 = vector.broadcast %11 : f32 to vector<8x128xf32>
    %322 = arith.mulf %321, %247 : vector<8x128xf32>
    %323 = arith.addf %314, %322 : vector<8x128xf32>
    %324 = vector.broadcast %83 : f32 to vector<8x128xf32>
    %325 = arith.mulf %324, %241 : vector<8x128xf32>
    %326 = arith.addf %323, %325 : vector<8x128xf32>
    %327 = vector.broadcast %20 : f32 to vector<8x128xf32>
    %328 = arith.mulf %327, %247 : vector<8x128xf32>
    %329 = arith.addf %320, %328 : vector<8x128xf32>
    %330 = vector.broadcast %92 : f32 to vector<8x128xf32>
    %331 = arith.mulf %330, %241 : vector<8x128xf32>
    %332 = arith.addf %329, %331 : vector<8x128xf32>
    %333 = math.tanh %326 : vector<8x128xf32>
    %cst_7 = arith.constant 5.000000e-01 : f32
    %334 = vector.broadcast %cst_7 : f32 to vector<8x128xf32>
    %335 = arith.mulf %334, %332 : vector<8x128xf32>
    %336 = math.tanh %335 : vector<8x128xf32>
    %cst_8 = arith.constant 5.000000e-01 : f32
    %337 = vector.broadcast %cst_8 : f32 to vector<8x128xf32>
    %338 = arith.mulf %337, %336 : vector<8x128xf32>
    %cst_9 = arith.constant 5.000000e-01 : f32
    %339 = vector.broadcast %cst_9 : f32 to vector<8x128xf32>
    %340 = arith.addf %338, %339 : vector<8x128xf32>
    %341 = arith.mulf %333, %340 : vector<8x128xf32>
    %342 = vector.broadcast %12 : f32 to vector<8x128xf32>
    %343 = arith.mulf %342, %243 : vector<8x128xf32>
    %344 = vector.broadcast %152 : f32 to vector<8x128xf32>
    %345 = arith.addf %344, %343 : vector<8x128xf32>
    %346 = vector.broadcast %84 : f32 to vector<8x128xf32>
    %347 = arith.mulf %346, %233 : vector<8x128xf32>
    %348 = arith.addf %345, %347 : vector<8x128xf32>
    %349 = vector.broadcast %21 : f32 to vector<8x128xf32>
    %350 = arith.mulf %349, %243 : vector<8x128xf32>
    %351 = vector.broadcast %155 : f32 to vector<8x128xf32>
    %352 = arith.addf %351, %350 : vector<8x128xf32>
    %353 = vector.broadcast %93 : f32 to vector<8x128xf32>
    %354 = arith.mulf %353, %233 : vector<8x128xf32>
    %355 = arith.addf %352, %354 : vector<8x128xf32>
    %356 = vector.broadcast %13 : f32 to vector<8x128xf32>
    %357 = arith.mulf %356, %245 : vector<8x128xf32>
    %358 = arith.addf %348, %357 : vector<8x128xf32>
    %359 = vector.broadcast %85 : f32 to vector<8x128xf32>
    %360 = arith.mulf %359, %237 : vector<8x128xf32>
    %361 = arith.addf %358, %360 : vector<8x128xf32>
    %362 = vector.broadcast %22 : f32 to vector<8x128xf32>
    %363 = arith.mulf %362, %245 : vector<8x128xf32>
    %364 = arith.addf %355, %363 : vector<8x128xf32>
    %365 = vector.broadcast %94 : f32 to vector<8x128xf32>
    %366 = arith.mulf %365, %237 : vector<8x128xf32>
    %367 = arith.addf %364, %366 : vector<8x128xf32>
    %368 = vector.broadcast %14 : f32 to vector<8x128xf32>
    %369 = arith.mulf %368, %247 : vector<8x128xf32>
    %370 = arith.addf %361, %369 : vector<8x128xf32>
    %371 = vector.broadcast %86 : f32 to vector<8x128xf32>
    %372 = arith.mulf %371, %241 : vector<8x128xf32>
    %373 = arith.addf %370, %372 : vector<8x128xf32>
    %374 = vector.broadcast %23 : f32 to vector<8x128xf32>
    %375 = arith.mulf %374, %247 : vector<8x128xf32>
    %376 = arith.addf %367, %375 : vector<8x128xf32>
    %377 = vector.broadcast %95 : f32 to vector<8x128xf32>
    %378 = arith.mulf %377, %241 : vector<8x128xf32>
    %379 = arith.addf %376, %378 : vector<8x128xf32>
    %380 = math.tanh %373 : vector<8x128xf32>
    %cst_10 = arith.constant 5.000000e-01 : f32
    %381 = vector.broadcast %cst_10 : f32 to vector<8x128xf32>
    %382 = arith.mulf %381, %379 : vector<8x128xf32>
    %383 = math.tanh %382 : vector<8x128xf32>
    %cst_11 = arith.constant 5.000000e-01 : f32
    %384 = vector.broadcast %cst_11 : f32 to vector<8x128xf32>
    %385 = arith.mulf %384, %383 : vector<8x128xf32>
    %cst_12 = arith.constant 5.000000e-01 : f32
    %386 = vector.broadcast %cst_12 : f32 to vector<8x128xf32>
    %387 = arith.addf %385, %386 : vector<8x128xf32>
    %388 = arith.mulf %380, %387 : vector<8x128xf32>
    %389 = vector.broadcast %174 : f32 to vector<8x128xf32>
    %390 = arith.mulf %389, %294 : vector<8x128xf32>
    %391 = vector.broadcast %201 : f32 to vector<8x128xf32>
    %392 = arith.addf %391, %390 : vector<8x128xf32>
    %393 = vector.broadcast %175 : f32 to vector<8x128xf32>
    %394 = arith.mulf %393, %341 : vector<8x128xf32>
    %395 = arith.addf %392, %394 : vector<8x128xf32>
    %396 = vector.broadcast %176 : f32 to vector<8x128xf32>
    %397 = arith.mulf %396, %388 : vector<8x128xf32>
    %398 = arith.addf %395, %397 : vector<8x128xf32>
    %399 = arith.addf %398, %233 : vector<8x128xf32>
    %400 = vector.broadcast %177 : f32 to vector<8x128xf32>
    %401 = arith.mulf %400, %294 : vector<8x128xf32>
    %402 = vector.broadcast %202 : f32 to vector<8x128xf32>
    %403 = arith.addf %402, %401 : vector<8x128xf32>
    %404 = vector.broadcast %178 : f32 to vector<8x128xf32>
    %405 = arith.mulf %404, %341 : vector<8x128xf32>
    %406 = arith.addf %403, %405 : vector<8x128xf32>
    %407 = vector.broadcast %179 : f32 to vector<8x128xf32>
    %408 = arith.mulf %407, %388 : vector<8x128xf32>
    %409 = arith.addf %406, %408 : vector<8x128xf32>
    %410 = arith.addf %409, %237 : vector<8x128xf32>
    %411 = vector.broadcast %180 : f32 to vector<8x128xf32>
    %412 = arith.mulf %411, %294 : vector<8x128xf32>
    %413 = vector.broadcast %203 : f32 to vector<8x128xf32>
    %414 = arith.addf %413, %412 : vector<8x128xf32>
    %415 = vector.broadcast %181 : f32 to vector<8x128xf32>
    %416 = arith.mulf %415, %341 : vector<8x128xf32>
    %417 = arith.addf %414, %416 : vector<8x128xf32>
    %418 = vector.broadcast %182 : f32 to vector<8x128xf32>
    %419 = arith.mulf %418, %388 : vector<8x128xf32>
    %420 = arith.addf %417, %419 : vector<8x128xf32>
    %421 = arith.addf %420, %241 : vector<8x128xf32>
    %422 = arith.select %227, %228, %399 : vector<8x128xi1>, vector<8x128xf32>
    %c2_i32 = arith.constant 2 : i32
    %423 = tpu.dynamic_rotate %422 by %c2_i32 dim 1 : vector<8x128xf32>, i32 -> vector<8x128xf32>
    %424 = arith.select %227, %228, %410 : vector<8x128xi1>, vector<8x128xf32>
    %c2_i32_13 = arith.constant 2 : i32
    %425 = tpu.dynamic_rotate %424 by %c2_i32_13 dim 1 : vector<8x128xf32>, i32 -> vector<8x128xf32>
    %426 = arith.select %227, %228, %421 : vector<8x128xi1>, vector<8x128xf32>
    %c2_i32_14 = arith.constant 2 : i32
    %427 = tpu.dynamic_rotate %426 by %c2_i32_14 dim 1 : vector<8x128xf32>, i32 -> vector<8x128xf32>
    %428 = vector.broadcast %24 : f32 to vector<8x128xf32>
    %429 = arith.mulf %428, %423 : vector<8x128xf32>
    %430 = vector.broadcast %156 : f32 to vector<8x128xf32>
    %431 = arith.addf %430, %429 : vector<8x128xf32>
    %432 = vector.broadcast %96 : f32 to vector<8x128xf32>
    %433 = arith.mulf %432, %399 : vector<8x128xf32>
    %434 = arith.addf %431, %433 : vector<8x128xf32>
    %435 = vector.broadcast %33 : f32 to vector<8x128xf32>
    %436 = arith.mulf %435, %423 : vector<8x128xf32>
    %437 = vector.broadcast %159 : f32 to vector<8x128xf32>
    %438 = arith.addf %437, %436 : vector<8x128xf32>
    %439 = vector.broadcast %105 : f32 to vector<8x128xf32>
    %440 = arith.mulf %439, %399 : vector<8x128xf32>
    %441 = arith.addf %438, %440 : vector<8x128xf32>
    %442 = vector.broadcast %25 : f32 to vector<8x128xf32>
    %443 = arith.mulf %442, %425 : vector<8x128xf32>
    %444 = arith.addf %434, %443 : vector<8x128xf32>
    %445 = vector.broadcast %97 : f32 to vector<8x128xf32>
    %446 = arith.mulf %445, %410 : vector<8x128xf32>
    %447 = arith.addf %444, %446 : vector<8x128xf32>
    %448 = vector.broadcast %34 : f32 to vector<8x128xf32>
    %449 = arith.mulf %448, %425 : vector<8x128xf32>
    %450 = arith.addf %441, %449 : vector<8x128xf32>
    %451 = vector.broadcast %106 : f32 to vector<8x128xf32>
    %452 = arith.mulf %451, %410 : vector<8x128xf32>
    %453 = arith.addf %450, %452 : vector<8x128xf32>
    %454 = vector.broadcast %26 : f32 to vector<8x128xf32>
    %455 = arith.mulf %454, %427 : vector<8x128xf32>
    %456 = arith.addf %447, %455 : vector<8x128xf32>
    %457 = vector.broadcast %98 : f32 to vector<8x128xf32>
    %458 = arith.mulf %457, %421 : vector<8x128xf32>
    %459 = arith.addf %456, %458 : vector<8x128xf32>
    %460 = vector.broadcast %35 : f32 to vector<8x128xf32>
    %461 = arith.mulf %460, %427 : vector<8x128xf32>
    %462 = arith.addf %453, %461 : vector<8x128xf32>
    %463 = vector.broadcast %107 : f32 to vector<8x128xf32>
    %464 = arith.mulf %463, %421 : vector<8x128xf32>
    %465 = arith.addf %462, %464 : vector<8x128xf32>
    %466 = math.tanh %459 : vector<8x128xf32>
    %cst_15 = arith.constant 5.000000e-01 : f32
    %467 = vector.broadcast %cst_15 : f32 to vector<8x128xf32>
    %468 = arith.mulf %467, %465 : vector<8x128xf32>
    %469 = math.tanh %468 : vector<8x128xf32>
    %cst_16 = arith.constant 5.000000e-01 : f32
    %470 = vector.broadcast %cst_16 : f32 to vector<8x128xf32>
    %471 = arith.mulf %470, %469 : vector<8x128xf32>
    %cst_17 = arith.constant 5.000000e-01 : f32
    %472 = vector.broadcast %cst_17 : f32 to vector<8x128xf32>
    %473 = arith.addf %471, %472 : vector<8x128xf32>
    %474 = arith.mulf %466, %473 : vector<8x128xf32>
    %475 = vector.broadcast %27 : f32 to vector<8x128xf32>
    %476 = arith.mulf %475, %423 : vector<8x128xf32>
    %477 = vector.broadcast %157 : f32 to vector<8x128xf32>
    %478 = arith.addf %477, %476 : vector<8x128xf32>
    %479 = vector.broadcast %99 : f32 to vector<8x128xf32>
    %480 = arith.mulf %479, %399 : vector<8x128xf32>
    %481 = arith.addf %478, %480 : vector<8x128xf32>
    %482 = vector.broadcast %36 : f32 to vector<8x128xf32>
    %483 = arith.mulf %482, %423 : vector<8x128xf32>
    %484 = vector.broadcast %160 : f32 to vector<8x128xf32>
    %485 = arith.addf %484, %483 : vector<8x128xf32>
    %486 = vector.broadcast %108 : f32 to vector<8x128xf32>
    %487 = arith.mulf %486, %399 : vector<8x128xf32>
    %488 = arith.addf %485, %487 : vector<8x128xf32>
    %489 = vector.broadcast %28 : f32 to vector<8x128xf32>
    %490 = arith.mulf %489, %425 : vector<8x128xf32>
    %491 = arith.addf %481, %490 : vector<8x128xf32>
    %492 = vector.broadcast %100 : f32 to vector<8x128xf32>
    %493 = arith.mulf %492, %410 : vector<8x128xf32>
    %494 = arith.addf %491, %493 : vector<8x128xf32>
    %495 = vector.broadcast %37 : f32 to vector<8x128xf32>
    %496 = arith.mulf %495, %425 : vector<8x128xf32>
    %497 = arith.addf %488, %496 : vector<8x128xf32>
    %498 = vector.broadcast %109 : f32 to vector<8x128xf32>
    %499 = arith.mulf %498, %410 : vector<8x128xf32>
    %500 = arith.addf %497, %499 : vector<8x128xf32>
    %501 = vector.broadcast %29 : f32 to vector<8x128xf32>
    %502 = arith.mulf %501, %427 : vector<8x128xf32>
    %503 = arith.addf %494, %502 : vector<8x128xf32>
    %504 = vector.broadcast %101 : f32 to vector<8x128xf32>
    %505 = arith.mulf %504, %421 : vector<8x128xf32>
    %506 = arith.addf %503, %505 : vector<8x128xf32>
    %507 = vector.broadcast %38 : f32 to vector<8x128xf32>
    %508 = arith.mulf %507, %427 : vector<8x128xf32>
    %509 = arith.addf %500, %508 : vector<8x128xf32>
    %510 = vector.broadcast %110 : f32 to vector<8x128xf32>
    %511 = arith.mulf %510, %421 : vector<8x128xf32>
    %512 = arith.addf %509, %511 : vector<8x128xf32>
    %513 = math.tanh %506 : vector<8x128xf32>
    %cst_18 = arith.constant 5.000000e-01 : f32
    %514 = vector.broadcast %cst_18 : f32 to vector<8x128xf32>
    %515 = arith.mulf %514, %512 : vector<8x128xf32>
    %516 = math.tanh %515 : vector<8x128xf32>
    %cst_19 = arith.constant 5.000000e-01 : f32
    %517 = vector.broadcast %cst_19 : f32 to vector<8x128xf32>
    %518 = arith.mulf %517, %516 : vector<8x128xf32>
    %cst_20 = arith.constant 5.000000e-01 : f32
    %519 = vector.broadcast %cst_20 : f32 to vector<8x128xf32>
    %520 = arith.addf %518, %519 : vector<8x128xf32>
    %521 = arith.mulf %513, %520 : vector<8x128xf32>
    %522 = vector.broadcast %30 : f32 to vector<8x128xf32>
    %523 = arith.mulf %522, %423 : vector<8x128xf32>
    %524 = vector.broadcast %158 : f32 to vector<8x128xf32>
    %525 = arith.addf %524, %523 : vector<8x128xf32>
    %526 = vector.broadcast %102 : f32 to vector<8x128xf32>
    %527 = arith.mulf %526, %399 : vector<8x128xf32>
    %528 = arith.addf %525, %527 : vector<8x128xf32>
    %529 = vector.broadcast %39 : f32 to vector<8x128xf32>
    %530 = arith.mulf %529, %423 : vector<8x128xf32>
    %531 = vector.broadcast %161 : f32 to vector<8x128xf32>
    %532 = arith.addf %531, %530 : vector<8x128xf32>
    %533 = vector.broadcast %111 : f32 to vector<8x128xf32>
    %534 = arith.mulf %533, %399 : vector<8x128xf32>
    %535 = arith.addf %532, %534 : vector<8x128xf32>
    %536 = vector.broadcast %31 : f32 to vector<8x128xf32>
    %537 = arith.mulf %536, %425 : vector<8x128xf32>
    %538 = arith.addf %528, %537 : vector<8x128xf32>
    %539 = vector.broadcast %103 : f32 to vector<8x128xf32>
    %540 = arith.mulf %539, %410 : vector<8x128xf32>
    %541 = arith.addf %538, %540 : vector<8x128xf32>
    %542 = vector.broadcast %40 : f32 to vector<8x128xf32>
    %543 = arith.mulf %542, %425 : vector<8x128xf32>
    %544 = arith.addf %535, %543 : vector<8x128xf32>
    %545 = vector.broadcast %112 : f32 to vector<8x128xf32>
    %546 = arith.mulf %545, %410 : vector<8x128xf32>
    %547 = arith.addf %544, %546 : vector<8x128xf32>
    %548 = vector.broadcast %32 : f32 to vector<8x128xf32>
    %549 = arith.mulf %548, %427 : vector<8x128xf32>
    %550 = arith.addf %541, %549 : vector<8x128xf32>
    %551 = vector.broadcast %104 : f32 to vector<8x128xf32>
    %552 = arith.mulf %551, %421 : vector<8x128xf32>
    %553 = arith.addf %550, %552 : vector<8x128xf32>
    %554 = vector.broadcast %41 : f32 to vector<8x128xf32>
    %555 = arith.mulf %554, %427 : vector<8x128xf32>
    %556 = arith.addf %547, %555 : vector<8x128xf32>
    %557 = vector.broadcast %113 : f32 to vector<8x128xf32>
    %558 = arith.mulf %557, %421 : vector<8x128xf32>
    %559 = arith.addf %556, %558 : vector<8x128xf32>
    %560 = math.tanh %553 : vector<8x128xf32>
    %cst_21 = arith.constant 5.000000e-01 : f32
    %561 = vector.broadcast %cst_21 : f32 to vector<8x128xf32>
    %562 = arith.mulf %561, %559 : vector<8x128xf32>
    %563 = math.tanh %562 : vector<8x128xf32>
    %cst_22 = arith.constant 5.000000e-01 : f32
    %564 = vector.broadcast %cst_22 : f32 to vector<8x128xf32>
    %565 = arith.mulf %564, %563 : vector<8x128xf32>
    %cst_23 = arith.constant 5.000000e-01 : f32
    %566 = vector.broadcast %cst_23 : f32 to vector<8x128xf32>
    %567 = arith.addf %565, %566 : vector<8x128xf32>
    %568 = arith.mulf %560, %567 : vector<8x128xf32>
    %569 = vector.broadcast %183 : f32 to vector<8x128xf32>
    %570 = arith.mulf %569, %474 : vector<8x128xf32>
    %571 = vector.broadcast %204 : f32 to vector<8x128xf32>
    %572 = arith.addf %571, %570 : vector<8x128xf32>
    %573 = vector.broadcast %184 : f32 to vector<8x128xf32>
    %574 = arith.mulf %573, %521 : vector<8x128xf32>
    %575 = arith.addf %572, %574 : vector<8x128xf32>
    %576 = vector.broadcast %185 : f32 to vector<8x128xf32>
    %577 = arith.mulf %576, %568 : vector<8x128xf32>
    %578 = arith.addf %575, %577 : vector<8x128xf32>
    %579 = arith.addf %578, %399 : vector<8x128xf32>
    %580 = vector.broadcast %186 : f32 to vector<8x128xf32>
    %581 = arith.mulf %580, %474 : vector<8x128xf32>
    %582 = vector.broadcast %205 : f32 to vector<8x128xf32>
    %583 = arith.addf %582, %581 : vector<8x128xf32>
    %584 = vector.broadcast %187 : f32 to vector<8x128xf32>
    %585 = arith.mulf %584, %521 : vector<8x128xf32>
    %586 = arith.addf %583, %585 : vector<8x128xf32>
    %587 = vector.broadcast %188 : f32 to vector<8x128xf32>
    %588 = arith.mulf %587, %568 : vector<8x128xf32>
    %589 = arith.addf %586, %588 : vector<8x128xf32>
    %590 = arith.addf %589, %410 : vector<8x128xf32>
    %591 = vector.broadcast %189 : f32 to vector<8x128xf32>
    %592 = arith.mulf %591, %474 : vector<8x128xf32>
    %593 = vector.broadcast %206 : f32 to vector<8x128xf32>
    %594 = arith.addf %593, %592 : vector<8x128xf32>
    %595 = vector.broadcast %190 : f32 to vector<8x128xf32>
    %596 = arith.mulf %595, %521 : vector<8x128xf32>
    %597 = arith.addf %594, %596 : vector<8x128xf32>
    %598 = vector.broadcast %191 : f32 to vector<8x128xf32>
    %599 = arith.mulf %598, %568 : vector<8x128xf32>
    %600 = arith.addf %597, %599 : vector<8x128xf32>
    %601 = arith.addf %600, %421 : vector<8x128xf32>
    %602 = arith.select %225, %228, %579 : vector<8x128xi1>, vector<8x128xf32>
    %c1_i32_24 = arith.constant 1 : i32
    %603 = tpu.dynamic_rotate %602 by %c1_i32_24 dim 1 : vector<8x128xf32>, i32 -> vector<8x128xf32>
    %604 = arith.select %225, %228, %590 : vector<8x128xi1>, vector<8x128xf32>
    %c1_i32_25 = arith.constant 1 : i32
    %605 = tpu.dynamic_rotate %604 by %c1_i32_25 dim 1 : vector<8x128xf32>, i32 -> vector<8x128xf32>
    %606 = arith.select %225, %228, %601 : vector<8x128xi1>, vector<8x128xf32>
    %c1_i32_26 = arith.constant 1 : i32
    %607 = tpu.dynamic_rotate %606 by %c1_i32_26 dim 1 : vector<8x128xf32>, i32 -> vector<8x128xf32>
    %608 = vector.broadcast %42 : f32 to vector<8x128xf32>
    %609 = arith.mulf %608, %603 : vector<8x128xf32>
    %610 = vector.broadcast %162 : f32 to vector<8x128xf32>
    %611 = arith.addf %610, %609 : vector<8x128xf32>
    %612 = vector.broadcast %114 : f32 to vector<8x128xf32>
    %613 = arith.mulf %612, %579 : vector<8x128xf32>
    %614 = arith.addf %611, %613 : vector<8x128xf32>
    %615 = vector.broadcast %51 : f32 to vector<8x128xf32>
    %616 = arith.mulf %615, %603 : vector<8x128xf32>
    %617 = vector.broadcast %165 : f32 to vector<8x128xf32>
    %618 = arith.addf %617, %616 : vector<8x128xf32>
    %619 = vector.broadcast %123 : f32 to vector<8x128xf32>
    %620 = arith.mulf %619, %579 : vector<8x128xf32>
    %621 = arith.addf %618, %620 : vector<8x128xf32>
    %622 = vector.broadcast %43 : f32 to vector<8x128xf32>
    %623 = arith.mulf %622, %605 : vector<8x128xf32>
    %624 = arith.addf %614, %623 : vector<8x128xf32>
    %625 = vector.broadcast %115 : f32 to vector<8x128xf32>
    %626 = arith.mulf %625, %590 : vector<8x128xf32>
    %627 = arith.addf %624, %626 : vector<8x128xf32>
    %628 = vector.broadcast %52 : f32 to vector<8x128xf32>
    %629 = arith.mulf %628, %605 : vector<8x128xf32>
    %630 = arith.addf %621, %629 : vector<8x128xf32>
    %631 = vector.broadcast %124 : f32 to vector<8x128xf32>
    %632 = arith.mulf %631, %590 : vector<8x128xf32>
    %633 = arith.addf %630, %632 : vector<8x128xf32>
    %634 = vector.broadcast %44 : f32 to vector<8x128xf32>
    %635 = arith.mulf %634, %607 : vector<8x128xf32>
    %636 = arith.addf %627, %635 : vector<8x128xf32>
    %637 = vector.broadcast %116 : f32 to vector<8x128xf32>
    %638 = arith.mulf %637, %601 : vector<8x128xf32>
    %639 = arith.addf %636, %638 : vector<8x128xf32>
    %640 = vector.broadcast %53 : f32 to vector<8x128xf32>
    %641 = arith.mulf %640, %607 : vector<8x128xf32>
    %642 = arith.addf %633, %641 : vector<8x128xf32>
    %643 = vector.broadcast %125 : f32 to vector<8x128xf32>
    %644 = arith.mulf %643, %601 : vector<8x128xf32>
    %645 = arith.addf %642, %644 : vector<8x128xf32>
    %646 = math.tanh %639 : vector<8x128xf32>
    %cst_27 = arith.constant 5.000000e-01 : f32
    %647 = vector.broadcast %cst_27 : f32 to vector<8x128xf32>
    %648 = arith.mulf %647, %645 : vector<8x128xf32>
    %649 = math.tanh %648 : vector<8x128xf32>
    %cst_28 = arith.constant 5.000000e-01 : f32
    %650 = vector.broadcast %cst_28 : f32 to vector<8x128xf32>
    %651 = arith.mulf %650, %649 : vector<8x128xf32>
    %cst_29 = arith.constant 5.000000e-01 : f32
    %652 = vector.broadcast %cst_29 : f32 to vector<8x128xf32>
    %653 = arith.addf %651, %652 : vector<8x128xf32>
    %654 = arith.mulf %646, %653 : vector<8x128xf32>
    %655 = vector.broadcast %45 : f32 to vector<8x128xf32>
    %656 = arith.mulf %655, %603 : vector<8x128xf32>
    %657 = vector.broadcast %163 : f32 to vector<8x128xf32>
    %658 = arith.addf %657, %656 : vector<8x128xf32>
    %659 = vector.broadcast %117 : f32 to vector<8x128xf32>
    %660 = arith.mulf %659, %579 : vector<8x128xf32>
    %661 = arith.addf %658, %660 : vector<8x128xf32>
    %662 = vector.broadcast %54 : f32 to vector<8x128xf32>
    %663 = arith.mulf %662, %603 : vector<8x128xf32>
    %664 = vector.broadcast %166 : f32 to vector<8x128xf32>
    %665 = arith.addf %664, %663 : vector<8x128xf32>
    %666 = vector.broadcast %126 : f32 to vector<8x128xf32>
    %667 = arith.mulf %666, %579 : vector<8x128xf32>
    %668 = arith.addf %665, %667 : vector<8x128xf32>
    %669 = vector.broadcast %46 : f32 to vector<8x128xf32>
    %670 = arith.mulf %669, %605 : vector<8x128xf32>
    %671 = arith.addf %661, %670 : vector<8x128xf32>
    %672 = vector.broadcast %118 : f32 to vector<8x128xf32>
    %673 = arith.mulf %672, %590 : vector<8x128xf32>
    %674 = arith.addf %671, %673 : vector<8x128xf32>
    %675 = vector.broadcast %55 : f32 to vector<8x128xf32>
    %676 = arith.mulf %675, %605 : vector<8x128xf32>
    %677 = arith.addf %668, %676 : vector<8x128xf32>
    %678 = vector.broadcast %127 : f32 to vector<8x128xf32>
    %679 = arith.mulf %678, %590 : vector<8x128xf32>
    %680 = arith.addf %677, %679 : vector<8x128xf32>
    %681 = vector.broadcast %47 : f32 to vector<8x128xf32>
    %682 = arith.mulf %681, %607 : vector<8x128xf32>
    %683 = arith.addf %674, %682 : vector<8x128xf32>
    %684 = vector.broadcast %119 : f32 to vector<8x128xf32>
    %685 = arith.mulf %684, %601 : vector<8x128xf32>
    %686 = arith.addf %683, %685 : vector<8x128xf32>
    %687 = vector.broadcast %56 : f32 to vector<8x128xf32>
    %688 = arith.mulf %687, %607 : vector<8x128xf32>
    %689 = arith.addf %680, %688 : vector<8x128xf32>
    %690 = vector.broadcast %128 : f32 to vector<8x128xf32>
    %691 = arith.mulf %690, %601 : vector<8x128xf32>
    %692 = arith.addf %689, %691 : vector<8x128xf32>
    %693 = math.tanh %686 : vector<8x128xf32>
    %cst_30 = arith.constant 5.000000e-01 : f32
    %694 = vector.broadcast %cst_30 : f32 to vector<8x128xf32>
    %695 = arith.mulf %694, %692 : vector<8x128xf32>
    %696 = math.tanh %695 : vector<8x128xf32>
    %cst_31 = arith.constant 5.000000e-01 : f32
    %697 = vector.broadcast %cst_31 : f32 to vector<8x128xf32>
    %698 = arith.mulf %697, %696 : vector<8x128xf32>
    %cst_32 = arith.constant 5.000000e-01 : f32
    %699 = vector.broadcast %cst_32 : f32 to vector<8x128xf32>
    %700 = arith.addf %698, %699 : vector<8x128xf32>
    %701 = arith.mulf %693, %700 : vector<8x128xf32>
    %702 = vector.broadcast %48 : f32 to vector<8x128xf32>
    %703 = arith.mulf %702, %603 : vector<8x128xf32>
    %704 = vector.broadcast %164 : f32 to vector<8x128xf32>
    %705 = arith.addf %704, %703 : vector<8x128xf32>
    %706 = vector.broadcast %120 : f32 to vector<8x128xf32>
    %707 = arith.mulf %706, %579 : vector<8x128xf32>
    %708 = arith.addf %705, %707 : vector<8x128xf32>
    %709 = vector.broadcast %57 : f32 to vector<8x128xf32>
    %710 = arith.mulf %709, %603 : vector<8x128xf32>
    %711 = vector.broadcast %167 : f32 to vector<8x128xf32>
    %712 = arith.addf %711, %710 : vector<8x128xf32>
    %713 = vector.broadcast %129 : f32 to vector<8x128xf32>
    %714 = arith.mulf %713, %579 : vector<8x128xf32>
    %715 = arith.addf %712, %714 : vector<8x128xf32>
    %716 = vector.broadcast %49 : f32 to vector<8x128xf32>
    %717 = arith.mulf %716, %605 : vector<8x128xf32>
    %718 = arith.addf %708, %717 : vector<8x128xf32>
    %719 = vector.broadcast %121 : f32 to vector<8x128xf32>
    %720 = arith.mulf %719, %590 : vector<8x128xf32>
    %721 = arith.addf %718, %720 : vector<8x128xf32>
    %722 = vector.broadcast %58 : f32 to vector<8x128xf32>
    %723 = arith.mulf %722, %605 : vector<8x128xf32>
    %724 = arith.addf %715, %723 : vector<8x128xf32>
    %725 = vector.broadcast %130 : f32 to vector<8x128xf32>
    %726 = arith.mulf %725, %590 : vector<8x128xf32>
    %727 = arith.addf %724, %726 : vector<8x128xf32>
    %728 = vector.broadcast %50 : f32 to vector<8x128xf32>
    %729 = arith.mulf %728, %607 : vector<8x128xf32>
    %730 = arith.addf %721, %729 : vector<8x128xf32>
    %731 = vector.broadcast %122 : f32 to vector<8x128xf32>
    %732 = arith.mulf %731, %601 : vector<8x128xf32>
    %733 = arith.addf %730, %732 : vector<8x128xf32>
    %734 = vector.broadcast %59 : f32 to vector<8x128xf32>
    %735 = arith.mulf %734, %607 : vector<8x128xf32>
    %736 = arith.addf %727, %735 : vector<8x128xf32>
    %737 = vector.broadcast %131 : f32 to vector<8x128xf32>
    %738 = arith.mulf %737, %601 : vector<8x128xf32>
    %739 = arith.addf %736, %738 : vector<8x128xf32>
    %740 = math.tanh %733 : vector<8x128xf32>
    %cst_33 = arith.constant 5.000000e-01 : f32
    %741 = vector.broadcast %cst_33 : f32 to vector<8x128xf32>
    %742 = arith.mulf %741, %739 : vector<8x128xf32>
    %743 = math.tanh %742 : vector<8x128xf32>
    %cst_34 = arith.constant 5.000000e-01 : f32
    %744 = vector.broadcast %cst_34 : f32 to vector<8x128xf32>
    %745 = arith.mulf %744, %743 : vector<8x128xf32>
    %cst_35 = arith.constant 5.000000e-01 : f32
    %746 = vector.broadcast %cst_35 : f32 to vector<8x128xf32>
    %747 = arith.addf %745, %746 : vector<8x128xf32>
    %748 = arith.mulf %740, %747 : vector<8x128xf32>
    %749 = vector.broadcast %192 : f32 to vector<8x128xf32>
    %750 = arith.mulf %749, %654 : vector<8x128xf32>
    %751 = vector.broadcast %207 : f32 to vector<8x128xf32>
    %752 = arith.addf %751, %750 : vector<8x128xf32>
    %753 = vector.broadcast %193 : f32 to vector<8x128xf32>
    %754 = arith.mulf %753, %701 : vector<8x128xf32>
    %755 = arith.addf %752, %754 : vector<8x128xf32>
    %756 = vector.broadcast %194 : f32 to vector<8x128xf32>
    %757 = arith.mulf %756, %748 : vector<8x128xf32>
    %758 = arith.addf %755, %757 : vector<8x128xf32>
    %759 = arith.addf %758, %579 : vector<8x128xf32>
    %760 = vector.broadcast %195 : f32 to vector<8x128xf32>
    %761 = arith.mulf %760, %654 : vector<8x128xf32>
    %762 = vector.broadcast %208 : f32 to vector<8x128xf32>
    %763 = arith.addf %762, %761 : vector<8x128xf32>
    %764 = vector.broadcast %196 : f32 to vector<8x128xf32>
    %765 = arith.mulf %764, %701 : vector<8x128xf32>
    %766 = arith.addf %763, %765 : vector<8x128xf32>
    %767 = vector.broadcast %197 : f32 to vector<8x128xf32>
    %768 = arith.mulf %767, %748 : vector<8x128xf32>
    %769 = arith.addf %766, %768 : vector<8x128xf32>
    %770 = arith.addf %769, %590 : vector<8x128xf32>
    %771 = vector.broadcast %198 : f32 to vector<8x128xf32>
    %772 = arith.mulf %771, %654 : vector<8x128xf32>
    %773 = vector.broadcast %209 : f32 to vector<8x128xf32>
    %774 = arith.addf %773, %772 : vector<8x128xf32>
    %775 = vector.broadcast %199 : f32 to vector<8x128xf32>
    %776 = arith.mulf %775, %701 : vector<8x128xf32>
    %777 = arith.addf %774, %776 : vector<8x128xf32>
    %778 = vector.broadcast %200 : f32 to vector<8x128xf32>
    %779 = arith.mulf %778, %748 : vector<8x128xf32>
    %780 = arith.addf %777, %779 : vector<8x128xf32>
    %781 = arith.addf %780, %601 : vector<8x128xf32>
    %c0_i32 = arith.constant 0 : i32
    %782 = arith.cmpi sgt, %arg1, %c0_i32 : i32
    %783 = arith.extui %782 : i1 to i32
    %784 = arith.sitofp %783 : i32 to f32
    %785 = vector.broadcast %784 : f32 to vector<8x128xf32>
    %786 = arith.mulf %233, %785 : vector<8x128xf32>
    %787 = vector.broadcast %784 : f32 to vector<8x128xf32>
    %788 = arith.mulf %237, %787 : vector<8x128xf32>
    %789 = vector.broadcast %784 : f32 to vector<8x128xf32>
    %790 = arith.mulf %241, %789 : vector<8x128xf32>
    %791 = vector.broadcast %784 : f32 to vector<8x128xf32>
    %792 = arith.mulf %399, %791 : vector<8x128xf32>
    %793 = vector.broadcast %784 : f32 to vector<8x128xf32>
    %794 = arith.mulf %410, %793 : vector<8x128xf32>
    %795 = vector.broadcast %784 : f32 to vector<8x128xf32>
    %796 = arith.mulf %421, %795 : vector<8x128xf32>
    %797 = vector.broadcast %784 : f32 to vector<8x128xf32>
    %798 = arith.mulf %579, %797 : vector<8x128xf32>
    %799 = vector.broadcast %784 : f32 to vector<8x128xf32>
    %800 = arith.mulf %590, %799 : vector<8x128xf32>
    %801 = vector.broadcast %784 : f32 to vector<8x128xf32>
    %802 = arith.mulf %601, %801 : vector<8x128xf32>
    %803 = vector.broadcast %784 : f32 to vector<8x128xf32>
    %804 = arith.mulf %759, %803 : vector<8x128xf32>
    %805 = vector.broadcast %784 : f32 to vector<8x128xf32>
    %806 = arith.mulf %770, %805 : vector<8x128xf32>
    %807 = vector.broadcast %784 : f32 to vector<8x128xf32>
    %808 = arith.mulf %781, %807 : vector<8x128xf32>
    %c0_i32_36 = arith.constant 0 : i32
    %c128_i32 = arith.constant 128 : i32
    %809 = arith.muli %c0_i32_36, %c128_i32 : i32
    %810 = tpu.assume_multiple %809, 128 : i32
    %c0_37 = arith.constant 0 : index
    %811 = arith.index_cast %810 : i32 to index
    %812 = vector.load %arg3[%c0_37, %811] : memref<8x256xf32, #tpu.memory_space<vmem>>, vector<8x128xf32>
    %813 = vector.broadcast %0 : f32 to vector<8x128xf32>
    %814 = arith.mulf %813, %812 : vector<8x128xf32>
    %815 = vector.broadcast %3 : f32 to vector<8x128xf32>
    %816 = arith.addf %814, %815 : vector<8x128xf32>
    %817 = vector.broadcast %1 : f32 to vector<8x128xf32>
    %818 = arith.mulf %817, %812 : vector<8x128xf32>
    %819 = vector.broadcast %4 : f32 to vector<8x128xf32>
    %820 = arith.addf %818, %819 : vector<8x128xf32>
    %821 = vector.broadcast %2 : f32 to vector<8x128xf32>
    %822 = arith.mulf %821, %812 : vector<8x128xf32>
    %823 = vector.broadcast %5 : f32 to vector<8x128xf32>
    %824 = arith.addf %822, %823 : vector<8x128xf32>
    %825 = arith.select %225, %786, %816 : vector<8x128xi1>, vector<8x128xf32>
    %c1_i32_38 = arith.constant 1 : i32
    %826 = tpu.dynamic_rotate %825 by %c1_i32_38 dim 1 : vector<8x128xf32>, i32 -> vector<8x128xf32>
    %827 = arith.select %225, %788, %820 : vector<8x128xi1>, vector<8x128xf32>
    %c1_i32_39 = arith.constant 1 : i32
    %828 = tpu.dynamic_rotate %827 by %c1_i32_39 dim 1 : vector<8x128xf32>, i32 -> vector<8x128xf32>
    %829 = arith.select %225, %790, %824 : vector<8x128xi1>, vector<8x128xf32>
    %c1_i32_40 = arith.constant 1 : i32
    %830 = tpu.dynamic_rotate %829 by %c1_i32_40 dim 1 : vector<8x128xf32>, i32 -> vector<8x128xf32>
    %831 = vector.broadcast %6 : f32 to vector<8x128xf32>
    %832 = arith.mulf %831, %826 : vector<8x128xf32>
    %833 = vector.broadcast %150 : f32 to vector<8x128xf32>
    %834 = arith.addf %833, %832 : vector<8x128xf32>
    %835 = vector.broadcast %78 : f32 to vector<8x128xf32>
    %836 = arith.mulf %835, %816 : vector<8x128xf32>
    %837 = arith.addf %834, %836 : vector<8x128xf32>
    %838 = vector.broadcast %15 : f32 to vector<8x128xf32>
    %839 = arith.mulf %838, %826 : vector<8x128xf32>
    %840 = vector.broadcast %153 : f32 to vector<8x128xf32>
    %841 = arith.addf %840, %839 : vector<8x128xf32>
    %842 = vector.broadcast %87 : f32 to vector<8x128xf32>
    %843 = arith.mulf %842, %816 : vector<8x128xf32>
    %844 = arith.addf %841, %843 : vector<8x128xf32>
    %845 = vector.broadcast %7 : f32 to vector<8x128xf32>
    %846 = arith.mulf %845, %828 : vector<8x128xf32>
    %847 = arith.addf %837, %846 : vector<8x128xf32>
    %848 = vector.broadcast %79 : f32 to vector<8x128xf32>
    %849 = arith.mulf %848, %820 : vector<8x128xf32>
    %850 = arith.addf %847, %849 : vector<8x128xf32>
    %851 = vector.broadcast %16 : f32 to vector<8x128xf32>
    %852 = arith.mulf %851, %828 : vector<8x128xf32>
    %853 = arith.addf %844, %852 : vector<8x128xf32>
    %854 = vector.broadcast %88 : f32 to vector<8x128xf32>
    %855 = arith.mulf %854, %820 : vector<8x128xf32>
    %856 = arith.addf %853, %855 : vector<8x128xf32>
    %857 = vector.broadcast %8 : f32 to vector<8x128xf32>
    %858 = arith.mulf %857, %830 : vector<8x128xf32>
    %859 = arith.addf %850, %858 : vector<8x128xf32>
    %860 = vector.broadcast %80 : f32 to vector<8x128xf32>
    %861 = arith.mulf %860, %824 : vector<8x128xf32>
    %862 = arith.addf %859, %861 : vector<8x128xf32>
    %863 = vector.broadcast %17 : f32 to vector<8x128xf32>
    %864 = arith.mulf %863, %830 : vector<8x128xf32>
    %865 = arith.addf %856, %864 : vector<8x128xf32>
    %866 = vector.broadcast %89 : f32 to vector<8x128xf32>
    %867 = arith.mulf %866, %824 : vector<8x128xf32>
    %868 = arith.addf %865, %867 : vector<8x128xf32>
    %869 = math.tanh %862 : vector<8x128xf32>
    %cst_41 = arith.constant 5.000000e-01 : f32
    %870 = vector.broadcast %cst_41 : f32 to vector<8x128xf32>
    %871 = arith.mulf %870, %868 : vector<8x128xf32>
    %872 = math.tanh %871 : vector<8x128xf32>
    %cst_42 = arith.constant 5.000000e-01 : f32
    %873 = vector.broadcast %cst_42 : f32 to vector<8x128xf32>
    %874 = arith.mulf %873, %872 : vector<8x128xf32>
    %cst_43 = arith.constant 5.000000e-01 : f32
    %875 = vector.broadcast %cst_43 : f32 to vector<8x128xf32>
    %876 = arith.addf %874, %875 : vector<8x128xf32>
    %877 = arith.mulf %869, %876 : vector<8x128xf32>
    %878 = vector.broadcast %210 : f32 to vector<8x128xf32>
    %879 = arith.mulf %878, %877 : vector<8x128xf32>
    %880 = vector.broadcast %222 : f32 to vector<8x128xf32>
    %881 = arith.addf %880, %879 : vector<8x128xf32>
    %882 = vector.broadcast %9 : f32 to vector<8x128xf32>
    %883 = arith.mulf %882, %826 : vector<8x128xf32>
    %884 = vector.broadcast %151 : f32 to vector<8x128xf32>
    %885 = arith.addf %884, %883 : vector<8x128xf32>
    %886 = vector.broadcast %81 : f32 to vector<8x128xf32>
    %887 = arith.mulf %886, %816 : vector<8x128xf32>
    %888 = arith.addf %885, %887 : vector<8x128xf32>
    %889 = vector.broadcast %18 : f32 to vector<8x128xf32>
    %890 = arith.mulf %889, %826 : vector<8x128xf32>
    %891 = vector.broadcast %154 : f32 to vector<8x128xf32>
    %892 = arith.addf %891, %890 : vector<8x128xf32>
    %893 = vector.broadcast %90 : f32 to vector<8x128xf32>
    %894 = arith.mulf %893, %816 : vector<8x128xf32>
    %895 = arith.addf %892, %894 : vector<8x128xf32>
    %896 = vector.broadcast %10 : f32 to vector<8x128xf32>
    %897 = arith.mulf %896, %828 : vector<8x128xf32>
    %898 = arith.addf %888, %897 : vector<8x128xf32>
    %899 = vector.broadcast %82 : f32 to vector<8x128xf32>
    %900 = arith.mulf %899, %820 : vector<8x128xf32>
    %901 = arith.addf %898, %900 : vector<8x128xf32>
    %902 = vector.broadcast %19 : f32 to vector<8x128xf32>
    %903 = arith.mulf %902, %828 : vector<8x128xf32>
    %904 = arith.addf %895, %903 : vector<8x128xf32>
    %905 = vector.broadcast %91 : f32 to vector<8x128xf32>
    %906 = arith.mulf %905, %820 : vector<8x128xf32>
    %907 = arith.addf %904, %906 : vector<8x128xf32>
    %908 = vector.broadcast %11 : f32 to vector<8x128xf32>
    %909 = arith.mulf %908, %830 : vector<8x128xf32>
    %910 = arith.addf %901, %909 : vector<8x128xf32>
    %911 = vector.broadcast %83 : f32 to vector<8x128xf32>
    %912 = arith.mulf %911, %824 : vector<8x128xf32>
    %913 = arith.addf %910, %912 : vector<8x128xf32>
    %914 = vector.broadcast %20 : f32 to vector<8x128xf32>
    %915 = arith.mulf %914, %830 : vector<8x128xf32>
    %916 = arith.addf %907, %915 : vector<8x128xf32>
    %917 = vector.broadcast %92 : f32 to vector<8x128xf32>
    %918 = arith.mulf %917, %824 : vector<8x128xf32>
    %919 = arith.addf %916, %918 : vector<8x128xf32>
    %920 = math.tanh %913 : vector<8x128xf32>
    %cst_44 = arith.constant 5.000000e-01 : f32
    %921 = vector.broadcast %cst_44 : f32 to vector<8x128xf32>
    %922 = arith.mulf %921, %919 : vector<8x128xf32>
    %923 = math.tanh %922 : vector<8x128xf32>
    %cst_45 = arith.constant 5.000000e-01 : f32
    %924 = vector.broadcast %cst_45 : f32 to vector<8x128xf32>
    %925 = arith.mulf %924, %923 : vector<8x128xf32>
    %cst_46 = arith.constant 5.000000e-01 : f32
    %926 = vector.broadcast %cst_46 : f32 to vector<8x128xf32>
    %927 = arith.addf %925, %926 : vector<8x128xf32>
    %928 = arith.mulf %920, %927 : vector<8x128xf32>
    %929 = vector.broadcast %211 : f32 to vector<8x128xf32>
    %930 = arith.mulf %929, %928 : vector<8x128xf32>
    %931 = arith.addf %881, %930 : vector<8x128xf32>
    %932 = vector.broadcast %12 : f32 to vector<8x128xf32>
    %933 = arith.mulf %932, %826 : vector<8x128xf32>
    %934 = vector.broadcast %152 : f32 to vector<8x128xf32>
    %935 = arith.addf %934, %933 : vector<8x128xf32>
    %936 = vector.broadcast %84 : f32 to vector<8x128xf32>
    %937 = arith.mulf %936, %816 : vector<8x128xf32>
    %938 = arith.addf %935, %937 : vector<8x128xf32>
    %939 = vector.broadcast %21 : f32 to vector<8x128xf32>
    %940 = arith.mulf %939, %826 : vector<8x128xf32>
    %941 = vector.broadcast %155 : f32 to vector<8x128xf32>
    %942 = arith.addf %941, %940 : vector<8x128xf32>
    %943 = vector.broadcast %93 : f32 to vector<8x128xf32>
    %944 = arith.mulf %943, %816 : vector<8x128xf32>
    %945 = arith.addf %942, %944 : vector<8x128xf32>
    %946 = vector.broadcast %13 : f32 to vector<8x128xf32>
    %947 = arith.mulf %946, %828 : vector<8x128xf32>
    %948 = arith.addf %938, %947 : vector<8x128xf32>
    %949 = vector.broadcast %85 : f32 to vector<8x128xf32>
    %950 = arith.mulf %949, %820 : vector<8x128xf32>
    %951 = arith.addf %948, %950 : vector<8x128xf32>
    %952 = vector.broadcast %22 : f32 to vector<8x128xf32>
    %953 = arith.mulf %952, %828 : vector<8x128xf32>
    %954 = arith.addf %945, %953 : vector<8x128xf32>
    %955 = vector.broadcast %94 : f32 to vector<8x128xf32>
    %956 = arith.mulf %955, %820 : vector<8x128xf32>
    %957 = arith.addf %954, %956 : vector<8x128xf32>
    %958 = vector.broadcast %14 : f32 to vector<8x128xf32>
    %959 = arith.mulf %958, %830 : vector<8x128xf32>
    %960 = arith.addf %951, %959 : vector<8x128xf32>
    %961 = vector.broadcast %86 : f32 to vector<8x128xf32>
    %962 = arith.mulf %961, %824 : vector<8x128xf32>
    %963 = arith.addf %960, %962 : vector<8x128xf32>
    %964 = vector.broadcast %23 : f32 to vector<8x128xf32>
    %965 = arith.mulf %964, %830 : vector<8x128xf32>
    %966 = arith.addf %957, %965 : vector<8x128xf32>
    %967 = vector.broadcast %95 : f32 to vector<8x128xf32>
    %968 = arith.mulf %967, %824 : vector<8x128xf32>
    %969 = arith.addf %966, %968 : vector<8x128xf32>
    %970 = math.tanh %963 : vector<8x128xf32>
    %cst_47 = arith.constant 5.000000e-01 : f32
    %971 = vector.broadcast %cst_47 : f32 to vector<8x128xf32>
    %972 = arith.mulf %971, %969 : vector<8x128xf32>
    %973 = math.tanh %972 : vector<8x128xf32>
    %cst_48 = arith.constant 5.000000e-01 : f32
    %974 = vector.broadcast %cst_48 : f32 to vector<8x128xf32>
    %975 = arith.mulf %974, %973 : vector<8x128xf32>
    %cst_49 = arith.constant 5.000000e-01 : f32
    %976 = vector.broadcast %cst_49 : f32 to vector<8x128xf32>
    %977 = arith.addf %975, %976 : vector<8x128xf32>
    %978 = arith.mulf %970, %977 : vector<8x128xf32>
    %979 = vector.broadcast %212 : f32 to vector<8x128xf32>
    %980 = arith.mulf %979, %978 : vector<8x128xf32>
    %981 = arith.addf %931, %980 : vector<8x128xf32>
    %982 = vector.broadcast %174 : f32 to vector<8x128xf32>
    %983 = arith.mulf %982, %877 : vector<8x128xf32>
    %984 = vector.broadcast %201 : f32 to vector<8x128xf32>
    %985 = arith.addf %984, %983 : vector<8x128xf32>
    %986 = vector.broadcast %175 : f32 to vector<8x128xf32>
    %987 = arith.mulf %986, %928 : vector<8x128xf32>
    %988 = arith.addf %985, %987 : vector<8x128xf32>
    %989 = vector.broadcast %176 : f32 to vector<8x128xf32>
    %990 = arith.mulf %989, %978 : vector<8x128xf32>
    %991 = arith.addf %988, %990 : vector<8x128xf32>
    %992 = arith.addf %991, %816 : vector<8x128xf32>
    %993 = vector.broadcast %177 : f32 to vector<8x128xf32>
    %994 = arith.mulf %993, %877 : vector<8x128xf32>
    %995 = vector.broadcast %202 : f32 to vector<8x128xf32>
    %996 = arith.addf %995, %994 : vector<8x128xf32>
    %997 = vector.broadcast %178 : f32 to vector<8x128xf32>
    %998 = arith.mulf %997, %928 : vector<8x128xf32>
    %999 = arith.addf %996, %998 : vector<8x128xf32>
    %1000 = vector.broadcast %179 : f32 to vector<8x128xf32>
    %1001 = arith.mulf %1000, %978 : vector<8x128xf32>
    %1002 = arith.addf %999, %1001 : vector<8x128xf32>
    %1003 = arith.addf %1002, %820 : vector<8x128xf32>
    %1004 = vector.broadcast %180 : f32 to vector<8x128xf32>
    %1005 = arith.mulf %1004, %877 : vector<8x128xf32>
    %1006 = vector.broadcast %203 : f32 to vector<8x128xf32>
    %1007 = arith.addf %1006, %1005 : vector<8x128xf32>
    %1008 = vector.broadcast %181 : f32 to vector<8x128xf32>
    %1009 = arith.mulf %1008, %928 : vector<8x128xf32>
    %1010 = arith.addf %1007, %1009 : vector<8x128xf32>
    %1011 = vector.broadcast %182 : f32 to vector<8x128xf32>
    %1012 = arith.mulf %1011, %978 : vector<8x128xf32>
    %1013 = arith.addf %1010, %1012 : vector<8x128xf32>
    %1014 = arith.addf %1013, %824 : vector<8x128xf32>
    %1015 = arith.select %227, %792, %992 : vector<8x128xi1>, vector<8x128xf32>
    %c2_i32_50 = arith.constant 2 : i32
    %1016 = tpu.dynamic_rotate %1015 by %c2_i32_50 dim 1 : vector<8x128xf32>, i32 -> vector<8x128xf32>
    %1017 = arith.select %227, %794, %1003 : vector<8x128xi1>, vector<8x128xf32>
    %c2_i32_51 = arith.constant 2 : i32
    %1018 = tpu.dynamic_rotate %1017 by %c2_i32_51 dim 1 : vector<8x128xf32>, i32 -> vector<8x128xf32>
    %1019 = arith.select %227, %796, %1014 : vector<8x128xi1>, vector<8x128xf32>
    %c2_i32_52 = arith.constant 2 : i32
    %1020 = tpu.dynamic_rotate %1019 by %c2_i32_52 dim 1 : vector<8x128xf32>, i32 -> vector<8x128xf32>
    %1021 = vector.broadcast %24 : f32 to vector<8x128xf32>
    %1022 = arith.mulf %1021, %1016 : vector<8x128xf32>
    %1023 = vector.broadcast %156 : f32 to vector<8x128xf32>
    %1024 = arith.addf %1023, %1022 : vector<8x128xf32>
    %1025 = vector.broadcast %96 : f32 to vector<8x128xf32>
    %1026 = arith.mulf %1025, %992 : vector<8x128xf32>
    %1027 = arith.addf %1024, %1026 : vector<8x128xf32>
    %1028 = vector.broadcast %33 : f32 to vector<8x128xf32>
    %1029 = arith.mulf %1028, %1016 : vector<8x128xf32>
    %1030 = vector.broadcast %159 : f32 to vector<8x128xf32>
    %1031 = arith.addf %1030, %1029 : vector<8x128xf32>
    %1032 = vector.broadcast %105 : f32 to vector<8x128xf32>
    %1033 = arith.mulf %1032, %992 : vector<8x128xf32>
    %1034 = arith.addf %1031, %1033 : vector<8x128xf32>
    %1035 = vector.broadcast %25 : f32 to vector<8x128xf32>
    %1036 = arith.mulf %1035, %1018 : vector<8x128xf32>
    %1037 = arith.addf %1027, %1036 : vector<8x128xf32>
    %1038 = vector.broadcast %97 : f32 to vector<8x128xf32>
    %1039 = arith.mulf %1038, %1003 : vector<8x128xf32>
    %1040 = arith.addf %1037, %1039 : vector<8x128xf32>
    %1041 = vector.broadcast %34 : f32 to vector<8x128xf32>
    %1042 = arith.mulf %1041, %1018 : vector<8x128xf32>
    %1043 = arith.addf %1034, %1042 : vector<8x128xf32>
    %1044 = vector.broadcast %106 : f32 to vector<8x128xf32>
    %1045 = arith.mulf %1044, %1003 : vector<8x128xf32>
    %1046 = arith.addf %1043, %1045 : vector<8x128xf32>
    %1047 = vector.broadcast %26 : f32 to vector<8x128xf32>
    %1048 = arith.mulf %1047, %1020 : vector<8x128xf32>
    %1049 = arith.addf %1040, %1048 : vector<8x128xf32>
    %1050 = vector.broadcast %98 : f32 to vector<8x128xf32>
    %1051 = arith.mulf %1050, %1014 : vector<8x128xf32>
    %1052 = arith.addf %1049, %1051 : vector<8x128xf32>
    %1053 = vector.broadcast %35 : f32 to vector<8x128xf32>
    %1054 = arith.mulf %1053, %1020 : vector<8x128xf32>
    %1055 = arith.addf %1046, %1054 : vector<8x128xf32>
    %1056 = vector.broadcast %107 : f32 to vector<8x128xf32>
    %1057 = arith.mulf %1056, %1014 : vector<8x128xf32>
    %1058 = arith.addf %1055, %1057 : vector<8x128xf32>
    %1059 = math.tanh %1052 : vector<8x128xf32>
    %cst_53 = arith.constant 5.000000e-01 : f32
    %1060 = vector.broadcast %cst_53 : f32 to vector<8x128xf32>
    %1061 = arith.mulf %1060, %1058 : vector<8x128xf32>
    %1062 = math.tanh %1061 : vector<8x128xf32>
    %cst_54 = arith.constant 5.000000e-01 : f32
    %1063 = vector.broadcast %cst_54 : f32 to vector<8x128xf32>
    %1064 = arith.mulf %1063, %1062 : vector<8x128xf32>
    %cst_55 = arith.constant 5.000000e-01 : f32
    %1065 = vector.broadcast %cst_55 : f32 to vector<8x128xf32>
    %1066 = arith.addf %1064, %1065 : vector<8x128xf32>
    %1067 = arith.mulf %1059, %1066 : vector<8x128xf32>
    %1068 = vector.broadcast %213 : f32 to vector<8x128xf32>
    %1069 = arith.mulf %1068, %1067 : vector<8x128xf32>
    %1070 = arith.addf %981, %1069 : vector<8x128xf32>
    %1071 = vector.broadcast %27 : f32 to vector<8x128xf32>
    %1072 = arith.mulf %1071, %1016 : vector<8x128xf32>
    %1073 = vector.broadcast %157 : f32 to vector<8x128xf32>
    %1074 = arith.addf %1073, %1072 : vector<8x128xf32>
    %1075 = vector.broadcast %99 : f32 to vector<8x128xf32>
    %1076 = arith.mulf %1075, %992 : vector<8x128xf32>
    %1077 = arith.addf %1074, %1076 : vector<8x128xf32>
    %1078 = vector.broadcast %36 : f32 to vector<8x128xf32>
    %1079 = arith.mulf %1078, %1016 : vector<8x128xf32>
    %1080 = vector.broadcast %160 : f32 to vector<8x128xf32>
    %1081 = arith.addf %1080, %1079 : vector<8x128xf32>
    %1082 = vector.broadcast %108 : f32 to vector<8x128xf32>
    %1083 = arith.mulf %1082, %992 : vector<8x128xf32>
    %1084 = arith.addf %1081, %1083 : vector<8x128xf32>
    %1085 = vector.broadcast %28 : f32 to vector<8x128xf32>
    %1086 = arith.mulf %1085, %1018 : vector<8x128xf32>
    %1087 = arith.addf %1077, %1086 : vector<8x128xf32>
    %1088 = vector.broadcast %100 : f32 to vector<8x128xf32>
    %1089 = arith.mulf %1088, %1003 : vector<8x128xf32>
    %1090 = arith.addf %1087, %1089 : vector<8x128xf32>
    %1091 = vector.broadcast %37 : f32 to vector<8x128xf32>
    %1092 = arith.mulf %1091, %1018 : vector<8x128xf32>
    %1093 = arith.addf %1084, %1092 : vector<8x128xf32>
    %1094 = vector.broadcast %109 : f32 to vector<8x128xf32>
    %1095 = arith.mulf %1094, %1003 : vector<8x128xf32>
    %1096 = arith.addf %1093, %1095 : vector<8x128xf32>
    %1097 = vector.broadcast %29 : f32 to vector<8x128xf32>
    %1098 = arith.mulf %1097, %1020 : vector<8x128xf32>
    %1099 = arith.addf %1090, %1098 : vector<8x128xf32>
    %1100 = vector.broadcast %101 : f32 to vector<8x128xf32>
    %1101 = arith.mulf %1100, %1014 : vector<8x128xf32>
    %1102 = arith.addf %1099, %1101 : vector<8x128xf32>
    %1103 = vector.broadcast %38 : f32 to vector<8x128xf32>
    %1104 = arith.mulf %1103, %1020 : vector<8x128xf32>
    %1105 = arith.addf %1096, %1104 : vector<8x128xf32>
    %1106 = vector.broadcast %110 : f32 to vector<8x128xf32>
    %1107 = arith.mulf %1106, %1014 : vector<8x128xf32>
    %1108 = arith.addf %1105, %1107 : vector<8x128xf32>
    %1109 = math.tanh %1102 : vector<8x128xf32>
    %cst_56 = arith.constant 5.000000e-01 : f32
    %1110 = vector.broadcast %cst_56 : f32 to vector<8x128xf32>
    %1111 = arith.mulf %1110, %1108 : vector<8x128xf32>
    %1112 = math.tanh %1111 : vector<8x128xf32>
    %cst_57 = arith.constant 5.000000e-01 : f32
    %1113 = vector.broadcast %cst_57 : f32 to vector<8x128xf32>
    %1114 = arith.mulf %1113, %1112 : vector<8x128xf32>
    %cst_58 = arith.constant 5.000000e-01 : f32
    %1115 = vector.broadcast %cst_58 : f32 to vector<8x128xf32>
    %1116 = arith.addf %1114, %1115 : vector<8x128xf32>
    %1117 = arith.mulf %1109, %1116 : vector<8x128xf32>
    %1118 = vector.broadcast %214 : f32 to vector<8x128xf32>
    %1119 = arith.mulf %1118, %1117 : vector<8x128xf32>
    %1120 = arith.addf %1070, %1119 : vector<8x128xf32>
    %1121 = vector.broadcast %30 : f32 to vector<8x128xf32>
    %1122 = arith.mulf %1121, %1016 : vector<8x128xf32>
    %1123 = vector.broadcast %158 : f32 to vector<8x128xf32>
    %1124 = arith.addf %1123, %1122 : vector<8x128xf32>
    %1125 = vector.broadcast %102 : f32 to vector<8x128xf32>
    %1126 = arith.mulf %1125, %992 : vector<8x128xf32>
    %1127 = arith.addf %1124, %1126 : vector<8x128xf32>
    %1128 = vector.broadcast %39 : f32 to vector<8x128xf32>
    %1129 = arith.mulf %1128, %1016 : vector<8x128xf32>
    %1130 = vector.broadcast %161 : f32 to vector<8x128xf32>
    %1131 = arith.addf %1130, %1129 : vector<8x128xf32>
    %1132 = vector.broadcast %111 : f32 to vector<8x128xf32>
    %1133 = arith.mulf %1132, %992 : vector<8x128xf32>
    %1134 = arith.addf %1131, %1133 : vector<8x128xf32>
    %1135 = vector.broadcast %31 : f32 to vector<8x128xf32>
    %1136 = arith.mulf %1135, %1018 : vector<8x128xf32>
    %1137 = arith.addf %1127, %1136 : vector<8x128xf32>
    %1138 = vector.broadcast %103 : f32 to vector<8x128xf32>
    %1139 = arith.mulf %1138, %1003 : vector<8x128xf32>
    %1140 = arith.addf %1137, %1139 : vector<8x128xf32>
    %1141 = vector.broadcast %40 : f32 to vector<8x128xf32>
    %1142 = arith.mulf %1141, %1018 : vector<8x128xf32>
    %1143 = arith.addf %1134, %1142 : vector<8x128xf32>
    %1144 = vector.broadcast %112 : f32 to vector<8x128xf32>
    %1145 = arith.mulf %1144, %1003 : vector<8x128xf32>
    %1146 = arith.addf %1143, %1145 : vector<8x128xf32>
    %1147 = vector.broadcast %32 : f32 to vector<8x128xf32>
    %1148 = arith.mulf %1147, %1020 : vector<8x128xf32>
    %1149 = arith.addf %1140, %1148 : vector<8x128xf32>
    %1150 = vector.broadcast %104 : f32 to vector<8x128xf32>
    %1151 = arith.mulf %1150, %1014 : vector<8x128xf32>
    %1152 = arith.addf %1149, %1151 : vector<8x128xf32>
    %1153 = vector.broadcast %41 : f32 to vector<8x128xf32>
    %1154 = arith.mulf %1153, %1020 : vector<8x128xf32>
    %1155 = arith.addf %1146, %1154 : vector<8x128xf32>
    %1156 = vector.broadcast %113 : f32 to vector<8x128xf32>
    %1157 = arith.mulf %1156, %1014 : vector<8x128xf32>
    %1158 = arith.addf %1155, %1157 : vector<8x128xf32>
    %1159 = math.tanh %1152 : vector<8x128xf32>
    %cst_59 = arith.constant 5.000000e-01 : f32
    %1160 = vector.broadcast %cst_59 : f32 to vector<8x128xf32>
    %1161 = arith.mulf %1160, %1158 : vector<8x128xf32>
    %1162 = math.tanh %1161 : vector<8x128xf32>
    %cst_60 = arith.constant 5.000000e-01 : f32
    %1163 = vector.broadcast %cst_60 : f32 to vector<8x128xf32>
    %1164 = arith.mulf %1163, %1162 : vector<8x128xf32>
    %cst_61 = arith.constant 5.000000e-01 : f32
    %1165 = vector.broadcast %cst_61 : f32 to vector<8x128xf32>
    %1166 = arith.addf %1164, %1165 : vector<8x128xf32>
    %1167 = arith.mulf %1159, %1166 : vector<8x128xf32>
    %1168 = vector.broadcast %215 : f32 to vector<8x128xf32>
    %1169 = arith.mulf %1168, %1167 : vector<8x128xf32>
    %1170 = arith.addf %1120, %1169 : vector<8x128xf32>
    %1171 = vector.broadcast %183 : f32 to vector<8x128xf32>
    %1172 = arith.mulf %1171, %1067 : vector<8x128xf32>
    %1173 = vector.broadcast %204 : f32 to vector<8x128xf32>
    %1174 = arith.addf %1173, %1172 : vector<8x128xf32>
    %1175 = vector.broadcast %184 : f32 to vector<8x128xf32>
    %1176 = arith.mulf %1175, %1117 : vector<8x128xf32>
    %1177 = arith.addf %1174, %1176 : vector<8x128xf32>
    %1178 = vector.broadcast %185 : f32 to vector<8x128xf32>
    %1179 = arith.mulf %1178, %1167 : vector<8x128xf32>
    %1180 = arith.addf %1177, %1179 : vector<8x128xf32>
    %1181 = arith.addf %1180, %992 : vector<8x128xf32>
    %1182 = vector.broadcast %186 : f32 to vector<8x128xf32>
    %1183 = arith.mulf %1182, %1067 : vector<8x128xf32>
    %1184 = vector.broadcast %205 : f32 to vector<8x128xf32>
    %1185 = arith.addf %1184, %1183 : vector<8x128xf32>
    %1186 = vector.broadcast %187 : f32 to vector<8x128xf32>
    %1187 = arith.mulf %1186, %1117 : vector<8x128xf32>
    %1188 = arith.addf %1185, %1187 : vector<8x128xf32>
    %1189 = vector.broadcast %188 : f32 to vector<8x128xf32>
    %1190 = arith.mulf %1189, %1167 : vector<8x128xf32>
    %1191 = arith.addf %1188, %1190 : vector<8x128xf32>
    %1192 = arith.addf %1191, %1003 : vector<8x128xf32>
    %1193 = vector.broadcast %189 : f32 to vector<8x128xf32>
    %1194 = arith.mulf %1193, %1067 : vector<8x128xf32>
    %1195 = vector.broadcast %206 : f32 to vector<8x128xf32>
    %1196 = arith.addf %1195, %1194 : vector<8x128xf32>
    %1197 = vector.broadcast %190 : f32 to vector<8x128xf32>
    %1198 = arith.mulf %1197, %1117 : vector<8x128xf32>
    %1199 = arith.addf %1196, %1198 : vector<8x128xf32>
    %1200 = vector.broadcast %191 : f32 to vector<8x128xf32>
    %1201 = arith.mulf %1200, %1167 : vector<8x128xf32>
    %1202 = arith.addf %1199, %1201 : vector<8x128xf32>
    %1203 = arith.addf %1202, %1014 : vector<8x128xf32>
    %1204 = arith.select %225, %798, %1181 : vector<8x128xi1>, vector<8x128xf32>
    %c1_i32_62 = arith.constant 1 : i32
    %1205 = tpu.dynamic_rotate %1204 by %c1_i32_62 dim 1 : vector<8x128xf32>, i32 -> vector<8x128xf32>
    %1206 = arith.select %225, %800, %1192 : vector<8x128xi1>, vector<8x128xf32>
    %c1_i32_63 = arith.constant 1 : i32
    %1207 = tpu.dynamic_rotate %1206 by %c1_i32_63 dim 1 : vector<8x128xf32>, i32 -> vector<8x128xf32>
    %1208 = arith.select %225, %802, %1203 : vector<8x128xi1>, vector<8x128xf32>
    %c1_i32_64 = arith.constant 1 : i32
    %1209 = tpu.dynamic_rotate %1208 by %c1_i32_64 dim 1 : vector<8x128xf32>, i32 -> vector<8x128xf32>
    %1210 = vector.broadcast %42 : f32 to vector<8x128xf32>
    %1211 = arith.mulf %1210, %1205 : vector<8x128xf32>
    %1212 = vector.broadcast %162 : f32 to vector<8x128xf32>
    %1213 = arith.addf %1212, %1211 : vector<8x128xf32>
    %1214 = vector.broadcast %114 : f32 to vector<8x128xf32>
    %1215 = arith.mulf %1214, %1181 : vector<8x128xf32>
    %1216 = arith.addf %1213, %1215 : vector<8x128xf32>
    %1217 = vector.broadcast %51 : f32 to vector<8x128xf32>
    %1218 = arith.mulf %1217, %1205 : vector<8x128xf32>
    %1219 = vector.broadcast %165 : f32 to vector<8x128xf32>
    %1220 = arith.addf %1219, %1218 : vector<8x128xf32>
    %1221 = vector.broadcast %123 : f32 to vector<8x128xf32>
    %1222 = arith.mulf %1221, %1181 : vector<8x128xf32>
    %1223 = arith.addf %1220, %1222 : vector<8x128xf32>
    %1224 = vector.broadcast %43 : f32 to vector<8x128xf32>
    %1225 = arith.mulf %1224, %1207 : vector<8x128xf32>
    %1226 = arith.addf %1216, %1225 : vector<8x128xf32>
    %1227 = vector.broadcast %115 : f32 to vector<8x128xf32>
    %1228 = arith.mulf %1227, %1192 : vector<8x128xf32>
    %1229 = arith.addf %1226, %1228 : vector<8x128xf32>
    %1230 = vector.broadcast %52 : f32 to vector<8x128xf32>
    %1231 = arith.mulf %1230, %1207 : vector<8x128xf32>
    %1232 = arith.addf %1223, %1231 : vector<8x128xf32>
    %1233 = vector.broadcast %124 : f32 to vector<8x128xf32>
    %1234 = arith.mulf %1233, %1192 : vector<8x128xf32>
    %1235 = arith.addf %1232, %1234 : vector<8x128xf32>
    %1236 = vector.broadcast %44 : f32 to vector<8x128xf32>
    %1237 = arith.mulf %1236, %1209 : vector<8x128xf32>
    %1238 = arith.addf %1229, %1237 : vector<8x128xf32>
    %1239 = vector.broadcast %116 : f32 to vector<8x128xf32>
    %1240 = arith.mulf %1239, %1203 : vector<8x128xf32>
    %1241 = arith.addf %1238, %1240 : vector<8x128xf32>
    %1242 = vector.broadcast %53 : f32 to vector<8x128xf32>
    %1243 = arith.mulf %1242, %1209 : vector<8x128xf32>
    %1244 = arith.addf %1235, %1243 : vector<8x128xf32>
    %1245 = vector.broadcast %125 : f32 to vector<8x128xf32>
    %1246 = arith.mulf %1245, %1203 : vector<8x128xf32>
    %1247 = arith.addf %1244, %1246 : vector<8x128xf32>
    %1248 = math.tanh %1241 : vector<8x128xf32>
    %cst_65 = arith.constant 5.000000e-01 : f32
    %1249 = vector.broadcast %cst_65 : f32 to vector<8x128xf32>
    %1250 = arith.mulf %1249, %1247 : vector<8x128xf32>
    %1251 = math.tanh %1250 : vector<8x128xf32>
    %cst_66 = arith.constant 5.000000e-01 : f32
    %1252 = vector.broadcast %cst_66 : f32 to vector<8x128xf32>
    %1253 = arith.mulf %1252, %1251 : vector<8x128xf32>
    %cst_67 = arith.constant 5.000000e-01 : f32
    %1254 = vector.broadcast %cst_67 : f32 to vector<8x128xf32>
    %1255 = arith.addf %1253, %1254 : vector<8x128xf32>
    %1256 = arith.mulf %1248, %1255 : vector<8x128xf32>
    %1257 = vector.broadcast %216 : f32 to vector<8x128xf32>
    %1258 = arith.mulf %1257, %1256 : vector<8x128xf32>
    %1259 = arith.addf %1170, %1258 : vector<8x128xf32>
    %1260 = vector.broadcast %45 : f32 to vector<8x128xf32>
    %1261 = arith.mulf %1260, %1205 : vector<8x128xf32>
    %1262 = vector.broadcast %163 : f32 to vector<8x128xf32>
    %1263 = arith.addf %1262, %1261 : vector<8x128xf32>
    %1264 = vector.broadcast %117 : f32 to vector<8x128xf32>
    %1265 = arith.mulf %1264, %1181 : vector<8x128xf32>
    %1266 = arith.addf %1263, %1265 : vector<8x128xf32>
    %1267 = vector.broadcast %54 : f32 to vector<8x128xf32>
    %1268 = arith.mulf %1267, %1205 : vector<8x128xf32>
    %1269 = vector.broadcast %166 : f32 to vector<8x128xf32>
    %1270 = arith.addf %1269, %1268 : vector<8x128xf32>
    %1271 = vector.broadcast %126 : f32 to vector<8x128xf32>
    %1272 = arith.mulf %1271, %1181 : vector<8x128xf32>
    %1273 = arith.addf %1270, %1272 : vector<8x128xf32>
    %1274 = vector.broadcast %46 : f32 to vector<8x128xf32>
    %1275 = arith.mulf %1274, %1207 : vector<8x128xf32>
    %1276 = arith.addf %1266, %1275 : vector<8x128xf32>
    %1277 = vector.broadcast %118 : f32 to vector<8x128xf32>
    %1278 = arith.mulf %1277, %1192 : vector<8x128xf32>
    %1279 = arith.addf %1276, %1278 : vector<8x128xf32>
    %1280 = vector.broadcast %55 : f32 to vector<8x128xf32>
    %1281 = arith.mulf %1280, %1207 : vector<8x128xf32>
    %1282 = arith.addf %1273, %1281 : vector<8x128xf32>
    %1283 = vector.broadcast %127 : f32 to vector<8x128xf32>
    %1284 = arith.mulf %1283, %1192 : vector<8x128xf32>
    %1285 = arith.addf %1282, %1284 : vector<8x128xf32>
    %1286 = vector.broadcast %47 : f32 to vector<8x128xf32>
    %1287 = arith.mulf %1286, %1209 : vector<8x128xf32>
    %1288 = arith.addf %1279, %1287 : vector<8x128xf32>
    %1289 = vector.broadcast %119 : f32 to vector<8x128xf32>
    %1290 = arith.mulf %1289, %1203 : vector<8x128xf32>
    %1291 = arith.addf %1288, %1290 : vector<8x128xf32>
    %1292 = vector.broadcast %56 : f32 to vector<8x128xf32>
    %1293 = arith.mulf %1292, %1209 : vector<8x128xf32>
    %1294 = arith.addf %1285, %1293 : vector<8x128xf32>
    %1295 = vector.broadcast %128 : f32 to vector<8x128xf32>
    %1296 = arith.mulf %1295, %1203 : vector<8x128xf32>
    %1297 = arith.addf %1294, %1296 : vector<8x128xf32>
    %1298 = math.tanh %1291 : vector<8x128xf32>
    %cst_68 = arith.constant 5.000000e-01 : f32
    %1299 = vector.broadcast %cst_68 : f32 to vector<8x128xf32>
    %1300 = arith.mulf %1299, %1297 : vector<8x128xf32>
    %1301 = math.tanh %1300 : vector<8x128xf32>
    %cst_69 = arith.constant 5.000000e-01 : f32
    %1302 = vector.broadcast %cst_69 : f32 to vector<8x128xf32>
    %1303 = arith.mulf %1302, %1301 : vector<8x128xf32>
    %cst_70 = arith.constant 5.000000e-01 : f32
    %1304 = vector.broadcast %cst_70 : f32 to vector<8x128xf32>
    %1305 = arith.addf %1303, %1304 : vector<8x128xf32>
    %1306 = arith.mulf %1298, %1305 : vector<8x128xf32>
    %1307 = vector.broadcast %217 : f32 to vector<8x128xf32>
    %1308 = arith.mulf %1307, %1306 : vector<8x128xf32>
    %1309 = arith.addf %1259, %1308 : vector<8x128xf32>
    %1310 = vector.broadcast %48 : f32 to vector<8x128xf32>
    %1311 = arith.mulf %1310, %1205 : vector<8x128xf32>
    %1312 = vector.broadcast %164 : f32 to vector<8x128xf32>
    %1313 = arith.addf %1312, %1311 : vector<8x128xf32>
    %1314 = vector.broadcast %120 : f32 to vector<8x128xf32>
    %1315 = arith.mulf %1314, %1181 : vector<8x128xf32>
    %1316 = arith.addf %1313, %1315 : vector<8x128xf32>
    %1317 = vector.broadcast %57 : f32 to vector<8x128xf32>
    %1318 = arith.mulf %1317, %1205 : vector<8x128xf32>
    %1319 = vector.broadcast %167 : f32 to vector<8x128xf32>
    %1320 = arith.addf %1319, %1318 : vector<8x128xf32>
    %1321 = vector.broadcast %129 : f32 to vector<8x128xf32>
    %1322 = arith.mulf %1321, %1181 : vector<8x128xf32>
    %1323 = arith.addf %1320, %1322 : vector<8x128xf32>
    %1324 = vector.broadcast %49 : f32 to vector<8x128xf32>
    %1325 = arith.mulf %1324, %1207 : vector<8x128xf32>
    %1326 = arith.addf %1316, %1325 : vector<8x128xf32>
    %1327 = vector.broadcast %121 : f32 to vector<8x128xf32>
    %1328 = arith.mulf %1327, %1192 : vector<8x128xf32>
    %1329 = arith.addf %1326, %1328 : vector<8x128xf32>
    %1330 = vector.broadcast %58 : f32 to vector<8x128xf32>
    %1331 = arith.mulf %1330, %1207 : vector<8x128xf32>
    %1332 = arith.addf %1323, %1331 : vector<8x128xf32>
    %1333 = vector.broadcast %130 : f32 to vector<8x128xf32>
    %1334 = arith.mulf %1333, %1192 : vector<8x128xf32>
    %1335 = arith.addf %1332, %1334 : vector<8x128xf32>
    %1336 = vector.broadcast %50 : f32 to vector<8x128xf32>
    %1337 = arith.mulf %1336, %1209 : vector<8x128xf32>
    %1338 = arith.addf %1329, %1337 : vector<8x128xf32>
    %1339 = vector.broadcast %122 : f32 to vector<8x128xf32>
    %1340 = arith.mulf %1339, %1203 : vector<8x128xf32>
    %1341 = arith.addf %1338, %1340 : vector<8x128xf32>
    %1342 = vector.broadcast %59 : f32 to vector<8x128xf32>
    %1343 = arith.mulf %1342, %1209 : vector<8x128xf32>
    %1344 = arith.addf %1335, %1343 : vector<8x128xf32>
    %1345 = vector.broadcast %131 : f32 to vector<8x128xf32>
    %1346 = arith.mulf %1345, %1203 : vector<8x128xf32>
    %1347 = arith.addf %1344, %1346 : vector<8x128xf32>
    %1348 = math.tanh %1341 : vector<8x128xf32>
    %cst_71 = arith.constant 5.000000e-01 : f32
    %1349 = vector.broadcast %cst_71 : f32 to vector<8x128xf32>
    %1350 = arith.mulf %1349, %1347 : vector<8x128xf32>
    %1351 = math.tanh %1350 : vector<8x128xf32>
    %cst_72 = arith.constant 5.000000e-01 : f32
    %1352 = vector.broadcast %cst_72 : f32 to vector<8x128xf32>
    %1353 = arith.mulf %1352, %1351 : vector<8x128xf32>
    %cst_73 = arith.constant 5.000000e-01 : f32
    %1354 = vector.broadcast %cst_73 : f32 to vector<8x128xf32>
    %1355 = arith.addf %1353, %1354 : vector<8x128xf32>
    %1356 = arith.mulf %1348, %1355 : vector<8x128xf32>
    %1357 = vector.broadcast %218 : f32 to vector<8x128xf32>
    %1358 = arith.mulf %1357, %1356 : vector<8x128xf32>
    %1359 = arith.addf %1309, %1358 : vector<8x128xf32>
    %1360 = vector.broadcast %192 : f32 to vector<8x128xf32>
    %1361 = arith.mulf %1360, %1256 : vector<8x128xf32>
    %1362 = vector.broadcast %207 : f32 to vector<8x128xf32>
    %1363 = arith.addf %1362, %1361 : vector<8x128xf32>
    %1364 = vector.broadcast %193 : f32 to vector<8x128xf32>
    %1365 = arith.mulf %1364, %1306 : vector<8x128xf32>
    %1366 = arith.addf %1363, %1365 : vector<8x128xf32>
    %1367 = vector.broadcast %194 : f32 to vector<8x128xf32>
    %1368 = arith.mulf %1367, %1356 : vector<8x128xf32>
    %1369 = arith.addf %1366, %1368 : vector<8x128xf32>
    %1370 = arith.addf %1369, %1181 : vector<8x128xf32>
    %1371 = vector.broadcast %195 : f32 to vector<8x128xf32>
    %1372 = arith.mulf %1371, %1256 : vector<8x128xf32>
    %1373 = vector.broadcast %208 : f32 to vector<8x128xf32>
    %1374 = arith.addf %1373, %1372 : vector<8x128xf32>
    %1375 = vector.broadcast %196 : f32 to vector<8x128xf32>
    %1376 = arith.mulf %1375, %1306 : vector<8x128xf32>
    %1377 = arith.addf %1374, %1376 : vector<8x128xf32>
    %1378 = vector.broadcast %197 : f32 to vector<8x128xf32>
    %1379 = arith.mulf %1378, %1356 : vector<8x128xf32>
    %1380 = arith.addf %1377, %1379 : vector<8x128xf32>
    %1381 = arith.addf %1380, %1192 : vector<8x128xf32>
    %1382 = vector.broadcast %198 : f32 to vector<8x128xf32>
    %1383 = arith.mulf %1382, %1256 : vector<8x128xf32>
    %1384 = vector.broadcast %209 : f32 to vector<8x128xf32>
    %1385 = arith.addf %1384, %1383 : vector<8x128xf32>
    %1386 = vector.broadcast %199 : f32 to vector<8x128xf32>
    %1387 = arith.mulf %1386, %1306 : vector<8x128xf32>
    %1388 = arith.addf %1385, %1387 : vector<8x128xf32>
    %1389 = vector.broadcast %200 : f32 to vector<8x128xf32>
    %1390 = arith.mulf %1389, %1356 : vector<8x128xf32>
    %1391 = arith.addf %1388, %1390 : vector<8x128xf32>
    %1392 = arith.addf %1391, %1203 : vector<8x128xf32>
    %1393 = arith.select %227, %804, %1370 : vector<8x128xi1>, vector<8x128xf32>
    %c2_i32_74 = arith.constant 2 : i32
    %1394 = tpu.dynamic_rotate %1393 by %c2_i32_74 dim 1 : vector<8x128xf32>, i32 -> vector<8x128xf32>
    %1395 = arith.select %227, %806, %1381 : vector<8x128xi1>, vector<8x128xf32>
    %c2_i32_75 = arith.constant 2 : i32
    %1396 = tpu.dynamic_rotate %1395 by %c2_i32_75 dim 1 : vector<8x128xf32>, i32 -> vector<8x128xf32>
    %1397 = arith.select %227, %808, %1392 : vector<8x128xi1>, vector<8x128xf32>
    %c2_i32_76 = arith.constant 2 : i32
    %1398 = tpu.dynamic_rotate %1397 by %c2_i32_76 dim 1 : vector<8x128xf32>, i32 -> vector<8x128xf32>
    %1399 = vector.broadcast %60 : f32 to vector<8x128xf32>
    %1400 = arith.mulf %1399, %1394 : vector<8x128xf32>
    %1401 = vector.broadcast %168 : f32 to vector<8x128xf32>
    %1402 = arith.addf %1401, %1400 : vector<8x128xf32>
    %1403 = vector.broadcast %132 : f32 to vector<8x128xf32>
    %1404 = arith.mulf %1403, %1370 : vector<8x128xf32>
    %1405 = arith.addf %1402, %1404 : vector<8x128xf32>
    %1406 = vector.broadcast %69 : f32 to vector<8x128xf32>
    %1407 = arith.mulf %1406, %1394 : vector<8x128xf32>
    %1408 = vector.broadcast %171 : f32 to vector<8x128xf32>
    %1409 = arith.addf %1408, %1407 : vector<8x128xf32>
    %1410 = vector.broadcast %141 : f32 to vector<8x128xf32>
    %1411 = arith.mulf %1410, %1370 : vector<8x128xf32>
    %1412 = arith.addf %1409, %1411 : vector<8x128xf32>
    %1413 = vector.broadcast %61 : f32 to vector<8x128xf32>
    %1414 = arith.mulf %1413, %1396 : vector<8x128xf32>
    %1415 = arith.addf %1405, %1414 : vector<8x128xf32>
    %1416 = vector.broadcast %133 : f32 to vector<8x128xf32>
    %1417 = arith.mulf %1416, %1381 : vector<8x128xf32>
    %1418 = arith.addf %1415, %1417 : vector<8x128xf32>
    %1419 = vector.broadcast %70 : f32 to vector<8x128xf32>
    %1420 = arith.mulf %1419, %1396 : vector<8x128xf32>
    %1421 = arith.addf %1412, %1420 : vector<8x128xf32>
    %1422 = vector.broadcast %142 : f32 to vector<8x128xf32>
    %1423 = arith.mulf %1422, %1381 : vector<8x128xf32>
    %1424 = arith.addf %1421, %1423 : vector<8x128xf32>
    %1425 = vector.broadcast %62 : f32 to vector<8x128xf32>
    %1426 = arith.mulf %1425, %1398 : vector<8x128xf32>
    %1427 = arith.addf %1418, %1426 : vector<8x128xf32>
    %1428 = vector.broadcast %134 : f32 to vector<8x128xf32>
    %1429 = arith.mulf %1428, %1392 : vector<8x128xf32>
    %1430 = arith.addf %1427, %1429 : vector<8x128xf32>
    %1431 = vector.broadcast %71 : f32 to vector<8x128xf32>
    %1432 = arith.mulf %1431, %1398 : vector<8x128xf32>
    %1433 = arith.addf %1424, %1432 : vector<8x128xf32>
    %1434 = vector.broadcast %143 : f32 to vector<8x128xf32>
    %1435 = arith.mulf %1434, %1392 : vector<8x128xf32>
    %1436 = arith.addf %1433, %1435 : vector<8x128xf32>
    %1437 = math.tanh %1430 : vector<8x128xf32>
    %cst_77 = arith.constant 5.000000e-01 : f32
    %1438 = vector.broadcast %cst_77 : f32 to vector<8x128xf32>
    %1439 = arith.mulf %1438, %1436 : vector<8x128xf32>
    %1440 = math.tanh %1439 : vector<8x128xf32>
    %cst_78 = arith.constant 5.000000e-01 : f32
    %1441 = vector.broadcast %cst_78 : f32 to vector<8x128xf32>
    %1442 = arith.mulf %1441, %1440 : vector<8x128xf32>
    %cst_79 = arith.constant 5.000000e-01 : f32
    %1443 = vector.broadcast %cst_79 : f32 to vector<8x128xf32>
    %1444 = arith.addf %1442, %1443 : vector<8x128xf32>
    %1445 = arith.mulf %1437, %1444 : vector<8x128xf32>
    %1446 = vector.broadcast %219 : f32 to vector<8x128xf32>
    %1447 = arith.mulf %1446, %1445 : vector<8x128xf32>
    %1448 = arith.addf %1359, %1447 : vector<8x128xf32>
    %1449 = vector.broadcast %63 : f32 to vector<8x128xf32>
    %1450 = arith.mulf %1449, %1394 : vector<8x128xf32>
    %1451 = vector.broadcast %169 : f32 to vector<8x128xf32>
    %1452 = arith.addf %1451, %1450 : vector<8x128xf32>
    %1453 = vector.broadcast %135 : f32 to vector<8x128xf32>
    %1454 = arith.mulf %1453, %1370 : vector<8x128xf32>
    %1455 = arith.addf %1452, %1454 : vector<8x128xf32>
    %1456 = vector.broadcast %72 : f32 to vector<8x128xf32>
    %1457 = arith.mulf %1456, %1394 : vector<8x128xf32>
    %1458 = vector.broadcast %172 : f32 to vector<8x128xf32>
    %1459 = arith.addf %1458, %1457 : vector<8x128xf32>
    %1460 = vector.broadcast %144 : f32 to vector<8x128xf32>
    %1461 = arith.mulf %1460, %1370 : vector<8x128xf32>
    %1462 = arith.addf %1459, %1461 : vector<8x128xf32>
    %1463 = vector.broadcast %64 : f32 to vector<8x128xf32>
    %1464 = arith.mulf %1463, %1396 : vector<8x128xf32>
    %1465 = arith.addf %1455, %1464 : vector<8x128xf32>
    %1466 = vector.broadcast %136 : f32 to vector<8x128xf32>
    %1467 = arith.mulf %1466, %1381 : vector<8x128xf32>
    %1468 = arith.addf %1465, %1467 : vector<8x128xf32>
    %1469 = vector.broadcast %73 : f32 to vector<8x128xf32>
    %1470 = arith.mulf %1469, %1396 : vector<8x128xf32>
    %1471 = arith.addf %1462, %1470 : vector<8x128xf32>
    %1472 = vector.broadcast %145 : f32 to vector<8x128xf32>
    %1473 = arith.mulf %1472, %1381 : vector<8x128xf32>
    %1474 = arith.addf %1471, %1473 : vector<8x128xf32>
    %1475 = vector.broadcast %65 : f32 to vector<8x128xf32>
    %1476 = arith.mulf %1475, %1398 : vector<8x128xf32>
    %1477 = arith.addf %1468, %1476 : vector<8x128xf32>
    %1478 = vector.broadcast %137 : f32 to vector<8x128xf32>
    %1479 = arith.mulf %1478, %1392 : vector<8x128xf32>
    %1480 = arith.addf %1477, %1479 : vector<8x128xf32>
    %1481 = vector.broadcast %74 : f32 to vector<8x128xf32>
    %1482 = arith.mulf %1481, %1398 : vector<8x128xf32>
    %1483 = arith.addf %1474, %1482 : vector<8x128xf32>
    %1484 = vector.broadcast %146 : f32 to vector<8x128xf32>
    %1485 = arith.mulf %1484, %1392 : vector<8x128xf32>
    %1486 = arith.addf %1483, %1485 : vector<8x128xf32>
    %1487 = math.tanh %1480 : vector<8x128xf32>
    %cst_80 = arith.constant 5.000000e-01 : f32
    %1488 = vector.broadcast %cst_80 : f32 to vector<8x128xf32>
    %1489 = arith.mulf %1488, %1486 : vector<8x128xf32>
    %1490 = math.tanh %1489 : vector<8x128xf32>
    %cst_81 = arith.constant 5.000000e-01 : f32
    %1491 = vector.broadcast %cst_81 : f32 to vector<8x128xf32>
    %1492 = arith.mulf %1491, %1490 : vector<8x128xf32>
    %cst_82 = arith.constant 5.000000e-01 : f32
    %1493 = vector.broadcast %cst_82 : f32 to vector<8x128xf32>
    %1494 = arith.addf %1492, %1493 : vector<8x128xf32>
    %1495 = arith.mulf %1487, %1494 : vector<8x128xf32>
    %1496 = vector.broadcast %220 : f32 to vector<8x128xf32>
    %1497 = arith.mulf %1496, %1495 : vector<8x128xf32>
    %1498 = arith.addf %1448, %1497 : vector<8x128xf32>
    %1499 = vector.broadcast %66 : f32 to vector<8x128xf32>
    %1500 = arith.mulf %1499, %1394 : vector<8x128xf32>
    %1501 = vector.broadcast %170 : f32 to vector<8x128xf32>
    %1502 = arith.addf %1501, %1500 : vector<8x128xf32>
    %1503 = vector.broadcast %138 : f32 to vector<8x128xf32>
    %1504 = arith.mulf %1503, %1370 : vector<8x128xf32>
    %1505 = arith.addf %1502, %1504 : vector<8x128xf32>
    %1506 = vector.broadcast %75 : f32 to vector<8x128xf32>
    %1507 = arith.mulf %1506, %1394 : vector<8x128xf32>
    %1508 = vector.broadcast %173 : f32 to vector<8x128xf32>
    %1509 = arith.addf %1508, %1507 : vector<8x128xf32>
    %1510 = vector.broadcast %147 : f32 to vector<8x128xf32>
    %1511 = arith.mulf %1510, %1370 : vector<8x128xf32>
    %1512 = arith.addf %1509, %1511 : vector<8x128xf32>
    %1513 = vector.broadcast %67 : f32 to vector<8x128xf32>
    %1514 = arith.mulf %1513, %1396 : vector<8x128xf32>
    %1515 = arith.addf %1505, %1514 : vector<8x128xf32>
    %1516 = vector.broadcast %139 : f32 to vector<8x128xf32>
    %1517 = arith.mulf %1516, %1381 : vector<8x128xf32>
    %1518 = arith.addf %1515, %1517 : vector<8x128xf32>
    %1519 = vector.broadcast %76 : f32 to vector<8x128xf32>
    %1520 = arith.mulf %1519, %1396 : vector<8x128xf32>
    %1521 = arith.addf %1512, %1520 : vector<8x128xf32>
    %1522 = vector.broadcast %148 : f32 to vector<8x128xf32>
    %1523 = arith.mulf %1522, %1381 : vector<8x128xf32>
    %1524 = arith.addf %1521, %1523 : vector<8x128xf32>
    %1525 = vector.broadcast %68 : f32 to vector<8x128xf32>
    %1526 = arith.mulf %1525, %1398 : vector<8x128xf32>
    %1527 = arith.addf %1518, %1526 : vector<8x128xf32>
    %1528 = vector.broadcast %140 : f32 to vector<8x128xf32>
    %1529 = arith.mulf %1528, %1392 : vector<8x128xf32>
    %1530 = arith.addf %1527, %1529 : vector<8x128xf32>
    %1531 = vector.broadcast %77 : f32 to vector<8x128xf32>
    %1532 = arith.mulf %1531, %1398 : vector<8x128xf32>
    %1533 = arith.addf %1524, %1532 : vector<8x128xf32>
    %1534 = vector.broadcast %149 : f32 to vector<8x128xf32>
    %1535 = arith.mulf %1534, %1392 : vector<8x128xf32>
    %1536 = arith.addf %1533, %1535 : vector<8x128xf32>
    %1537 = math.tanh %1530 : vector<8x128xf32>
    %cst_83 = arith.constant 5.000000e-01 : f32
    %1538 = vector.broadcast %cst_83 : f32 to vector<8x128xf32>
    %1539 = arith.mulf %1538, %1536 : vector<8x128xf32>
    %1540 = math.tanh %1539 : vector<8x128xf32>
    %cst_84 = arith.constant 5.000000e-01 : f32
    %1541 = vector.broadcast %cst_84 : f32 to vector<8x128xf32>
    %1542 = arith.mulf %1541, %1540 : vector<8x128xf32>
    %cst_85 = arith.constant 5.000000e-01 : f32
    %1543 = vector.broadcast %cst_85 : f32 to vector<8x128xf32>
    %1544 = arith.addf %1542, %1543 : vector<8x128xf32>
    %1545 = arith.mulf %1537, %1544 : vector<8x128xf32>
    %1546 = vector.broadcast %221 : f32 to vector<8x128xf32>
    %1547 = arith.mulf %1546, %1545 : vector<8x128xf32>
    %1548 = arith.addf %1498, %1547 : vector<8x128xf32>
    %c0_86 = arith.constant 0 : index
    %1549 = arith.index_cast %810 : i32 to index
    %1550 = vector.load %arg5[%c0_86, %1549] : memref<8x256xf32, #tpu.memory_space<vmem>>, vector<8x128xf32>
    tpu.vector_store %arg5[%c0_86, %1549], %1548 {strides = array<i32>} : memref<8x256xf32, #tpu.memory_space<vmem>>, vector<8x128xf32>,
    %c1_i32_87 = arith.constant 1 : i32
    %c128_i32_88 = arith.constant 128 : i32
    %1551 = arith.muli %c1_i32_87, %c128_i32_88 : i32
    %1552 = tpu.assume_multiple %1551, 128 : i32
    %c0_89 = arith.constant 0 : index
    %1553 = arith.index_cast %1552 : i32 to index
    %1554 = vector.load %arg3[%c0_89, %1553] : memref<8x256xf32, #tpu.memory_space<vmem>>, vector<8x128xf32>
    %1555 = vector.broadcast %0 : f32 to vector<8x128xf32>
    %1556 = arith.mulf %1555, %1554 : vector<8x128xf32>
    %1557 = vector.broadcast %3 : f32 to vector<8x128xf32>
    %1558 = arith.addf %1556, %1557 : vector<8x128xf32>
    %1559 = vector.broadcast %1 : f32 to vector<8x128xf32>
    %1560 = arith.mulf %1559, %1554 : vector<8x128xf32>
    %1561 = vector.broadcast %4 : f32 to vector<8x128xf32>
    %1562 = arith.addf %1560, %1561 : vector<8x128xf32>
    %1563 = vector.broadcast %2 : f32 to vector<8x128xf32>
    %1564 = arith.mulf %1563, %1554 : vector<8x128xf32>
    %1565 = vector.broadcast %5 : f32 to vector<8x128xf32>
    %1566 = arith.addf %1564, %1565 : vector<8x128xf32>
    %1567 = arith.select %225, %816, %1558 : vector<8x128xi1>, vector<8x128xf32>
    %c1_i32_90 = arith.constant 1 : i32
    %1568 = tpu.dynamic_rotate %1567 by %c1_i32_90 dim 1 : vector<8x128xf32>, i32 -> vector<8x128xf32>
    %1569 = arith.select %225, %820, %1562 : vector<8x128xi1>, vector<8x128xf32>
    %c1_i32_91 = arith.constant 1 : i32
    %1570 = tpu.dynamic_rotate %1569 by %c1_i32_91 dim 1 : vector<8x128xf32>, i32 -> vector<8x128xf32>
    %1571 = arith.select %225, %824, %1566 : vector<8x128xi1>, vector<8x128xf32>
    %c1_i32_92 = arith.constant 1 : i32
    %1572 = tpu.dynamic_rotate %1571 by %c1_i32_92 dim 1 : vector<8x128xf32>, i32 -> vector<8x128xf32>
    %1573 = vector.broadcast %6 : f32 to vector<8x128xf32>
    %1574 = arith.mulf %1573, %1568 : vector<8x128xf32>
    %1575 = vector.broadcast %150 : f32 to vector<8x128xf32>
    %1576 = arith.addf %1575, %1574 : vector<8x128xf32>
    %1577 = vector.broadcast %78 : f32 to vector<8x128xf32>
    %1578 = arith.mulf %1577, %1558 : vector<8x128xf32>
    %1579 = arith.addf %1576, %1578 : vector<8x128xf32>
    %1580 = vector.broadcast %15 : f32 to vector<8x128xf32>
    %1581 = arith.mulf %1580, %1568 : vector<8x128xf32>
    %1582 = vector.broadcast %153 : f32 to vector<8x128xf32>
    %1583 = arith.addf %1582, %1581 : vector<8x128xf32>
    %1584 = vector.broadcast %87 : f32 to vector<8x128xf32>
    %1585 = arith.mulf %1584, %1558 : vector<8x128xf32>
    %1586 = arith.addf %1583, %1585 : vector<8x128xf32>
    %1587 = vector.broadcast %7 : f32 to vector<8x128xf32>
    %1588 = arith.mulf %1587, %1570 : vector<8x128xf32>
    %1589 = arith.addf %1579, %1588 : vector<8x128xf32>
    %1590 = vector.broadcast %79 : f32 to vector<8x128xf32>
    %1591 = arith.mulf %1590, %1562 : vector<8x128xf32>
    %1592 = arith.addf %1589, %1591 : vector<8x128xf32>
    %1593 = vector.broadcast %16 : f32 to vector<8x128xf32>
    %1594 = arith.mulf %1593, %1570 : vector<8x128xf32>
    %1595 = arith.addf %1586, %1594 : vector<8x128xf32>
    %1596 = vector.broadcast %88 : f32 to vector<8x128xf32>
    %1597 = arith.mulf %1596, %1562 : vector<8x128xf32>
    %1598 = arith.addf %1595, %1597 : vector<8x128xf32>
    %1599 = vector.broadcast %8 : f32 to vector<8x128xf32>
    %1600 = arith.mulf %1599, %1572 : vector<8x128xf32>
    %1601 = arith.addf %1592, %1600 : vector<8x128xf32>
    %1602 = vector.broadcast %80 : f32 to vector<8x128xf32>
    %1603 = arith.mulf %1602, %1566 : vector<8x128xf32>
    %1604 = arith.addf %1601, %1603 : vector<8x128xf32>
    %1605 = vector.broadcast %17 : f32 to vector<8x128xf32>
    %1606 = arith.mulf %1605, %1572 : vector<8x128xf32>
    %1607 = arith.addf %1598, %1606 : vector<8x128xf32>
    %1608 = vector.broadcast %89 : f32 to vector<8x128xf32>
    %1609 = arith.mulf %1608, %1566 : vector<8x128xf32>
    %1610 = arith.addf %1607, %1609 : vector<8x128xf32>
    %1611 = math.tanh %1604 : vector<8x128xf32>
    %cst_93 = arith.constant 5.000000e-01 : f32
    %1612 = vector.broadcast %cst_93 : f32 to vector<8x128xf32>
    %1613 = arith.mulf %1612, %1610 : vector<8x128xf32>
    %1614 = math.tanh %1613 : vector<8x128xf32>
    %cst_94 = arith.constant 5.000000e-01 : f32
    %1615 = vector.broadcast %cst_94 : f32 to vector<8x128xf32>
    %1616 = arith.mulf %1615, %1614 : vector<8x128xf32>
    %cst_95 = arith.constant 5.000000e-01 : f32
    %1617 = vector.broadcast %cst_95 : f32 to vector<8x128xf32>
    %1618 = arith.addf %1616, %1617 : vector<8x128xf32>
    %1619 = arith.mulf %1611, %1618 : vector<8x128xf32>
    %1620 = vector.broadcast %210 : f32 to vector<8x128xf32>
    %1621 = arith.mulf %1620, %1619 : vector<8x128xf32>
    %1622 = vector.broadcast %222 : f32 to vector<8x128xf32>
    %1623 = arith.addf %1622, %1621 : vector<8x128xf32>
    %1624 = vector.broadcast %9 : f32 to vector<8x128xf32>
    %1625 = arith.mulf %1624, %1568 : vector<8x128xf32>
    %1626 = vector.broadcast %151 : f32 to vector<8x128xf32>
    %1627 = arith.addf %1626, %1625 : vector<8x128xf32>
    %1628 = vector.broadcast %81 : f32 to vector<8x128xf32>
    %1629 = arith.mulf %1628, %1558 : vector<8x128xf32>
    %1630 = arith.addf %1627, %1629 : vector<8x128xf32>
    %1631 = vector.broadcast %18 : f32 to vector<8x128xf32>
    %1632 = arith.mulf %1631, %1568 : vector<8x128xf32>
    %1633 = vector.broadcast %154 : f32 to vector<8x128xf32>
    %1634 = arith.addf %1633, %1632 : vector<8x128xf32>
    %1635 = vector.broadcast %90 : f32 to vector<8x128xf32>
    %1636 = arith.mulf %1635, %1558 : vector<8x128xf32>
    %1637 = arith.addf %1634, %1636 : vector<8x128xf32>
    %1638 = vector.broadcast %10 : f32 to vector<8x128xf32>
    %1639 = arith.mulf %1638, %1570 : vector<8x128xf32>
    %1640 = arith.addf %1630, %1639 : vector<8x128xf32>
    %1641 = vector.broadcast %82 : f32 to vector<8x128xf32>
    %1642 = arith.mulf %1641, %1562 : vector<8x128xf32>
    %1643 = arith.addf %1640, %1642 : vector<8x128xf32>
    %1644 = vector.broadcast %19 : f32 to vector<8x128xf32>
    %1645 = arith.mulf %1644, %1570 : vector<8x128xf32>
    %1646 = arith.addf %1637, %1645 : vector<8x128xf32>
    %1647 = vector.broadcast %91 : f32 to vector<8x128xf32>
    %1648 = arith.mulf %1647, %1562 : vector<8x128xf32>
    %1649 = arith.addf %1646, %1648 : vector<8x128xf32>
    %1650 = vector.broadcast %11 : f32 to vector<8x128xf32>
    %1651 = arith.mulf %1650, %1572 : vector<8x128xf32>
    %1652 = arith.addf %1643, %1651 : vector<8x128xf32>
    %1653 = vector.broadcast %83 : f32 to vector<8x128xf32>
    %1654 = arith.mulf %1653, %1566 : vector<8x128xf32>
    %1655 = arith.addf %1652, %1654 : vector<8x128xf32>
    %1656 = vector.broadcast %20 : f32 to vector<8x128xf32>
    %1657 = arith.mulf %1656, %1572 : vector<8x128xf32>
    %1658 = arith.addf %1649, %1657 : vector<8x128xf32>
    %1659 = vector.broadcast %92 : f32 to vector<8x128xf32>
    %1660 = arith.mulf %1659, %1566 : vector<8x128xf32>
    %1661 = arith.addf %1658, %1660 : vector<8x128xf32>
    %1662 = math.tanh %1655 : vector<8x128xf32>
    %cst_96 = arith.constant 5.000000e-01 : f32
    %1663 = vector.broadcast %cst_96 : f32 to vector<8x128xf32>
    %1664 = arith.mulf %1663, %1661 : vector<8x128xf32>
    %1665 = math.tanh %1664 : vector<8x128xf32>
    %cst_97 = arith.constant 5.000000e-01 : f32
    %1666 = vector.broadcast %cst_97 : f32 to vector<8x128xf32>
    %1667 = arith.mulf %1666, %1665 : vector<8x128xf32>
    %cst_98 = arith.constant 5.000000e-01 : f32
    %1668 = vector.broadcast %cst_98 : f32 to vector<8x128xf32>
    %1669 = arith.addf %1667, %1668 : vector<8x128xf32>
    %1670 = arith.mulf %1662, %1669 : vector<8x128xf32>
    %1671 = vector.broadcast %211 : f32 to vector<8x128xf32>
    %1672 = arith.mulf %1671, %1670 : vector<8x128xf32>
    %1673 = arith.addf %1623, %1672 : vector<8x128xf32>
    %1674 = vector.broadcast %12 : f32 to vector<8x128xf32>
    %1675 = arith.mulf %1674, %1568 : vector<8x128xf32>
    %1676 = vector.broadcast %152 : f32 to vector<8x128xf32>
    %1677 = arith.addf %1676, %1675 : vector<8x128xf32>
    %1678 = vector.broadcast %84 : f32 to vector<8x128xf32>
    %1679 = arith.mulf %1678, %1558 : vector<8x128xf32>
    %1680 = arith.addf %1677, %1679 : vector<8x128xf32>
    %1681 = vector.broadcast %21 : f32 to vector<8x128xf32>
    %1682 = arith.mulf %1681, %1568 : vector<8x128xf32>
    %1683 = vector.broadcast %155 : f32 to vector<8x128xf32>
    %1684 = arith.addf %1683, %1682 : vector<8x128xf32>
    %1685 = vector.broadcast %93 : f32 to vector<8x128xf32>
    %1686 = arith.mulf %1685, %1558 : vector<8x128xf32>
    %1687 = arith.addf %1684, %1686 : vector<8x128xf32>
    %1688 = vector.broadcast %13 : f32 to vector<8x128xf32>
    %1689 = arith.mulf %1688, %1570 : vector<8x128xf32>
    %1690 = arith.addf %1680, %1689 : vector<8x128xf32>
    %1691 = vector.broadcast %85 : f32 to vector<8x128xf32>
    %1692 = arith.mulf %1691, %1562 : vector<8x128xf32>
    %1693 = arith.addf %1690, %1692 : vector<8x128xf32>
    %1694 = vector.broadcast %22 : f32 to vector<8x128xf32>
    %1695 = arith.mulf %1694, %1570 : vector<8x128xf32>
    %1696 = arith.addf %1687, %1695 : vector<8x128xf32>
    %1697 = vector.broadcast %94 : f32 to vector<8x128xf32>
    %1698 = arith.mulf %1697, %1562 : vector<8x128xf32>
    %1699 = arith.addf %1696, %1698 : vector<8x128xf32>
    %1700 = vector.broadcast %14 : f32 to vector<8x128xf32>
    %1701 = arith.mulf %1700, %1572 : vector<8x128xf32>
    %1702 = arith.addf %1693, %1701 : vector<8x128xf32>
    %1703 = vector.broadcast %86 : f32 to vector<8x128xf32>
    %1704 = arith.mulf %1703, %1566 : vector<8x128xf32>
    %1705 = arith.addf %1702, %1704 : vector<8x128xf32>
    %1706 = vector.broadcast %23 : f32 to vector<8x128xf32>
    %1707 = arith.mulf %1706, %1572 : vector<8x128xf32>
    %1708 = arith.addf %1699, %1707 : vector<8x128xf32>
    %1709 = vector.broadcast %95 : f32 to vector<8x128xf32>
    %1710 = arith.mulf %1709, %1566 : vector<8x128xf32>
    %1711 = arith.addf %1708, %1710 : vector<8x128xf32>
    %1712 = math.tanh %1705 : vector<8x128xf32>
    %cst_99 = arith.constant 5.000000e-01 : f32
    %1713 = vector.broadcast %cst_99 : f32 to vector<8x128xf32>
    %1714 = arith.mulf %1713, %1711 : vector<8x128xf32>
    %1715 = math.tanh %1714 : vector<8x128xf32>
    %cst_100 = arith.constant 5.000000e-01 : f32
    %1716 = vector.broadcast %cst_100 : f32 to vector<8x128xf32>
    %1717 = arith.mulf %1716, %1715 : vector<8x128xf32>
    %cst_101 = arith.constant 5.000000e-01 : f32
    %1718 = vector.broadcast %cst_101 : f32 to vector<8x128xf32>
    %1719 = arith.addf %1717, %1718 : vector<8x128xf32>
    %1720 = arith.mulf %1712, %1719 : vector<8x128xf32>
    %1721 = vector.broadcast %212 : f32 to vector<8x128xf32>
    %1722 = arith.mulf %1721, %1720 : vector<8x128xf32>
    %1723 = arith.addf %1673, %1722 : vector<8x128xf32>
    %1724 = vector.broadcast %174 : f32 to vector<8x128xf32>
    %1725 = arith.mulf %1724, %1619 : vector<8x128xf32>
    %1726 = vector.broadcast %201 : f32 to vector<8x128xf32>
    %1727 = arith.addf %1726, %1725 : vector<8x128xf32>
    %1728 = vector.broadcast %175 : f32 to vector<8x128xf32>
    %1729 = arith.mulf %1728, %1670 : vector<8x128xf32>
    %1730 = arith.addf %1727, %1729 : vector<8x128xf32>
    %1731 = vector.broadcast %176 : f32 to vector<8x128xf32>
    %1732 = arith.mulf %1731, %1720 : vector<8x128xf32>
    %1733 = arith.addf %1730, %1732 : vector<8x128xf32>
    %1734 = arith.addf %1733, %1558 : vector<8x128xf32>
    %1735 = vector.broadcast %177 : f32 to vector<8x128xf32>
    %1736 = arith.mulf %1735, %1619 : vector<8x128xf32>
    %1737 = vector.broadcast %202 : f32 to vector<8x128xf32>
    %1738 = arith.addf %1737, %1736 : vector<8x128xf32>
    %1739 = vector.broadcast %178 : f32 to vector<8x128xf32>
    %1740 = arith.mulf %1739, %1670 : vector<8x128xf32>
    %1741 = arith.addf %1738, %1740 : vector<8x128xf32>
    %1742 = vector.broadcast %179 : f32 to vector<8x128xf32>
    %1743 = arith.mulf %1742, %1720 : vector<8x128xf32>
    %1744 = arith.addf %1741, %1743 : vector<8x128xf32>
    %1745 = arith.addf %1744, %1562 : vector<8x128xf32>
    %1746 = vector.broadcast %180 : f32 to vector<8x128xf32>
    %1747 = arith.mulf %1746, %1619 : vector<8x128xf32>
    %1748 = vector.broadcast %203 : f32 to vector<8x128xf32>
    %1749 = arith.addf %1748, %1747 : vector<8x128xf32>
    %1750 = vector.broadcast %181 : f32 to vector<8x128xf32>
    %1751 = arith.mulf %1750, %1670 : vector<8x128xf32>
    %1752 = arith.addf %1749, %1751 : vector<8x128xf32>
    %1753 = vector.broadcast %182 : f32 to vector<8x128xf32>
    %1754 = arith.mulf %1753, %1720 : vector<8x128xf32>
    %1755 = arith.addf %1752, %1754 : vector<8x128xf32>
    %1756 = arith.addf %1755, %1566 : vector<8x128xf32>
    %1757 = arith.select %227, %992, %1734 : vector<8x128xi1>, vector<8x128xf32>
    %c2_i32_102 = arith.constant 2 : i32
    %1758 = tpu.dynamic_rotate %1757 by %c2_i32_102 dim 1 : vector<8x128xf32>, i32 -> vector<8x128xf32>
    %1759 = arith.select %227, %1003, %1745 : vector<8x128xi1>, vector<8x128xf32>
    %c2_i32_103 = arith.constant 2 : i32
    %1760 = tpu.dynamic_rotate %1759 by %c2_i32_103 dim 1 : vector<8x128xf32>, i32 -> vector<8x128xf32>
    %1761 = arith.select %227, %1014, %1756 : vector<8x128xi1>, vector<8x128xf32>
    %c2_i32_104 = arith.constant 2 : i32
    %1762 = tpu.dynamic_rotate %1761 by %c2_i32_104 dim 1 : vector<8x128xf32>, i32 -> vector<8x128xf32>
    %1763 = vector.broadcast %24 : f32 to vector<8x128xf32>
    %1764 = arith.mulf %1763, %1758 : vector<8x128xf32>
    %1765 = vector.broadcast %156 : f32 to vector<8x128xf32>
    %1766 = arith.addf %1765, %1764 : vector<8x128xf32>
    %1767 = vector.broadcast %96 : f32 to vector<8x128xf32>
    %1768 = arith.mulf %1767, %1734 : vector<8x128xf32>
    %1769 = arith.addf %1766, %1768 : vector<8x128xf32>
    %1770 = vector.broadcast %33 : f32 to vector<8x128xf32>
    %1771 = arith.mulf %1770, %1758 : vector<8x128xf32>
    %1772 = vector.broadcast %159 : f32 to vector<8x128xf32>
    %1773 = arith.addf %1772, %1771 : vector<8x128xf32>
    %1774 = vector.broadcast %105 : f32 to vector<8x128xf32>
    %1775 = arith.mulf %1774, %1734 : vector<8x128xf32>
    %1776 = arith.addf %1773, %1775 : vector<8x128xf32>
    %1777 = vector.broadcast %25 : f32 to vector<8x128xf32>
    %1778 = arith.mulf %1777, %1760 : vector<8x128xf32>
    %1779 = arith.addf %1769, %1778 : vector<8x128xf32>
    %1780 = vector.broadcast %97 : f32 to vector<8x128xf32>
    %1781 = arith.mulf %1780, %1745 : vector<8x128xf32>
    %1782 = arith.addf %1779, %1781 : vector<8x128xf32>
    %1783 = vector.broadcast %34 : f32 to vector<8x128xf32>
    %1784 = arith.mulf %1783, %1760 : vector<8x128xf32>
    %1785 = arith.addf %1776, %1784 : vector<8x128xf32>
    %1786 = vector.broadcast %106 : f32 to vector<8x128xf32>
    %1787 = arith.mulf %1786, %1745 : vector<8x128xf32>
    %1788 = arith.addf %1785, %1787 : vector<8x128xf32>
    %1789 = vector.broadcast %26 : f32 to vector<8x128xf32>
    %1790 = arith.mulf %1789, %1762 : vector<8x128xf32>
    %1791 = arith.addf %1782, %1790 : vector<8x128xf32>
    %1792 = vector.broadcast %98 : f32 to vector<8x128xf32>
    %1793 = arith.mulf %1792, %1756 : vector<8x128xf32>
    %1794 = arith.addf %1791, %1793 : vector<8x128xf32>
    %1795 = vector.broadcast %35 : f32 to vector<8x128xf32>
    %1796 = arith.mulf %1795, %1762 : vector<8x128xf32>
    %1797 = arith.addf %1788, %1796 : vector<8x128xf32>
    %1798 = vector.broadcast %107 : f32 to vector<8x128xf32>
    %1799 = arith.mulf %1798, %1756 : vector<8x128xf32>
    %1800 = arith.addf %1797, %1799 : vector<8x128xf32>
    %1801 = math.tanh %1794 : vector<8x128xf32>
    %cst_105 = arith.constant 5.000000e-01 : f32
    %1802 = vector.broadcast %cst_105 : f32 to vector<8x128xf32>
    %1803 = arith.mulf %1802, %1800 : vector<8x128xf32>
    %1804 = math.tanh %1803 : vector<8x128xf32>
    %cst_106 = arith.constant 5.000000e-01 : f32
    %1805 = vector.broadcast %cst_106 : f32 to vector<8x128xf32>
    %1806 = arith.mulf %1805, %1804 : vector<8x128xf32>
    %cst_107 = arith.constant 5.000000e-01 : f32
    %1807 = vector.broadcast %cst_107 : f32 to vector<8x128xf32>
    %1808 = arith.addf %1806, %1807 : vector<8x128xf32>
    %1809 = arith.mulf %1801, %1808 : vector<8x128xf32>
    %1810 = vector.broadcast %213 : f32 to vector<8x128xf32>
    %1811 = arith.mulf %1810, %1809 : vector<8x128xf32>
    %1812 = arith.addf %1723, %1811 : vector<8x128xf32>
    %1813 = vector.broadcast %27 : f32 to vector<8x128xf32>
    %1814 = arith.mulf %1813, %1758 : vector<8x128xf32>
    %1815 = vector.broadcast %157 : f32 to vector<8x128xf32>
    %1816 = arith.addf %1815, %1814 : vector<8x128xf32>
    %1817 = vector.broadcast %99 : f32 to vector<8x128xf32>
    %1818 = arith.mulf %1817, %1734 : vector<8x128xf32>
    %1819 = arith.addf %1816, %1818 : vector<8x128xf32>
    %1820 = vector.broadcast %36 : f32 to vector<8x128xf32>
    %1821 = arith.mulf %1820, %1758 : vector<8x128xf32>
    %1822 = vector.broadcast %160 : f32 to vector<8x128xf32>
    %1823 = arith.addf %1822, %1821 : vector<8x128xf32>
    %1824 = vector.broadcast %108 : f32 to vector<8x128xf32>
    %1825 = arith.mulf %1824, %1734 : vector<8x128xf32>
    %1826 = arith.addf %1823, %1825 : vector<8x128xf32>
    %1827 = vector.broadcast %28 : f32 to vector<8x128xf32>
    %1828 = arith.mulf %1827, %1760 : vector<8x128xf32>
    %1829 = arith.addf %1819, %1828 : vector<8x128xf32>
    %1830 = vector.broadcast %100 : f32 to vector<8x128xf32>
    %1831 = arith.mulf %1830, %1745 : vector<8x128xf32>
    %1832 = arith.addf %1829, %1831 : vector<8x128xf32>
    %1833 = vector.broadcast %37 : f32 to vector<8x128xf32>
    %1834 = arith.mulf %1833, %1760 : vector<8x128xf32>
    %1835 = arith.addf %1826, %1834 : vector<8x128xf32>
    %1836 = vector.broadcast %109 : f32 to vector<8x128xf32>
    %1837 = arith.mulf %1836, %1745 : vector<8x128xf32>
    %1838 = arith.addf %1835, %1837 : vector<8x128xf32>
    %1839 = vector.broadcast %29 : f32 to vector<8x128xf32>
    %1840 = arith.mulf %1839, %1762 : vector<8x128xf32>
    %1841 = arith.addf %1832, %1840 : vector<8x128xf32>
    %1842 = vector.broadcast %101 : f32 to vector<8x128xf32>
    %1843 = arith.mulf %1842, %1756 : vector<8x128xf32>
    %1844 = arith.addf %1841, %1843 : vector<8x128xf32>
    %1845 = vector.broadcast %38 : f32 to vector<8x128xf32>
    %1846 = arith.mulf %1845, %1762 : vector<8x128xf32>
    %1847 = arith.addf %1838, %1846 : vector<8x128xf32>
    %1848 = vector.broadcast %110 : f32 to vector<8x128xf32>
    %1849 = arith.mulf %1848, %1756 : vector<8x128xf32>
    %1850 = arith.addf %1847, %1849 : vector<8x128xf32>
    %1851 = math.tanh %1844 : vector<8x128xf32>
    %cst_108 = arith.constant 5.000000e-01 : f32
    %1852 = vector.broadcast %cst_108 : f32 to vector<8x128xf32>
    %1853 = arith.mulf %1852, %1850 : vector<8x128xf32>
    %1854 = math.tanh %1853 : vector<8x128xf32>
    %cst_109 = arith.constant 5.000000e-01 : f32
    %1855 = vector.broadcast %cst_109 : f32 to vector<8x128xf32>
    %1856 = arith.mulf %1855, %1854 : vector<8x128xf32>
    %cst_110 = arith.constant 5.000000e-01 : f32
    %1857 = vector.broadcast %cst_110 : f32 to vector<8x128xf32>
    %1858 = arith.addf %1856, %1857 : vector<8x128xf32>
    %1859 = arith.mulf %1851, %1858 : vector<8x128xf32>
    %1860 = vector.broadcast %214 : f32 to vector<8x128xf32>
    %1861 = arith.mulf %1860, %1859 : vector<8x128xf32>
    %1862 = arith.addf %1812, %1861 : vector<8x128xf32>
    %1863 = vector.broadcast %30 : f32 to vector<8x128xf32>
    %1864 = arith.mulf %1863, %1758 : vector<8x128xf32>
    %1865 = vector.broadcast %158 : f32 to vector<8x128xf32>
    %1866 = arith.addf %1865, %1864 : vector<8x128xf32>
    %1867 = vector.broadcast %102 : f32 to vector<8x128xf32>
    %1868 = arith.mulf %1867, %1734 : vector<8x128xf32>
    %1869 = arith.addf %1866, %1868 : vector<8x128xf32>
    %1870 = vector.broadcast %39 : f32 to vector<8x128xf32>
    %1871 = arith.mulf %1870, %1758 : vector<8x128xf32>
    %1872 = vector.broadcast %161 : f32 to vector<8x128xf32>
    %1873 = arith.addf %1872, %1871 : vector<8x128xf32>
    %1874 = vector.broadcast %111 : f32 to vector<8x128xf32>
    %1875 = arith.mulf %1874, %1734 : vector<8x128xf32>
    %1876 = arith.addf %1873, %1875 : vector<8x128xf32>
    %1877 = vector.broadcast %31 : f32 to vector<8x128xf32>
    %1878 = arith.mulf %1877, %1760 : vector<8x128xf32>
    %1879 = arith.addf %1869, %1878 : vector<8x128xf32>
    %1880 = vector.broadcast %103 : f32 to vector<8x128xf32>
    %1881 = arith.mulf %1880, %1745 : vector<8x128xf32>
    %1882 = arith.addf %1879, %1881 : vector<8x128xf32>
    %1883 = vector.broadcast %40 : f32 to vector<8x128xf32>
    %1884 = arith.mulf %1883, %1760 : vector<8x128xf32>
    %1885 = arith.addf %1876, %1884 : vector<8x128xf32>
    %1886 = vector.broadcast %112 : f32 to vector<8x128xf32>
    %1887 = arith.mulf %1886, %1745 : vector<8x128xf32>
    %1888 = arith.addf %1885, %1887 : vector<8x128xf32>
    %1889 = vector.broadcast %32 : f32 to vector<8x128xf32>
    %1890 = arith.mulf %1889, %1762 : vector<8x128xf32>
    %1891 = arith.addf %1882, %1890 : vector<8x128xf32>
    %1892 = vector.broadcast %104 : f32 to vector<8x128xf32>
    %1893 = arith.mulf %1892, %1756 : vector<8x128xf32>
    %1894 = arith.addf %1891, %1893 : vector<8x128xf32>
    %1895 = vector.broadcast %41 : f32 to vector<8x128xf32>
    %1896 = arith.mulf %1895, %1762 : vector<8x128xf32>
    %1897 = arith.addf %1888, %1896 : vector<8x128xf32>
    %1898 = vector.broadcast %113 : f32 to vector<8x128xf32>
    %1899 = arith.mulf %1898, %1756 : vector<8x128xf32>
    %1900 = arith.addf %1897, %1899 : vector<8x128xf32>
    %1901 = math.tanh %1894 : vector<8x128xf32>
    %cst_111 = arith.constant 5.000000e-01 : f32
    %1902 = vector.broadcast %cst_111 : f32 to vector<8x128xf32>
    %1903 = arith.mulf %1902, %1900 : vector<8x128xf32>
    %1904 = math.tanh %1903 : vector<8x128xf32>
    %cst_112 = arith.constant 5.000000e-01 : f32
    %1905 = vector.broadcast %cst_112 : f32 to vector<8x128xf32>
    %1906 = arith.mulf %1905, %1904 : vector<8x128xf32>
    %cst_113 = arith.constant 5.000000e-01 : f32
    %1907 = vector.broadcast %cst_113 : f32 to vector<8x128xf32>
    %1908 = arith.addf %1906, %1907 : vector<8x128xf32>
    %1909 = arith.mulf %1901, %1908 : vector<8x128xf32>
    %1910 = vector.broadcast %215 : f32 to vector<8x128xf32>
    %1911 = arith.mulf %1910, %1909 : vector<8x128xf32>
    %1912 = arith.addf %1862, %1911 : vector<8x128xf32>
    %1913 = vector.broadcast %183 : f32 to vector<8x128xf32>
    %1914 = arith.mulf %1913, %1809 : vector<8x128xf32>
    %1915 = vector.broadcast %204 : f32 to vector<8x128xf32>
    %1916 = arith.addf %1915, %1914 : vector<8x128xf32>
    %1917 = vector.broadcast %184 : f32 to vector<8x128xf32>
    %1918 = arith.mulf %1917, %1859 : vector<8x128xf32>
    %1919 = arith.addf %1916, %1918 : vector<8x128xf32>
    %1920 = vector.broadcast %185 : f32 to vector<8x128xf32>
    %1921 = arith.mulf %1920, %1909 : vector<8x128xf32>
    %1922 = arith.addf %1919, %1921 : vector<8x128xf32>
    %1923 = arith.addf %1922, %1734 : vector<8x128xf32>
    %1924 = vector.broadcast %186 : f32 to vector<8x128xf32>
    %1925 = arith.mulf %1924, %1809 : vector<8x128xf32>
    %1926 = vector.broadcast %205 : f32 to vector<8x128xf32>
    %1927 = arith.addf %1926, %1925 : vector<8x128xf32>
    %1928 = vector.broadcast %187 : f32 to vector<8x128xf32>
    %1929 = arith.mulf %1928, %1859 : vector<8x128xf32>
    %1930 = arith.addf %1927, %1929 : vector<8x128xf32>
    %1931 = vector.broadcast %188 : f32 to vector<8x128xf32>
    %1932 = arith.mulf %1931, %1909 : vector<8x128xf32>
    %1933 = arith.addf %1930, %1932 : vector<8x128xf32>
    %1934 = arith.addf %1933, %1745 : vector<8x128xf32>
    %1935 = vector.broadcast %189 : f32 to vector<8x128xf32>
    %1936 = arith.mulf %1935, %1809 : vector<8x128xf32>
    %1937 = vector.broadcast %206 : f32 to vector<8x128xf32>
    %1938 = arith.addf %1937, %1936 : vector<8x128xf32>
    %1939 = vector.broadcast %190 : f32 to vector<8x128xf32>
    %1940 = arith.mulf %1939, %1859 : vector<8x128xf32>
    %1941 = arith.addf %1938, %1940 : vector<8x128xf32>
    %1942 = vector.broadcast %191 : f32 to vector<8x128xf32>
    %1943 = arith.mulf %1942, %1909 : vector<8x128xf32>
    %1944 = arith.addf %1941, %1943 : vector<8x128xf32>
    %1945 = arith.addf %1944, %1756 : vector<8x128xf32>
    %1946 = arith.select %225, %1181, %1923 : vector<8x128xi1>, vector<8x128xf32>
    %c1_i32_114 = arith.constant 1 : i32
    %1947 = tpu.dynamic_rotate %1946 by %c1_i32_114 dim 1 : vector<8x128xf32>, i32 -> vector<8x128xf32>
    %1948 = arith.select %225, %1192, %1934 : vector<8x128xi1>, vector<8x128xf32>
    %c1_i32_115 = arith.constant 1 : i32
    %1949 = tpu.dynamic_rotate %1948 by %c1_i32_115 dim 1 : vector<8x128xf32>, i32 -> vector<8x128xf32>
    %1950 = arith.select %225, %1203, %1945 : vector<8x128xi1>, vector<8x128xf32>
    %c1_i32_116 = arith.constant 1 : i32
    %1951 = tpu.dynamic_rotate %1950 by %c1_i32_116 dim 1 : vector<8x128xf32>, i32 -> vector<8x128xf32>
    %1952 = vector.broadcast %42 : f32 to vector<8x128xf32>
    %1953 = arith.mulf %1952, %1947 : vector<8x128xf32>
    %1954 = vector.broadcast %162 : f32 to vector<8x128xf32>
    %1955 = arith.addf %1954, %1953 : vector<8x128xf32>
    %1956 = vector.broadcast %114 : f32 to vector<8x128xf32>
    %1957 = arith.mulf %1956, %1923 : vector<8x128xf32>
    %1958 = arith.addf %1955, %1957 : vector<8x128xf32>
    %1959 = vector.broadcast %51 : f32 to vector<8x128xf32>
    %1960 = arith.mulf %1959, %1947 : vector<8x128xf32>
    %1961 = vector.broadcast %165 : f32 to vector<8x128xf32>
    %1962 = arith.addf %1961, %1960 : vector<8x128xf32>
    %1963 = vector.broadcast %123 : f32 to vector<8x128xf32>
    %1964 = arith.mulf %1963, %1923 : vector<8x128xf32>
    %1965 = arith.addf %1962, %1964 : vector<8x128xf32>
    %1966 = vector.broadcast %43 : f32 to vector<8x128xf32>
    %1967 = arith.mulf %1966, %1949 : vector<8x128xf32>
    %1968 = arith.addf %1958, %1967 : vector<8x128xf32>
    %1969 = vector.broadcast %115 : f32 to vector<8x128xf32>
    %1970 = arith.mulf %1969, %1934 : vector<8x128xf32>
    %1971 = arith.addf %1968, %1970 : vector<8x128xf32>
    %1972 = vector.broadcast %52 : f32 to vector<8x128xf32>
    %1973 = arith.mulf %1972, %1949 : vector<8x128xf32>
    %1974 = arith.addf %1965, %1973 : vector<8x128xf32>
    %1975 = vector.broadcast %124 : f32 to vector<8x128xf32>
    %1976 = arith.mulf %1975, %1934 : vector<8x128xf32>
    %1977 = arith.addf %1974, %1976 : vector<8x128xf32>
    %1978 = vector.broadcast %44 : f32 to vector<8x128xf32>
    %1979 = arith.mulf %1978, %1951 : vector<8x128xf32>
    %1980 = arith.addf %1971, %1979 : vector<8x128xf32>
    %1981 = vector.broadcast %116 : f32 to vector<8x128xf32>
    %1982 = arith.mulf %1981, %1945 : vector<8x128xf32>
    %1983 = arith.addf %1980, %1982 : vector<8x128xf32>
    %1984 = vector.broadcast %53 : f32 to vector<8x128xf32>
    %1985 = arith.mulf %1984, %1951 : vector<8x128xf32>
    %1986 = arith.addf %1977, %1985 : vector<8x128xf32>
    %1987 = vector.broadcast %125 : f32 to vector<8x128xf32>
    %1988 = arith.mulf %1987, %1945 : vector<8x128xf32>
    %1989 = arith.addf %1986, %1988 : vector<8x128xf32>
    %1990 = math.tanh %1983 : vector<8x128xf32>
    %cst_117 = arith.constant 5.000000e-01 : f32
    %1991 = vector.broadcast %cst_117 : f32 to vector<8x128xf32>
    %1992 = arith.mulf %1991, %1989 : vector<8x128xf32>
    %1993 = math.tanh %1992 : vector<8x128xf32>
    %cst_118 = arith.constant 5.000000e-01 : f32
    %1994 = vector.broadcast %cst_118 : f32 to vector<8x128xf32>
    %1995 = arith.mulf %1994, %1993 : vector<8x128xf32>
    %cst_119 = arith.constant 5.000000e-01 : f32
    %1996 = vector.broadcast %cst_119 : f32 to vector<8x128xf32>
    %1997 = arith.addf %1995, %1996 : vector<8x128xf32>
    %1998 = arith.mulf %1990, %1997 : vector<8x128xf32>
    %1999 = vector.broadcast %216 : f32 to vector<8x128xf32>
    %2000 = arith.mulf %1999, %1998 : vector<8x128xf32>
    %2001 = arith.addf %1912, %2000 : vector<8x128xf32>
    %2002 = vector.broadcast %45 : f32 to vector<8x128xf32>
    %2003 = arith.mulf %2002, %1947 : vector<8x128xf32>
    %2004 = vector.broadcast %163 : f32 to vector<8x128xf32>
    %2005 = arith.addf %2004, %2003 : vector<8x128xf32>
    %2006 = vector.broadcast %117 : f32 to vector<8x128xf32>
    %2007 = arith.mulf %2006, %1923 : vector<8x128xf32>
    %2008 = arith.addf %2005, %2007 : vector<8x128xf32>
    %2009 = vector.broadcast %54 : f32 to vector<8x128xf32>
    %2010 = arith.mulf %2009, %1947 : vector<8x128xf32>
    %2011 = vector.broadcast %166 : f32 to vector<8x128xf32>
    %2012 = arith.addf %2011, %2010 : vector<8x128xf32>
    %2013 = vector.broadcast %126 : f32 to vector<8x128xf32>
    %2014 = arith.mulf %2013, %1923 : vector<8x128xf32>
    %2015 = arith.addf %2012, %2014 : vector<8x128xf32>
    %2016 = vector.broadcast %46 : f32 to vector<8x128xf32>
    %2017 = arith.mulf %2016, %1949 : vector<8x128xf32>
    %2018 = arith.addf %2008, %2017 : vector<8x128xf32>
    %2019 = vector.broadcast %118 : f32 to vector<8x128xf32>
    %2020 = arith.mulf %2019, %1934 : vector<8x128xf32>
    %2021 = arith.addf %2018, %2020 : vector<8x128xf32>
    %2022 = vector.broadcast %55 : f32 to vector<8x128xf32>
    %2023 = arith.mulf %2022, %1949 : vector<8x128xf32>
    %2024 = arith.addf %2015, %2023 : vector<8x128xf32>
    %2025 = vector.broadcast %127 : f32 to vector<8x128xf32>
    %2026 = arith.mulf %2025, %1934 : vector<8x128xf32>
    %2027 = arith.addf %2024, %2026 : vector<8x128xf32>
    %2028 = vector.broadcast %47 : f32 to vector<8x128xf32>
    %2029 = arith.mulf %2028, %1951 : vector<8x128xf32>
    %2030 = arith.addf %2021, %2029 : vector<8x128xf32>
    %2031 = vector.broadcast %119 : f32 to vector<8x128xf32>
    %2032 = arith.mulf %2031, %1945 : vector<8x128xf32>
    %2033 = arith.addf %2030, %2032 : vector<8x128xf32>
    %2034 = vector.broadcast %56 : f32 to vector<8x128xf32>
    %2035 = arith.mulf %2034, %1951 : vector<8x128xf32>
    %2036 = arith.addf %2027, %2035 : vector<8x128xf32>
    %2037 = vector.broadcast %128 : f32 to vector<8x128xf32>
    %2038 = arith.mulf %2037, %1945 : vector<8x128xf32>
    %2039 = arith.addf %2036, %2038 : vector<8x128xf32>
    %2040 = math.tanh %2033 : vector<8x128xf32>
    %cst_120 = arith.constant 5.000000e-01 : f32
    %2041 = vector.broadcast %cst_120 : f32 to vector<8x128xf32>
    %2042 = arith.mulf %2041, %2039 : vector<8x128xf32>
    %2043 = math.tanh %2042 : vector<8x128xf32>
    %cst_121 = arith.constant 5.000000e-01 : f32
    %2044 = vector.broadcast %cst_121 : f32 to vector<8x128xf32>
    %2045 = arith.mulf %2044, %2043 : vector<8x128xf32>
    %cst_122 = arith.constant 5.000000e-01 : f32
    %2046 = vector.broadcast %cst_122 : f32 to vector<8x128xf32>
    %2047 = arith.addf %2045, %2046 : vector<8x128xf32>
    %2048 = arith.mulf %2040, %2047 : vector<8x128xf32>
    %2049 = vector.broadcast %217 : f32 to vector<8x128xf32>
    %2050 = arith.mulf %2049, %2048 : vector<8x128xf32>
    %2051 = arith.addf %2001, %2050 : vector<8x128xf32>
    %2052 = vector.broadcast %48 : f32 to vector<8x128xf32>
    %2053 = arith.mulf %2052, %1947 : vector<8x128xf32>
    %2054 = vector.broadcast %164 : f32 to vector<8x128xf32>
    %2055 = arith.addf %2054, %2053 : vector<8x128xf32>
    %2056 = vector.broadcast %120 : f32 to vector<8x128xf32>
    %2057 = arith.mulf %2056, %1923 : vector<8x128xf32>
    %2058 = arith.addf %2055, %2057 : vector<8x128xf32>
    %2059 = vector.broadcast %57 : f32 to vector<8x128xf32>
    %2060 = arith.mulf %2059, %1947 : vector<8x128xf32>
    %2061 = vector.broadcast %167 : f32 to vector<8x128xf32>
    %2062 = arith.addf %2061, %2060 : vector<8x128xf32>
    %2063 = vector.broadcast %129 : f32 to vector<8x128xf32>
    %2064 = arith.mulf %2063, %1923 : vector<8x128xf32>
    %2065 = arith.addf %2062, %2064 : vector<8x128xf32>
    %2066 = vector.broadcast %49 : f32 to vector<8x128xf32>
    %2067 = arith.mulf %2066, %1949 : vector<8x128xf32>
    %2068 = arith.addf %2058, %2067 : vector<8x128xf32>
    %2069 = vector.broadcast %121 : f32 to vector<8x128xf32>
    %2070 = arith.mulf %2069, %1934 : vector<8x128xf32>
    %2071 = arith.addf %2068, %2070 : vector<8x128xf32>
    %2072 = vector.broadcast %58 : f32 to vector<8x128xf32>
    %2073 = arith.mulf %2072, %1949 : vector<8x128xf32>
    %2074 = arith.addf %2065, %2073 : vector<8x128xf32>
    %2075 = vector.broadcast %130 : f32 to vector<8x128xf32>
    %2076 = arith.mulf %2075, %1934 : vector<8x128xf32>
    %2077 = arith.addf %2074, %2076 : vector<8x128xf32>
    %2078 = vector.broadcast %50 : f32 to vector<8x128xf32>
    %2079 = arith.mulf %2078, %1951 : vector<8x128xf32>
    %2080 = arith.addf %2071, %2079 : vector<8x128xf32>
    %2081 = vector.broadcast %122 : f32 to vector<8x128xf32>
    %2082 = arith.mulf %2081, %1945 : vector<8x128xf32>
    %2083 = arith.addf %2080, %2082 : vector<8x128xf32>
    %2084 = vector.broadcast %59 : f32 to vector<8x128xf32>
    %2085 = arith.mulf %2084, %1951 : vector<8x128xf32>
    %2086 = arith.addf %2077, %2085 : vector<8x128xf32>
    %2087 = vector.broadcast %131 : f32 to vector<8x128xf32>
    %2088 = arith.mulf %2087, %1945 : vector<8x128xf32>
    %2089 = arith.addf %2086, %2088 : vector<8x128xf32>
    %2090 = math.tanh %2083 : vector<8x128xf32>
    %cst_123 = arith.constant 5.000000e-01 : f32
    %2091 = vector.broadcast %cst_123 : f32 to vector<8x128xf32>
    %2092 = arith.mulf %2091, %2089 : vector<8x128xf32>
    %2093 = math.tanh %2092 : vector<8x128xf32>
    %cst_124 = arith.constant 5.000000e-01 : f32
    %2094 = vector.broadcast %cst_124 : f32 to vector<8x128xf32>
    %2095 = arith.mulf %2094, %2093 : vector<8x128xf32>
    %cst_125 = arith.constant 5.000000e-01 : f32
    %2096 = vector.broadcast %cst_125 : f32 to vector<8x128xf32>
    %2097 = arith.addf %2095, %2096 : vector<8x128xf32>
    %2098 = arith.mulf %2090, %2097 : vector<8x128xf32>
    %2099 = vector.broadcast %218 : f32 to vector<8x128xf32>
    %2100 = arith.mulf %2099, %2098 : vector<8x128xf32>
    %2101 = arith.addf %2051, %2100 : vector<8x128xf32>
    %2102 = vector.broadcast %192 : f32 to vector<8x128xf32>
    %2103 = arith.mulf %2102, %1998 : vector<8x128xf32>
    %2104 = vector.broadcast %207 : f32 to vector<8x128xf32>
    %2105 = arith.addf %2104, %2103 : vector<8x128xf32>
    %2106 = vector.broadcast %193 : f32 to vector<8x128xf32>
    %2107 = arith.mulf %2106, %2048 : vector<8x128xf32>
    %2108 = arith.addf %2105, %2107 : vector<8x128xf32>
    %2109 = vector.broadcast %194 : f32 to vector<8x128xf32>
    %2110 = arith.mulf %2109, %2098 : vector<8x128xf32>
    %2111 = arith.addf %2108, %2110 : vector<8x128xf32>
    %2112 = arith.addf %2111, %1923 : vector<8x128xf32>
    %2113 = vector.broadcast %195 : f32 to vector<8x128xf32>
    %2114 = arith.mulf %2113, %1998 : vector<8x128xf32>
    %2115 = vector.broadcast %208 : f32 to vector<8x128xf32>
    %2116 = arith.addf %2115, %2114 : vector<8x128xf32>
    %2117 = vector.broadcast %196 : f32 to vector<8x128xf32>
    %2118 = arith.mulf %2117, %2048 : vector<8x128xf32>
    %2119 = arith.addf %2116, %2118 : vector<8x128xf32>
    %2120 = vector.broadcast %197 : f32 to vector<8x128xf32>
    %2121 = arith.mulf %2120, %2098 : vector<8x128xf32>
    %2122 = arith.addf %2119, %2121 : vector<8x128xf32>
    %2123 = arith.addf %2122, %1934 : vector<8x128xf32>
    %2124 = vector.broadcast %198 : f32 to vector<8x128xf32>
    %2125 = arith.mulf %2124, %1998 : vector<8x128xf32>
    %2126 = vector.broadcast %209 : f32 to vector<8x128xf32>
    %2127 = arith.addf %2126, %2125 : vector<8x128xf32>
    %2128 = vector.broadcast %199 : f32 to vector<8x128xf32>
    %2129 = arith.mulf %2128, %2048 : vector<8x128xf32>
    %2130 = arith.addf %2127, %2129 : vector<8x128xf32>
    %2131 = vector.broadcast %200 : f32 to vector<8x128xf32>
    %2132 = arith.mulf %2131, %2098 : vector<8x128xf32>
    %2133 = arith.addf %2130, %2132 : vector<8x128xf32>
    %2134 = arith.addf %2133, %1945 : vector<8x128xf32>
    %2135 = arith.select %227, %1370, %2112 : vector<8x128xi1>, vector<8x128xf32>
    %c2_i32_126 = arith.constant 2 : i32
    %2136 = tpu.dynamic_rotate %2135 by %c2_i32_126 dim 1 : vector<8x128xf32>, i32 -> vector<8x128xf32>
    %2137 = arith.select %227, %1381, %2123 : vector<8x128xi1>, vector<8x128xf32>
    %c2_i32_127 = arith.constant 2 : i32
    %2138 = tpu.dynamic_rotate %2137 by %c2_i32_127 dim 1 : vector<8x128xf32>, i32 -> vector<8x128xf32>
    %2139 = arith.select %227, %1392, %2134 : vector<8x128xi1>, vector<8x128xf32>
    %c2_i32_128 = arith.constant 2 : i32
    %2140 = tpu.dynamic_rotate %2139 by %c2_i32_128 dim 1 : vector<8x128xf32>, i32 -> vector<8x128xf32>
    %2141 = vector.broadcast %60 : f32 to vector<8x128xf32>
    %2142 = arith.mulf %2141, %2136 : vector<8x128xf32>
    %2143 = vector.broadcast %168 : f32 to vector<8x128xf32>
    %2144 = arith.addf %2143, %2142 : vector<8x128xf32>
    %2145 = vector.broadcast %132 : f32 to vector<8x128xf32>
    %2146 = arith.mulf %2145, %2112 : vector<8x128xf32>
    %2147 = arith.addf %2144, %2146 : vector<8x128xf32>
    %2148 = vector.broadcast %69 : f32 to vector<8x128xf32>
    %2149 = arith.mulf %2148, %2136 : vector<8x128xf32>
    %2150 = vector.broadcast %171 : f32 to vector<8x128xf32>
    %2151 = arith.addf %2150, %2149 : vector<8x128xf32>
    %2152 = vector.broadcast %141 : f32 to vector<8x128xf32>
    %2153 = arith.mulf %2152, %2112 : vector<8x128xf32>
    %2154 = arith.addf %2151, %2153 : vector<8x128xf32>
    %2155 = vector.broadcast %61 : f32 to vector<8x128xf32>
    %2156 = arith.mulf %2155, %2138 : vector<8x128xf32>
    %2157 = arith.addf %2147, %2156 : vector<8x128xf32>
    %2158 = vector.broadcast %133 : f32 to vector<8x128xf32>
    %2159 = arith.mulf %2158, %2123 : vector<8x128xf32>
    %2160 = arith.addf %2157, %2159 : vector<8x128xf32>
    %2161 = vector.broadcast %70 : f32 to vector<8x128xf32>
    %2162 = arith.mulf %2161, %2138 : vector<8x128xf32>
    %2163 = arith.addf %2154, %2162 : vector<8x128xf32>
    %2164 = vector.broadcast %142 : f32 to vector<8x128xf32>
    %2165 = arith.mulf %2164, %2123 : vector<8x128xf32>
    %2166 = arith.addf %2163, %2165 : vector<8x128xf32>
    %2167 = vector.broadcast %62 : f32 to vector<8x128xf32>
    %2168 = arith.mulf %2167, %2140 : vector<8x128xf32>
    %2169 = arith.addf %2160, %2168 : vector<8x128xf32>
    %2170 = vector.broadcast %134 : f32 to vector<8x128xf32>
    %2171 = arith.mulf %2170, %2134 : vector<8x128xf32>
    %2172 = arith.addf %2169, %2171 : vector<8x128xf32>
    %2173 = vector.broadcast %71 : f32 to vector<8x128xf32>
    %2174 = arith.mulf %2173, %2140 : vector<8x128xf32>
    %2175 = arith.addf %2166, %2174 : vector<8x128xf32>
    %2176 = vector.broadcast %143 : f32 to vector<8x128xf32>
    %2177 = arith.mulf %2176, %2134 : vector<8x128xf32>
    %2178 = arith.addf %2175, %2177 : vector<8x128xf32>
    %2179 = math.tanh %2172 : vector<8x128xf32>
    %cst_129 = arith.constant 5.000000e-01 : f32
    %2180 = vector.broadcast %cst_129 : f32 to vector<8x128xf32>
    %2181 = arith.mulf %2180, %2178 : vector<8x128xf32>
    %2182 = math.tanh %2181 : vector<8x128xf32>
    %cst_130 = arith.constant 5.000000e-01 : f32
    %2183 = vector.broadcast %cst_130 : f32 to vector<8x128xf32>
    %2184 = arith.mulf %2183, %2182 : vector<8x128xf32>
    %cst_131 = arith.constant 5.000000e-01 : f32
    %2185 = vector.broadcast %cst_131 : f32 to vector<8x128xf32>
    %2186 = arith.addf %2184, %2185 : vector<8x128xf32>
    %2187 = arith.mulf %2179, %2186 : vector<8x128xf32>
    %2188 = vector.broadcast %219 : f32 to vector<8x128xf32>
    %2189 = arith.mulf %2188, %2187 : vector<8x128xf32>
    %2190 = arith.addf %2101, %2189 : vector<8x128xf32>
    %2191 = vector.broadcast %63 : f32 to vector<8x128xf32>
    %2192 = arith.mulf %2191, %2136 : vector<8x128xf32>
    %2193 = vector.broadcast %169 : f32 to vector<8x128xf32>
    %2194 = arith.addf %2193, %2192 : vector<8x128xf32>
    %2195 = vector.broadcast %135 : f32 to vector<8x128xf32>
    %2196 = arith.mulf %2195, %2112 : vector<8x128xf32>
    %2197 = arith.addf %2194, %2196 : vector<8x128xf32>
    %2198 = vector.broadcast %72 : f32 to vector<8x128xf32>
    %2199 = arith.mulf %2198, %2136 : vector<8x128xf32>
    %2200 = vector.broadcast %172 : f32 to vector<8x128xf32>
    %2201 = arith.addf %2200, %2199 : vector<8x128xf32>
    %2202 = vector.broadcast %144 : f32 to vector<8x128xf32>
    %2203 = arith.mulf %2202, %2112 : vector<8x128xf32>
    %2204 = arith.addf %2201, %2203 : vector<8x128xf32>
    %2205 = vector.broadcast %64 : f32 to vector<8x128xf32>
    %2206 = arith.mulf %2205, %2138 : vector<8x128xf32>
    %2207 = arith.addf %2197, %2206 : vector<8x128xf32>
    %2208 = vector.broadcast %136 : f32 to vector<8x128xf32>
    %2209 = arith.mulf %2208, %2123 : vector<8x128xf32>
    %2210 = arith.addf %2207, %2209 : vector<8x128xf32>
    %2211 = vector.broadcast %73 : f32 to vector<8x128xf32>
    %2212 = arith.mulf %2211, %2138 : vector<8x128xf32>
    %2213 = arith.addf %2204, %2212 : vector<8x128xf32>
    %2214 = vector.broadcast %145 : f32 to vector<8x128xf32>
    %2215 = arith.mulf %2214, %2123 : vector<8x128xf32>
    %2216 = arith.addf %2213, %2215 : vector<8x128xf32>
    %2217 = vector.broadcast %65 : f32 to vector<8x128xf32>
    %2218 = arith.mulf %2217, %2140 : vector<8x128xf32>
    %2219 = arith.addf %2210, %2218 : vector<8x128xf32>
    %2220 = vector.broadcast %137 : f32 to vector<8x128xf32>
    %2221 = arith.mulf %2220, %2134 : vector<8x128xf32>
    %2222 = arith.addf %2219, %2221 : vector<8x128xf32>
    %2223 = vector.broadcast %74 : f32 to vector<8x128xf32>
    %2224 = arith.mulf %2223, %2140 : vector<8x128xf32>
    %2225 = arith.addf %2216, %2224 : vector<8x128xf32>
    %2226 = vector.broadcast %146 : f32 to vector<8x128xf32>
    %2227 = arith.mulf %2226, %2134 : vector<8x128xf32>
    %2228 = arith.addf %2225, %2227 : vector<8x128xf32>
    %2229 = math.tanh %2222 : vector<8x128xf32>
    %cst_132 = arith.constant 5.000000e-01 : f32
    %2230 = vector.broadcast %cst_132 : f32 to vector<8x128xf32>
    %2231 = arith.mulf %2230, %2228 : vector<8x128xf32>
    %2232 = math.tanh %2231 : vector<8x128xf32>
    %cst_133 = arith.constant 5.000000e-01 : f32
    %2233 = vector.broadcast %cst_133 : f32 to vector<8x128xf32>
    %2234 = arith.mulf %2233, %2232 : vector<8x128xf32>
    %cst_134 = arith.constant 5.000000e-01 : f32
    %2235 = vector.broadcast %cst_134 : f32 to vector<8x128xf32>
    %2236 = arith.addf %2234, %2235 : vector<8x128xf32>
    %2237 = arith.mulf %2229, %2236 : vector<8x128xf32>
    %2238 = vector.broadcast %220 : f32 to vector<8x128xf32>
    %2239 = arith.mulf %2238, %2237 : vector<8x128xf32>
    %2240 = arith.addf %2190, %2239 : vector<8x128xf32>
    %2241 = vector.broadcast %66 : f32 to vector<8x128xf32>
    %2242 = arith.mulf %2241, %2136 : vector<8x128xf32>
    %2243 = vector.broadcast %170 : f32 to vector<8x128xf32>
    %2244 = arith.addf %2243, %2242 : vector<8x128xf32>
    %2245 = vector.broadcast %138 : f32 to vector<8x128xf32>
    %2246 = arith.mulf %2245, %2112 : vector<8x128xf32>
    %2247 = arith.addf %2244, %2246 : vector<8x128xf32>
    %2248 = vector.broadcast %75 : f32 to vector<8x128xf32>
    %2249 = arith.mulf %2248, %2136 : vector<8x128xf32>
    %2250 = vector.broadcast %173 : f32 to vector<8x128xf32>
    %2251 = arith.addf %2250, %2249 : vector<8x128xf32>
    %2252 = vector.broadcast %147 : f32 to vector<8x128xf32>
    %2253 = arith.mulf %2252, %2112 : vector<8x128xf32>
    %2254 = arith.addf %2251, %2253 : vector<8x128xf32>
    %2255 = vector.broadcast %67 : f32 to vector<8x128xf32>
    %2256 = arith.mulf %2255, %2138 : vector<8x128xf32>
    %2257 = arith.addf %2247, %2256 : vector<8x128xf32>
    %2258 = vector.broadcast %139 : f32 to vector<8x128xf32>
    %2259 = arith.mulf %2258, %2123 : vector<8x128xf32>
    %2260 = arith.addf %2257, %2259 : vector<8x128xf32>
    %2261 = vector.broadcast %76 : f32 to vector<8x128xf32>
    %2262 = arith.mulf %2261, %2138 : vector<8x128xf32>
    %2263 = arith.addf %2254, %2262 : vector<8x128xf32>
    %2264 = vector.broadcast %148 : f32 to vector<8x128xf32>
    %2265 = arith.mulf %2264, %2123 : vector<8x128xf32>
    %2266 = arith.addf %2263, %2265 : vector<8x128xf32>
    %2267 = vector.broadcast %68 : f32 to vector<8x128xf32>
    %2268 = arith.mulf %2267, %2140 : vector<8x128xf32>
    %2269 = arith.addf %2260, %2268 : vector<8x128xf32>
    %2270 = vector.broadcast %140 : f32 to vector<8x128xf32>
    %2271 = arith.mulf %2270, %2134 : vector<8x128xf32>
    %2272 = arith.addf %2269, %2271 : vector<8x128xf32>
    %2273 = vector.broadcast %77 : f32 to vector<8x128xf32>
    %2274 = arith.mulf %2273, %2140 : vector<8x128xf32>
    %2275 = arith.addf %2266, %2274 : vector<8x128xf32>
    %2276 = vector.broadcast %149 : f32 to vector<8x128xf32>
    %2277 = arith.mulf %2276, %2134 : vector<8x128xf32>
    %2278 = arith.addf %2275, %2277 : vector<8x128xf32>
    %2279 = math.tanh %2272 : vector<8x128xf32>
    %cst_135 = arith.constant 5.000000e-01 : f32
    %2280 = vector.broadcast %cst_135 : f32 to vector<8x128xf32>
    %2281 = arith.mulf %2280, %2278 : vector<8x128xf32>
    %2282 = math.tanh %2281 : vector<8x128xf32>
    %cst_136 = arith.constant 5.000000e-01 : f32
    %2283 = vector.broadcast %cst_136 : f32 to vector<8x128xf32>
    %2284 = arith.mulf %2283, %2282 : vector<8x128xf32>
    %cst_137 = arith.constant 5.000000e-01 : f32
    %2285 = vector.broadcast %cst_137 : f32 to vector<8x128xf32>
    %2286 = arith.addf %2284, %2285 : vector<8x128xf32>
    %2287 = arith.mulf %2279, %2286 : vector<8x128xf32>
    %2288 = vector.broadcast %221 : f32 to vector<8x128xf32>
    %2289 = arith.mulf %2288, %2287 : vector<8x128xf32>
    %2290 = arith.addf %2240, %2289 : vector<8x128xf32>
    %c0_138 = arith.constant 0 : index
    %2291 = arith.index_cast %1552 : i32 to index
    %2292 = vector.load %arg5[%c0_138, %2291] : memref<8x256xf32, #tpu.memory_space<vmem>>, vector<8x128xf32>
    tpu.vector_store %arg5[%c0_138, %2291], %2290 {strides = array<i32>} : memref<8x256xf32, #tpu.memory_space<vmem>>, vector<8x128xf32>,
    %c2_i32_139 = arith.constant 2 : i32
    return
  }
  func.func @transform_0(%arg0: i32, %arg1: i32) -> i32 {
    %c0_i32 = arith.constant 0 : i32
    %c0_i32_0 = arith.constant 0 : i32
    return %c0_i32 : i32
  }
  func.func @transform_1(%arg0: i32, %arg1: i32) -> (i32, i32) {
    %c0_i32 = arith.constant 0 : i32
    return %arg0, %arg1 : i32, i32
  }
  func.func @transform_2(%arg0: i32, %arg1: i32) -> (i32, i32) {
    %c2_i32 = arith.constant 2 : i32
    %0 = arith.muli %arg1, %c2_i32 : i32
    %c1_i32 = arith.constant 1 : i32
    %1 = arith.subi %0, %c1_i32 : i32
    %c0_i32 = arith.constant 0 : i32
    %2 = arith.maxsi %1, %c0_i32 : i32
    %c0_i32_0 = arith.constant 0 : i32
    return %arg0, %2 : i32, i32
  }
  func.func @transform_3(%arg0: i32, %arg1: i32) -> (i32, i32) {
    %c0_i32 = arith.constant 0 : i32
    return %arg0, %arg1 : i32, i32
  }
}

</mosaic_0001>

<llo_original>
// kernel: wavenet_forward.1
$region0: #{wavenet_forward.1}
  #allocation0 [shape = 'u32[]', space=smem, size = 0x4, offset = 0x4, fixed_abs, tag = 'smem constant byte address 0x4 - core index']
  #allocation1 [shape = 'u32[144,128]{1,0:T(1,128)}', space=vmem, size = 0x12000, scoped, tag = 'internal scratch']
  %s0 = inlined_call_operand.vmem [shape: f32[235], index: 0, kind: input, shape index: {}]
  %s1 = inlined_call_operand.vmem [shape: f32[8,768], index: 1, kind: input, shape index: {}, may-alias: {1,2}]
  %s2 = inlined_call_operand.vmem [shape: f32[8,768], index: 2, kind: input, shape index: {}, may-alias: {1,2}]
  %s3 = inlined_call_operand.vmem [shape: f32[8,768], index: 3, kind: output, shape index: {}]
  %s4 = sld [smem:[#allocation0]]
  $region49: #{wavenet_forward.1} parent=0
    _
  %s6 = ssub.s32 1, %s4
  %s7 = scalar_select 0, %s6, %s4
  $region1: #{wavenet_forward.1} parent=0
    #allocation2 [shape = 'u8[1024]{0}', space=smem, size = 0x400, scoped, tag = 'input window, operand 0, single buffered']
    #allocation3 [shape = 's32[2]{0}', space=sflag, size = 0x8, scoped, tag = 'scoped memory for wavenet_forward.1']
    %8 = vsyncpa [#allocation3], 0
    loop: start=0, step=1, limit=5
    $region2: #{wavenet_forward.1} parent=1 // loop_pre_header
      _
    $region3: #{wavenet_forward.1} parent=1 // loop_header
      %s10 = sphi 0, %s14
      %p11 = scmp.ge.s32.totalorder %s10, 5
      %s17 = sphi 0, %s29
      %s18 = sphi 0, %s25
      %s19 = sphi 0, %s17
      %s20 = sphi 0, %s18
      %s21 = sphi 0, %s19
      %s22 = sphi 0, %s20
      %s30 = sphi 0, %s30
      %s32 = sphi 0, %s30
      %s33 = sphi 0, %s32
      %s47 = sphi 0, %s33
      %s55 = sphi 0, %s57
      %s58 = sphi 0, %s55
      %s59 = sphi 0, %s58
      %s75 = sphi 0, %s59
      %s91 = sphi 0, %s93
      %s94 = sphi 0, %s91
      %s95 = sphi 0, %s94
      %s111 = sphi 0, %s95
      %s119 = sphi 0, %s121
      %s122 = sphi 0, %s119
      %s123 = sphi 0, %s122
      %s139 = sphi 0, %s123
    $region4: #{wavenet_forward.1} parent=1 // loop_header_branch
      %13 = sbr.rel (%p11) target = $region8
    $region5: #{wavenet_forward.1} parent=1 // loop_body
      %s15 = ssub.s32 %s10, 1
      %s16 = ssub.s32 %s10, 2
      %s23 = sadd.s32 1, %s18
      %p24 = scmp.ge.s32.totalorder %s23, 3
      %s25 = scalar_select %p24, 0, %s23
      %s26 = sadd.s32 1, %s17
      %s27 = scalar_select %p24, %s26, %s17
      %p28 = scmp.ge.s32.totalorder %s27, 1
      %s29 = scalar_select %p28, 0, %s27
      %s31 = sadd.s32 %s30, 1
      %p34 = scmp.eq.s32.totalorder %s10, 2
      %p35 = scmp.ne.s32.totalorder %s30, %s32
      %p36 = scmp.eq.s32.totalorder %s10, 0
      %p37 = por %p35, %p36
      %p38 = scmp.ne.s32.totalorder %s30, %s32
      %p39 = scmp.eq.s32.totalorder %s15, 2
      %p40 = por %p38, %p39
      %p41 = scmp.ne.s32.totalorder %s32, %s33
      %p42 = scmp.eq.s32.totalorder %s15, 0
      %p43 = por %p41, %p42
      %p44 = scmp.ne.s32.totalorder %s32, %s33
      %p45 = scmp.eq.s32.totalorder %s16, 2
      %p46 = por %p44, %p45
      %p48 = scmp.ne.s32.totalorder %s33, %s47
      %p49 = scmp.eq.s32.totalorder %s16, 0
      %p50 = por %p48, %p49
      %s51 = ssub.s32 %s17, %s29
      %s52 = ssub.s32 %s18, %s25
      %s53 = sor.u32 %s51, %s52
      %p54 = scmp.eq.s32.totalorder %s53, 0
      %s56 = sadd.s32 %s55, 1
      %s57 = scalar_select %p54, %s55, %s56
      %p60 = pneg %p54
      %p61 = scmp.eq.s32.totalorder %s10, 2
      %p62 = por %p60, %p61
      %p63 = scmp.ne.s32.totalorder %s55, %s58
      %p64 = scmp.eq.s32.totalorder %s10, 0
      %p65 = por %p63, %p64
      %p66 = scmp.ne.s32.totalorder %s55, %s58
      %p67 = scmp.eq.s32.totalorder %s15, 2
      %p68 = por %p66, %p67
      %p69 = scmp.ne.s32.totalorder %s58, %s59
      %p70 = scmp.eq.s32.totalorder %s15, 0
      %p71 = por %p69, %p70
      %p72 = scmp.ne.s32.totalorder %s58, %s59
      %p73 = scmp.eq.s32.totalorder %s16, 2
      %p74 = por %p72, %p73
      %p76 = scmp.ne.s32.totalorder %s59, %s75
      %p77 = scmp.eq.s32.totalorder %s16, 0
      %p78 = por %p76, %p77
      %s79 = smul.u32 %s18, 2
      %s80 = ssub.s32 %s79, 1
      %p81 = scmp.gt.s32.totalorder %s80, 0
      %s82 = scalar_select %p81, %s80, 0
      %s83 = smul.u32 %s25, 2
      %s84 = ssub.s32 %s83, 1
      %p85 = scmp.gt.s32.totalorder %s84, 0
      %s86 = scalar_select %p85, %s84, 0
      %s87 = ssub.s32 %s17, %s29
      %s88 = ssub.s32 %s82, %s86
      %s89 = sor.u32 %s87, %s88
      %p90 = scmp.eq.s32.totalorder %s89, 0
      %s92 = sadd.s32 %s91, 1
      %s93 = scalar_select %p90, %s91, %s92
      %p96 = pneg %p90
      %p97 = scmp.eq.s32.totalorder %s10, 2
      %p98 = por %p96, %p97
      %p99 = scmp.ne.s32.totalorder %s91, %s94
      %p100 = scmp.eq.s32.totalorder %s10, 0
      %p101 = por %p99, %p100
      %p102 = scmp.ne.s32.totalorder %s91, %s94
      %p103 = scmp.eq.s32.totalorder %s15, 2
      %p104 = por %p102, %p103
      %p105 = scmp.ne.s32.totalorder %s94, %s95
      %p106 = scmp.eq.s32.totalorder %s15, 0
      %p107 = por %p105, %p106
      %p108 = scmp.ne.s32.totalorder %s94, %s95
      %p109 = scmp.eq.s32.totalorder %s16, 2
      %p110 = por %p108, %p109
      %p112 = scmp.ne.s32.totalorder %s95, %s111
      %p113 = scmp.eq.s32.totalorder %s16, 0
      %p114 = por %p112, %p113
      %s115 = ssub.s32 %s17, %s29
      %s116 = ssub.s32 %s18, %s25
      %s117 = sor.u32 %s115, %s116
      %p118 = scmp.eq.s32.totalorder %s117, 0
      %s120 = sadd.s32 %s119, 1
      %s121 = scalar_select %p118, %s119, %s120
      %p124 = pneg %p118
      %p125 = scmp.eq.s32.totalorder %s10, 2
      %p126 = por %p124, %p125
      %p127 = scmp.ne.s32.totalorder %s119, %s122
      %p128 = scmp.eq.s32.totalorder %s10, 0
      %p129 = por %p127, %p128
      %p130 = scmp.ne.s32.totalorder %s119, %s122
      %p131 = scmp.eq.s32.totalorder %s15, 2
      %p132 = por %p130, %p131
      %p133 = scmp.ne.s32.totalorder %s122, %s123
      %p134 = scmp.eq.s32.totalorder %s15, 0
      %p135 = por %p133, %p134
      %p136 = scmp.ne.s32.totalorder %s122, %s123
      %p137 = scmp.eq.s32.totalorder %s16, 2
      %p138 = por %p136, %p137
      %p140 = scmp.ne.s32.totalorder %s123, %s139
      %p141 = scmp.eq.s32.totalorder %s16, 0
      %p142 = por %p140, %p141
      %p143 = scmp.le.s32.totalorder 1, %s10
      %p144 = scmp.lt.s32.totalorder %s10, 4
      %p145 = pnand %p143, %p144
      %p146 = pneg %p145
      // Predicated region
      $region9: #{wavenet_forward.1} parent=5 // pred_check
        _
      $region10: #{wavenet_forward.1} parent=5 // pred_check_branch
        %148 = sbr.rel (%p145) target = $region12
      $region11: #{wavenet_forward.1} parent=5 // pred_region
        %s149 = ssub.s32 %s10, 1
        // Predicated region
        $region13: #{wavenet_forward.1} parent=11 // pred_check
          %p150 = pneg %p43
        $region14: #{wavenet_forward.1} parent=11 // pred_check_branch
          %152 = sbr.rel (%p150) target = $region16
        $region15: #{wavenet_forward.1} parent=11 // pred_region
          %s154 = ssub.s32 32, 32
          %155 = vsyncadd [#allocation3], %s154
          %s157 = sshll.u32 %s0, 4
          %s158 = int_to_ptr.vmem [resolvable:$true] %s157
          %160 = dma.vmem_to_smem %s158, 32, [#allocation2], [#allocation3]
        $region16: #{wavenet_forward.1} parent=11 // pred_fallthru
          _
      $region12: #{wavenet_forward.1} parent=5 // pred_fallthru
        _
      %p161 = scmp.lt.s32.totalorder %s10, 3
      // Predicated region
      $region17: #{wavenet_forward.1} parent=5 // pred_check
        %p162 = pneg %p161
      $region18: #{wavenet_forward.1} parent=5 // pred_check_branch
        %164 = sbr.rel (%p162) target = $region20
      $region19: #{wavenet_forward.1} parent=5 // pred_region
        // Predicated region
        $region21: #{wavenet_forward.1} parent=19 // pred_check
          %p165 = pneg %p65
        $region22: #{wavenet_forward.1} parent=19 // pred_check_branch
          %167 = sbr.rel (%p165) target = $region24
        $region23: #{wavenet_forward.1} parent=19 // pred_region
          %s168 = smul.u32 2, %s18
          %p169 = scmp.lt.s32.totalorder %s17, 0
          %s170 = scalar_select %p169, %s17, 0
          %p171 = scmp.lt.s32.totalorder %s168, 5
          %s172 = scalar_select %p171, %s168, 5
          %s173 = smul.addr %s170, 6
          %s174 = sadd.s32 %s172, %s173
          %s175 = smul.addr %s174, 8
          %s176 = scalar_lea.vmem %s1, %s175
          %s177 = smul.u32 2, %s18
        $region24: #{wavenet_forward.1} parent=19 // pred_fallthru
          _
        // Predicated region
        $region25: #{wavenet_forward.1} parent=19 // pred_check
          %p178 = pneg %p101
        $region26: #{wavenet_forward.1} parent=19 // pred_check_branch
          %180 = sbr.rel (%p178) target = $region28
        $region27: #{wavenet_forward.1} parent=19 // pred_region
          %s181 = smul.u32 %s18, 2
          %s182 = ssub.s32 %s181, 1
          %p183 = scmp.gt.s32.totalorder %s182, 0
          %s184 = scalar_select %p183, %s182, 0
          %p185 = scmp.lt.s32.totalorder %s17, 0
          %s186 = scalar_select %p185, %s17, 0
          %p187 = scmp.lt.s32.totalorder %s184, 5
          %s188 = scalar_select %p187, %s184, 5
          %s189 = smul.addr %s186, 6
          %s190 = sadd.s32 %s188, %s189
          %s191 = smul.addr %s190, 8
          %s192 = scalar_lea.vmem %s2, %s191
          %s193 = smul.u32 %s18, 2
          %s194 = ssub.s32 %s193, 1
          %p195 = scmp.gt.s32.totalorder %s194, 0
          %s196 = scalar_select %p195, %s194, 0
        $region28: #{wavenet_forward.1} parent=19 // pred_fallthru
          _
      $region20: #{wavenet_forward.1} parent=5 // pred_fallthru
        _
      %p197 = scmp.le.s32.totalorder 1, %s10
      %p198 = scmp.lt.s32.totalorder %s10, 4
      %p199 = pnand %p197, %p198
      %p200 = pneg %p199
      // Predicated region
      $region29: #{wavenet_forward.1} parent=5 // pred_check
        _
      $region30: #{wavenet_forward.1} parent=5 // pred_check_branch
        %202 = sbr.rel (%p199) target = $region32
      $region31: #{wavenet_forward.1} parent=5 // pred_region
        %s203 = ssub.s32 %s10, 1
        // Predicated region
        $region33: #{wavenet_forward.1} parent=31 // pred_check
          %p204 = pneg %p43
        $region34: #{wavenet_forward.1} parent=31 // pred_check_branch
          %206 = sbr.rel (%p204) target = $region36
        $region35: #{wavenet_forward.1} parent=31 // pred_region
          %207 = dma.done [#allocation3], 32
        $region36: #{wavenet_forward.1} parent=31 // pred_fallthru
          _
        %208 = sfence
        %p209 = pneg %p43
        %p210 = pneg %p40
        %s211 = smul.u32 2, %s20
        %p212 = scmp.lt.s32.totalorder %s19, 0
        %s213 = scalar_select %p212, %s19, 0
        %p214 = scmp.lt.s32.totalorder %s211, 5
        %s215 = scalar_select %p214, %s211, 5
        %s216 = smul.addr %s213, 6
        %s217 = sadd.s32 %s215, %s216
        %s218 = smul.addr %s217, 8
        %s219 = scalar_lea.vmem %s1, %s218
        %p220 = pneg %p71
        %p221 = pneg %p68
        %s222 = smul.u32 %s20, 2
        %s223 = ssub.s32 %s222, 1
        %p224 = scmp.gt.s32.totalorder %s223, 0
        %s225 = scalar_select %p224, %s223, 0
        %p226 = scmp.lt.s32.totalorder %s19, 0
        %s227 = scalar_select %p226, %s19, 0
        %p228 = scmp.lt.s32.totalorder %s225, 5
        %s229 = scalar_select %p228, %s225, 5
        %s230 = smul.addr %s227, 6
        %s231 = sadd.s32 %s229, %s230
        %s232 = smul.addr %s231, 8
        %s233 = scalar_lea.vmem %s2, %s232
        %p234 = pneg %p107
        %p235 = pneg %p104
        %p236 = pneg %p135
        %p237 = pneg %p132
        %s238 = smul.u32 2, %s20
        %p239 = scmp.lt.s32.totalorder %s19, 0
        %s240 = scalar_select %p239, %s19, 0
        %p241 = scmp.lt.s32.totalorder %s238, 5
        %s242 = scalar_select %p241, %s238, 5
        %s243 = smul.addr %s240, 6
        %s244 = sadd.s32 %s242, %s243
        %s245 = smul.addr %s244, 8
        %s246 = scalar_lea.vmem %s3, %s245
        %s247 = smul.u32 2, %s20
        %p248 = scmp.lt.s32.totalorder %s19, 0
        %s249 = scalar_select %p248, %s19, 0
        %p250 = scmp.lt.s32.totalorder %s247, 5
        %s251 = scalar_select %p250, %s247, 5
        %s252 = smul.addr %s249, 6
        %s253 = sadd.s32 %s251, %s252
        %s254 = smul.addr %s253, 8
        %s255 = scalar_lea.vmem %s1, %s254
        %s256 = smul.u32 2, %s20
        %s257 = smul.u32 %s20, 2
        %s258 = ssub.s32 %s257, 1
        %p259 = scmp.gt.s32.totalorder %s258, 0
        %s260 = scalar_select %p259, %s258, 0
        %p261 = scmp.lt.s32.totalorder %s19, 0
        %s262 = scalar_select %p261, %s19, 0
        %p263 = scmp.lt.s32.totalorder %s260, 5
        %s264 = scalar_select %p263, %s260, 5
        %s265 = smul.addr %s262, 6
        %s266 = sadd.s32 %s264, %s265
        %s267 = smul.addr %s266, 8
        %s268 = scalar_lea.vmem %s2, %s267
        %s269 = smul.u32 %s20, 2
        %s270 = ssub.s32 %s269, 1
        %p271 = scmp.gt.s32.totalorder %s270, 0
        %s272 = scalar_select %p271, %s270, 0
        %s273 = smul.u32 2, %s20
        %p274 = scmp.lt.s32.totalorder %s19, 0
        %s275 = scalar_select %p274, %s19, 0
        %p276 = scmp.lt.s32.totalorder %s273, 5
        %s277 = scalar_select %p276, %s273, 5
        %s278 = smul.addr %s275, 6
        %s279 = sadd.s32 %s277, %s278
        %s280 = smul.addr %s279, 8
        %s281 = scalar_lea.vmem %s3, %s280
        %s282 = smul.u32 2, %s20
        %s283 = sld [smem:[#allocation2]]
        %s284 = sld [smem:[#allocation2 + $0x1]]
        %s285 = sld [smem:[#allocation2 + $0x2]]
        %s286 = sld [smem:[#allocation2 + $0x3]]
        %s287 = sld [smem:[#allocation2 + $0x4]]
        %s288 = sld [smem:[#allocation2 + $0x5]]
        %s289 = sld [smem:[#allocation2 + $0x6]]
        %s290 = sld [smem:[#allocation2 + $0x7]]
        %s291 = sld [smem:[#allocation2 + $0x8]]
        %s292 = sld [smem:[#allocation2 + $0x9]]
        %s293 = sld [smem:[#allocation2 + $0xa]]
        %s294 = sld [smem:[#allocation2 + $0xb]]
        %s295 = sld [smem:[#allocation2 + $0xc]]
        %s296 = sld [smem:[#allocation2 + $0xd]]
        %s297 = sld [smem:[#allocation2 + $0xe]]
        %s298 = sld [smem:[#allocation2 + $0xf]]
        %s299 = sld [smem:[#allocation2 + $0x10]]
        %s300 = sld [smem:[#allocation2 + $0x11]]
        %s301 = sld [smem:[#allocation2 + $0x12]]
        %s302 = sld [smem:[#allocation2 + $0x13]]
        %s303 = sld [smem:[#allocation2 + $0x14]]
        %s304 = sld [smem:[#allocation2 + $0x15]]
        %s305 = sld [smem:[#allocation2 + $0x16]]
        %s306 = sld [smem:[#allocation2 + $0x17]]
        %s307 = sld [smem:[#allocation2 + $0x18]]
        %s308 = sld [smem:[#allocation2 + $0x19]]
        %s309 = sld [smem:[#allocation2 + $0x1a]]
        %s310 = sld [smem:[#allocation2 + $0x1b]]
        %s311 = sld [smem:[#allocation2 + $0x1c]]
        %s312 = sld [smem:[#allocation2 + $0x1d]]
        %s313 = sld [smem:[#allocation2 + $0x1e]]
        %s314 = sld [smem:[#allocation2 + $0x1f]]
        %s315 = sld [smem:[#allocation2 + $0x20]]
        %s316 = sld [smem:[#allocation2 + $0x21]]
        %s317 = sld [smem:[#allocation2 + $0x22]]
        %s318 = sld [smem:[#allocation2 + $0x23]]
        %s319 = sld [smem:[#allocation2 + $0x24]]
        %s320 = sld [smem:[#allocation2 + $0x25]]
        %s321 = sld [smem:[#allocation2 + $0x26]]
        %s322 = sld [smem:[#allocation2 + $0x27]]
        %s323 = sld [smem:[#allocation2 + $0x28]]
        %s324 = sld [smem:[#allocation2 + $0x29]]
        %s325 = sld [smem:[#allocation2 + $0x2a]]
        %s326 = sld [smem:[#allocation2 + $0x2b]]
        %s327 = sld [smem:[#allocation2 + $0x2c]]
        %s328 = sld [smem:[#allocation2 + $0x2d]]
        %s329 = sld [smem:[#allocation2 + $0x2e]]
        %s330 = sld [smem:[#allocation2 + $0x2f]]
        %s331 = sld [smem:[#allocation2 + $0x30]]
        %s332 = sld [smem:[#allocation2 + $0x31]]
        %s333 = sld [smem:[#allocation2 + $0x32]]
        %s334 = sld [smem:[#allocation2 + $0x33]]
        %s335 = sld [smem:[#allocation2 + $0x34]]
        %s336 = sld [smem:[#allocation2 + $0x35]]
        %s337 = sld [smem:[#allocation2 + $0x36]]
        %s338 = sld [smem:[#allocation2 + $0x37]]
        %s339 = sld [smem:[#allocation2 + $0x38]]
        %s340 = sld [smem:[#allocation2 + $0x39]]
        %s341 = sld [smem:[#allocation2 + $0x3a]]
        %s342 = sld [smem:[#allocation2 + $0x3b]]
        %s343 = sld [smem:[#allocation2 + $0x3c]]
        %s344 = sld [smem:[#allocation2 + $0x3d]]
        %s345 = sld [smem:[#allocation2 + $0x3e]]
        %s346 = sld [smem:[#allocation2 + $0x3f]]
        %s347 = sld [smem:[#allocation2 + $0x40]]
        %s348 = sld [smem:[#allocation2 + $0x41]]
        %s349 = sld [smem:[#allocation2 + $0x42]]
        %s350 = sld [smem:[#allocation2 + $0x43]]
        %s351 = sld [smem:[#allocation2 + $0x44]]
        %s352 = sld [smem:[#allocation2 + $0x45]]
        %s353 = sld [smem:[#allocation2 + $0x46]]
        %s354 = sld [smem:[#allocation2 + $0x47]]
        %s355 = sld [smem:[#allocation2 + $0x48]]
        %s356 = sld [smem:[#allocation2 + $0x49]]
        %s357 = sld [smem:[#allocation2 + $0x4a]]
        %s358 = sld [smem:[#allocation2 + $0x4b]]
        %s359 = sld [smem:[#allocation2 + $0x4c]]
        %s360 = sld [smem:[#allocation2 + $0x4d]]
        %s361 = sld [smem:[#allocation2 + $0x4e]]
        %s362 = sld [smem:[#allocation2 + $0x4f]]
        %s363 = sld [smem:[#allocation2 + $0x50]]
        %s364 = sld [smem:[#allocation2 + $0x51]]
        %s365 = sld [smem:[#allocation2 + $0x52]]
        %s366 = sld [smem:[#allocation2 + $0x53]]
        %s367 = sld [smem:[#allocation2 + $0x54]]
        %s368 = sld [smem:[#allocation2 + $0x55]]
        %s369 = sld [smem:[#allocation2 + $0x56]]
        %s370 = sld [smem:[#allocation2 + $0x57]]
        %s371 = sld [smem:[#allocation2 + $0x58]]
        %s372 = sld [smem:[#allocation2 + $0x59]]
        %s373 = sld [smem:[#allocation2 + $0x5a]]
        %s374 = sld [smem:[#allocation2 + $0x5b]]
        %s375 = sld [smem:[#allocation2 + $0x5c]]
        %s376 = sld [smem:[#allocation2 + $0x5d]]
        %s377 = sld [smem:[#allocation2 + $0x5e]]
        %s378 = sld [smem:[#allocation2 + $0x5f]]
        %s379 = sld [smem:[#allocation2 + $0x60]]
        %s380 = sld [smem:[#allocation2 + $0x61]]
        %s381 = sld [smem:[#allocation2 + $0x62]]
        %s382 = sld [smem:[#allocation2 + $0x63]]
        %s383 = sld [smem:[#allocation2 + $0x64]]
        %s384 = sld [smem:[#allocation2 + $0x65]]
        %s385 = sld [smem:[#allocation2 + $0x66]]
        %s386 = sld [smem:[#allocation2 + $0x67]]
        %s387 = sld [smem:[#allocation2 + $0x68]]
        %s388 = sld [smem:[#allocation2 + $0x69]]
        %s389 = sld [smem:[#allocation2 + $0x6a]]
        %s390 = sld [smem:[#allocation2 + $0x6b]]
        %s391 = sld [smem:[#allocation2 + $0x6c]]
        %s392 = sld [smem:[#allocation2 + $0x6d]]
        %s393 = sld [smem:[#allocation2 + $0x6e]]
        %s394 = sld [smem:[#allocation2 + $0x6f]]
        %s395 = sld [smem:[#allocation2 + $0x70]]
        %s396 = sld [smem:[#allocation2 + $0x71]]
        %s397 = sld [smem:[#allocation2 + $0x72]]
        %s398 = sld [smem:[#allocation2 + $0x73]]
        %s399 = sld [smem:[#allocation2 + $0x74]]
        %s400 = sld [smem:[#allocation2 + $0x75]]
        %s401 = sld [smem:[#allocation2 + $0x76]]
        %s402 = sld [smem:[#allocation2 + $0x77]]
        %s403 = sld [smem:[#allocation2 + $0x78]]
        %s404 = sld [smem:[#allocation2 + $0x79]]
        %s405 = sld [smem:[#allocation2 + $0x7a]]
        %s406 = sld [smem:[#allocation2 + $0x7b]]
        %s407 = sld [smem:[#allocation2 + $0x7c]]
        %s408 = sld [smem:[#allocation2 + $0x7d]]
        %s409 = sld [smem:[#allocation2 + $0x7e]]
        %s410 = sld [smem:[#allocation2 + $0x7f]]
        %s411 = sld [smem:[#allocation2 + $0x80]]
        %s412 = sld [smem:[#allocation2 + $0x81]]
        %s413 = sld [smem:[#allocation2 + $0x82]]
        %s414 = sld [smem:[#allocation2 + $0x83]]
        %s415 = sld [smem:[#allocation2 + $0x84]]
        %s416 = sld [smem:[#allocation2 + $0x85]]
        %s417 = sld [smem:[#allocation2 + $0x86]]
        %s418 = sld [smem:[#allocation2 + $0x87]]
        %s419 = sld [smem:[#allocation2 + $0x88]]
        %s420 = sld [smem:[#allocation2 + $0x89]]
        %s421 = sld [smem:[#allocation2 + $0x8a]]
        %s422 = sld [smem:[#allocation2 + $0x8b]]
        %s423 = sld [smem:[#allocation2 + $0x8c]]
        %s424 = sld [smem:[#allocation2 + $0x8d]]
        %s425 = sld [smem:[#allocation2 + $0x8e]]
        %s426 = sld [smem:[#allocation2 + $0x8f]]
        %s427 = sld [smem:[#allocation2 + $0x90]]
        %s428 = sld [smem:[#allocation2 + $0x91]]
        %s429 = sld [smem:[#allocation2 + $0x92]]
        %s430 = sld [smem:[#allocation2 + $0x93]]
        %s431 = sld [smem:[#allocation2 + $0x94]]
        %s432 = sld [smem:[#allocation2 + $0x95]]
        %s433 = sld [smem:[#allocation2 + $0x96]]
        %s434 = sld [smem:[#allocation2 + $0x97]]
        %s435 = sld [smem:[#allocation2 + $0x98]]
        %s436 = sld [smem:[#allocation2 + $0x99]]
        %s437 = sld [smem:[#allocation2 + $0x9a]]
        %s438 = sld [smem:[#allocation2 + $0x9b]]
        %s439 = sld [smem:[#allocation2 + $0x9c]]
        %s440 = sld [smem:[#allocation2 + $0x9d]]
        %s441 = sld [smem:[#allocation2 + $0x9e]]
        %s442 = sld [smem:[#allocation2 + $0x9f]]
        %s443 = sld [smem:[#allocation2 + $0xa0]]
        %s444 = sld [smem:[#allocation2 + $0xa1]]
        %s445 = sld [smem:[#allocation2 + $0xa2]]
        %s446 = sld [smem:[#allocation2 + $0xa3]]
        %s447 = sld [smem:[#allocation2 + $0xa4]]
        %s448 = sld [smem:[#allocation2 + $0xa5]]
        %s449 = sld [smem:[#allocation2 + $0xa6]]
        %s450 = sld [smem:[#allocation2 + $0xa7]]
        %s451 = sld [smem:[#allocation2 + $0xa8]]
        %s452 = sld [smem:[#allocation2 + $0xa9]]
        %s453 = sld [smem:[#allocation2 + $0xaa]]
        %s454 = sld [smem:[#allocation2 + $0xab]]
        %s455 = sld [smem:[#allocation2 + $0xac]]
        %s456 = sld [smem:[#allocation2 + $0xad]]
        %s457 = sld [smem:[#allocation2 + $0xae]]
        %s458 = sld [smem:[#allocation2 + $0xaf]]
        %s459 = sld [smem:[#allocation2 + $0xb0]]
        %s460 = sld [smem:[#allocation2 + $0xb1]]
        %s461 = sld [smem:[#allocation2 + $0xb2]]
        %s462 = sld [smem:[#allocation2 + $0xb3]]
        %s463 = sld [smem:[#allocation2 + $0xb4]]
        %s464 = sld [smem:[#allocation2 + $0xb5]]
        %s465 = sld [smem:[#allocation2 + $0xb6]]
        %s466 = sld [smem:[#allocation2 + $0xb7]]
        %s467 = sld [smem:[#allocation2 + $0xb8]]
        %s468 = sld [smem:[#allocation2 + $0xb9]]
        %s469 = sld [smem:[#allocation2 + $0xba]]
        %s470 = sld [smem:[#allocation2 + $0xbb]]
        %s471 = sld [smem:[#allocation2 + $0xbc]]
        %s472 = sld [smem:[#allocation2 + $0xbd]]
        %s473 = sld [smem:[#allocation2 + $0xbe]]
        %s474 = sld [smem:[#allocation2 + $0xbf]]
        %s475 = sld [smem:[#allocation2 + $0xc0]]
        %s476 = sld [smem:[#allocation2 + $0xc1]]
        %s477 = sld [smem:[#allocation2 + $0xc2]]
        %s478 = sld [smem:[#allocation2 + $0xc3]]
        %s479 = sld [smem:[#allocation2 + $0xc4]]
        %s480 = sld [smem:[#allocation2 + $0xc5]]
        %s481 = sld [smem:[#allocation2 + $0xc6]]
        %s482 = sld [smem:[#allocation2 + $0xc7]]
        %s483 = sld [smem:[#allocation2 + $0xc8]]
        %s484 = sld [smem:[#allocation2 + $0xd2]]
        %s485 = sld [smem:[#allocation2 + $0xd3]]
        %s486 = sld [smem:[#allocation2 + $0xd4]]
        %s487 = sld [smem:[#allocation2 + $0xd5]]
        %s488 = sld [smem:[#allocation2 + $0xd6]]
        %s489 = sld [smem:[#allocation2 + $0xd7]]
        %s490 = sld [smem:[#allocation2 + $0xd8]]
        %s491 = sld [smem:[#allocation2 + $0xd9]]
        %s492 = sld [smem:[#allocation2 + $0xda]]
        %s493 = sld [smem:[#allocation2 + $0xde]]
        %s494 = sld [smem:[#allocation2 + $0xdf]]
        %s495 = sld [smem:[#allocation2 + $0xe0]]
        %s496 = sld [smem:[#allocation2 + $0xe1]]
        %s497 = sld [smem:[#allocation2 + $0xe2]]
        %s498 = sld [smem:[#allocation2 + $0xe3]]
        %s499 = sld [smem:[#allocation2 + $0xe4]]
        %s500 = sld [smem:[#allocation2 + $0xe5]]
        %s501 = sld [smem:[#allocation2 + $0xe6]]
        %s502 = sld [smem:[#allocation2 + $0xe7]]
        %s503 = sld [smem:[#allocation2 + $0xe8]]
        %s504 = sld [smem:[#allocation2 + $0xe9]]
        %s505 = sld [smem:[#allocation2 + $0xea]]
        %v506 = vlaneseq
        %v507 = vand.u32 %v506, 127
        %vm508 = vcmp.ge.s32.totalorder %v507, 127
        %vm509 = vcmp.ge.s32.totalorder %v507, 126
        %v510 = vld [vmem:[%s268] sm:$0xff]
        %v511 = vstv %s283
        %v512 = vmul.f32 %v511, %v510
        %v513 = vstv %s286
        %v514 = vadd.f32 %v512, %v513
        %v515 = vstv %s284
        %v516 = vmul.f32 %v515, %v510
        %v517 = vstv %s287
        %v518 = vadd.f32 %v516, %v517
        %v519 = vstv %s285
        %v520 = vmul.f32 %v519, %v510
        %v521 = vstv %s288
        %v522 = vadd.f32 %v520, %v521
        %v523 = vsel %vm508, 0.0, %v514
        %524 = vrot.lane.b32.xlu0 %v523, 1
        %v525 = vpop.permute.xlu0 %524
        %v526 = vsel %vm508, 0.0, %v518
        %527 = vrot.lane.b32.xlu0 %v526, 1
        %v528 = vpop.permute.xlu0 %527
        %v529 = vsel %vm508, 0.0, %v522
        %530 = vrot.lane.b32.xlu0 %v529, 1
        %v531 = vpop.permute.xlu0 %530
        %v532 = vstv %s289
        %v533 = vmul.f32 %v532, %v525
        %v534 = vstv %s433
        %v535 = vadd.f32 %v534, %v533
        %v536 = vstv %s361
        %v537 = vmul.f32 %v536, %v514
        %v538 = vadd.f32 %v535, %v537
        %v539 = vstv %s298
        %v540 = vmul.f32 %v539, %v525
        %v541 = vstv %s436
        %v542 = vadd.f32 %v541, %v540
        %v543 = vstv %s370
        %v544 = vmul.f32 %v543, %v514
        %v545 = vadd.f32 %v542, %v544
        %v546 = vstv %s290
        %v547 = vmul.f32 %v546, %v528
        %v548 = vadd.f32 %v538, %v547
        %v549 = vstv %s362
        %v550 = vmul.f32 %v549, %v518
        %v551 = vadd.f32 %v548, %v550
        %v552 = vstv %s299
        %v553 = vmul.f32 %v552, %v528
        %v554 = vadd.f32 %v545, %v553
        %v555 = vstv %s371
        %v556 = vmul.f32 %v555, %v518
        %v557 = vadd.f32 %v554, %v556
        %v558 = vstv %s291
        %v559 = vmul.f32 %v558, %v531
        %v560 = vadd.f32 %v551, %v559
        %v561 = vstv %s363
        %v562 = vmul.f32 %v561, %v522
        %v563 = vadd.f32 %v560, %v562
        %v564 = vstv %s300
        %v565 = vmul.f32 %v564, %v531
        %v566 = vadd.f32 %v557, %v565
        %v567 = vstv %s372
        %v568 = vmul.f32 %v567, %v522
        %v569 = vadd.f32 %v566, %v568
        %v570 = vtanh.pop %v563
        %v571 = vmul.f32 %v569, 0.5
        %v572 = vtanh.pop %v571
        %v573 = vmul.f32 %v572, 0.5
        %v574 = vadd.f32 %v573, 0.5
        %v575 = vmul.f32 %v570, %v574
        %v576 = vstv %s292
        %v577 = vmul.f32 %v576, %v525
        %v578 = vstv %s434
        %v579 = vadd.f32 %v578, %v577
        %v580 = vstv %s364
        %v581 = vmul.f32 %v580, %v514
        %v582 = vadd.f32 %v579, %v581
        %v583 = vstv %s301
        %v584 = vmul.f32 %v583, %v525
        %v585 = vstv %s437
        %v586 = vadd.f32 %v585, %v584
        %v587 = vstv %s373
        %v588 = vmul.f32 %v587, %v514
        %v589 = vadd.f32 %v586, %v588
        %v590 = vstv %s293
        %v591 = vmul.f32 %v590, %v528
        %v592 = vadd.f32 %v582, %v591
        %v593 = vstv %s365
        %v594 = vmul.f32 %v593, %v518
        %v595 = vadd.f32 %v592, %v594
        %v596 = vstv %s302
        %v597 = vmul.f32 %v596, %v528
        %v598 = vadd.f32 %v589, %v597
        %v599 = vstv %s374
        %v600 = vmul.f32 %v599, %v518
        %v601 = vadd.f32 %v598, %v600
        %v602 = vstv %s294
        %v603 = vmul.f32 %v602, %v531
        %v604 = vadd.f32 %v595, %v603
        %v605 = vstv %s366
        %v606 = vmul.f32 %v605, %v522
        %v607 = vadd.f32 %v604, %v606
        %v608 = vstv %s303
        %v609 = vmul.f32 %v608, %v531
        %v610 = vadd.f32 %v601, %v609
        %v611 = vstv %s375
        %v612 = vmul.f32 %v611, %v522
        %v613 = vadd.f32 %v610, %v612
        %v614 = vtanh.pop %v607
        %v615 = vmul.f32 %v613, 0.5
        %v616 = vtanh.pop %v615
        %v617 = vmul.f32 %v616, 0.5
        %v618 = vadd.f32 %v617, 0.5
        %v619 = vmul.f32 %v614, %v618
        %v620 = vstv %s295
        %v621 = vmul.f32 %v620, %v525
        %v622 = vstv %s435
        %v623 = vadd.f32 %v622, %v621
        %v624 = vstv %s367
        %v625 = vmul.f32 %v624, %v514
        %v626 = vadd.f32 %v623, %v625
        %v627 = vstv %s304
        %v628 = vmul.f32 %v627, %v525
        %v629 = vstv %s438
        %v630 = vadd.f32 %v629, %v628
        %v631 = vstv %s376
        %v632 = vmul.f32 %v631, %v514
        %v633 = vadd.f32 %v630, %v632
        %v634 = vstv %s296
        %v635 = vmul.f32 %v634, %v528
        %v636 = vadd.f32 %v626, %v635
        %v637 = vstv %s368
        %v638 = vmul.f32 %v637, %v518
        %v639 = vadd.f32 %v636, %v638
        %v640 = vstv %s305
        %v641 = vmul.f32 %v640, %v528
        %v642 = vadd.f32 %v633, %v641
        %v643 = vstv %s377
        %v644 = vmul.f32 %v643, %v518
        %v645 = vadd.f32 %v642, %v644
        %v646 = vstv %s297
        %v647 = vmul.f32 %v646, %v531
        %v648 = vadd.f32 %v639, %v647
        %v649 = vstv %s369
        %v650 = vmul.f32 %v649, %v522
        %v651 = vadd.f32 %v648, %v650
        %v652 = vstv %s306
        %v653 = vmul.f32 %v652, %v531
        %v654 = vadd.f32 %v645, %v653
        %v655 = vstv %s378
        %v656 = vmul.f32 %v655, %v522
        %v657 = vadd.f32 %v654, %v656
        %v658 = vtanh.pop %v651
        %v659 = vmul.f32 %v657, 0.5
        %v660 = vtanh.pop %v659
        %v661 = vmul.f32 %v660, 0.5
        %v662 = vadd.f32 %v661, 0.5
        %v663 = vmul.f32 %v658, %v662
        %v664 = vstv %s457
        %v665 = vmul.f32 %v664, %v575
        %v666 = vstv %s484
        %v667 = vadd.f32 %v666, %v665
        %v668 = vstv %s458
        %v669 = vmul.f32 %v668, %v619
        %v670 = vadd.f32 %v667, %v669
        %v671 = vstv %s459
        %v672 = vmul.f32 %v671, %v663
        %v673 = vadd.f32 %v670, %v672
        %v674 = vadd.f32 %v673, %v514
        %v675 = vstv %s460
        %v676 = vmul.f32 %v675, %v575
        %v677 = vstv %s485
        %v678 = vadd.f32 %v677, %v676
        %v679 = vstv %s461
        %v680 = vmul.f32 %v679, %v619
        %v681 = vadd.f32 %v678, %v680
        %v682 = vstv %s462
        %v683 = vmul.f32 %v682, %v663
        %v684 = vadd.f32 %v681, %v683
        %v685 = vadd.f32 %v684, %v518
        %v686 = vstv %s463
        %v687 = vmul.f32 %v686, %v575
        %v688 = vstv %s486
        %v689 = vadd.f32 %v688, %v687
        %v690 = vstv %s464
        %v691 = vmul.f32 %v690, %v619
        %v692 = vadd.f32 %v689, %v691
        %v693 = vstv %s465
        %v694 = vmul.f32 %v693, %v663
        %v695 = vadd.f32 %v692, %v694
        %v696 = vadd.f32 %v695, %v522
        %v697 = vsel %vm509, 0.0, %v674
        %698 = vrot.lane.b32.xlu0 %v697, 2
        %v699 = vpop.permute.xlu0 %698
        %v700 = vsel %vm509, 0.0, %v685
        %701 = vrot.lane.b32.xlu0 %v700, 2
        %v702 = vpop.permute.xlu0 %701
        %v703 = vsel %vm509, 0.0, %v696
        %704 = vrot.lane.b32.xlu0 %v703, 2
        %v705 = vpop.permute.xlu0 %704
        %v706 = vstv %s307
        %v707 = vmul.f32 %v706, %v699
        %v708 = vstv %s439
        %v709 = vadd.f32 %v708, %v707
        %v710 = vstv %s379
        %v711 = vmul.f32 %v710, %v674
        %v712 = vadd.f32 %v709, %v711
        %v713 = vstv %s316
        %v714 = vmul.f32 %v713, %v699
        %v715 = vstv %s442
        %v716 = vadd.f32 %v715, %v714
        %v717 = vstv %s388
        %v718 = vmul.f32 %v717, %v674
        %v719 = vadd.f32 %v716, %v718
        %v720 = vstv %s308
        %v721 = vmul.f32 %v720, %v702
        %v722 = vadd.f32 %v712, %v721
        %v723 = vstv %s380
        %v724 = vmul.f32 %v723, %v685
        %v725 = vadd.f32 %v722, %v724
        %v726 = vstv %s317
        %v727 = vmul.f32 %v726, %v702
        %v728 = vadd.f32 %v719, %v727
        %v729 = vstv %s389
        %v730 = vmul.f32 %v729, %v685
        %v731 = vadd.f32 %v728, %v730
        %v732 = vstv %s309
        %v733 = vmul.f32 %v732, %v705
        %v734 = vadd.f32 %v725, %v733
        %v735 = vstv %s381
        %v736 = vmul.f32 %v735, %v696
        %v737 = vadd.f32 %v734, %v736
        %v738 = vstv %s318
        %v739 = vmul.f32 %v738, %v705
        %v740 = vadd.f32 %v731, %v739
        %v741 = vstv %s390
        %v742 = vmul.f32 %v741, %v696
        %v743 = vadd.f32 %v740, %v742
        %v744 = vtanh.pop %v737
        %v745 = vmul.f32 %v743, 0.5
        %v746 = vtanh.pop %v745
        %v747 = vmul.f32 %v746, 0.5
        %v748 = vadd.f32 %v747, 0.5
        %v749 = vmul.f32 %v744, %v748
        %v750 = vstv %s310
        %v751 = vmul.f32 %v750, %v699
        %v752 = vstv %s440
        %v753 = vadd.f32 %v752, %v751
        %v754 = vstv %s382
        %v755 = vmul.f32 %v754, %v674
        %v756 = vadd.f32 %v753, %v755
        %v757 = vstv %s319
        %v758 = vmul.f32 %v757, %v699
        %v759 = vstv %s443
        %v760 = vadd.f32 %v759, %v758
        %v761 = vstv %s391
        %v762 = vmul.f32 %v761, %v674
        %v763 = vadd.f32 %v760, %v762
        %v764 = vstv %s311
        %v765 = vmul.f32 %v764, %v702
        %v766 = vadd.f32 %v756, %v765
        %v767 = vstv %s383
        %v768 = vmul.f32 %v767, %v685
        %v769 = vadd.f32 %v766, %v768
        %v770 = vstv %s320
        %v771 = vmul.f32 %v770, %v702
        %v772 = vadd.f32 %v763, %v771
        %v773 = vstv %s392
        %v774 = vmul.f32 %v773, %v685
        %v775 = vadd.f32 %v772, %v774
        %v776 = vstv %s312
        %v777 = vmul.f32 %v776, %v705
        %v778 = vadd.f32 %v769, %v777
        %v779 = vstv %s384
        %v780 = vmul.f32 %v779, %v696
        %v781 = vadd.f32 %v778, %v780
        %v782 = vstv %s321
        %v783 = vmul.f32 %v782, %v705
        %v784 = vadd.f32 %v775, %v783
        %v785 = vstv %s393
        %v786 = vmul.f32 %v785, %v696
        %v787 = vadd.f32 %v784, %v786
        %v788 = vtanh.pop %v781
        %v789 = vmul.f32 %v787, 0.5
        %v790 = vtanh.pop %v789
        %v791 = vmul.f32 %v790, 0.5
        %v792 = vadd.f32 %v791, 0.5
        %v793 = vmul.f32 %v788, %v792
        %v794 = vstv %s313
        %v795 = vmul.f32 %v794, %v699
        %v796 = vstv %s441
        %v797 = vadd.f32 %v796, %v795
        %v798 = vstv %s385
        %v799 = vmul.f32 %v798, %v674
        %v800 = vadd.f32 %v797, %v799
        %v801 = vstv %s322
        %v802 = vmul.f32 %v801, %v699
        %v803 = vstv %s444
        %v804 = vadd.f32 %v803, %v802
        %v805 = vstv %s394
        %v806 = vmul.f32 %v805, %v674
        %v807 = vadd.f32 %v804, %v806
        %v808 = vstv %s314
        %v809 = vmul.f32 %v808, %v702
        %v810 = vadd.f32 %v800, %v809
        %v811 = vstv %s386
        %v812 = vmul.f32 %v811, %v685
        %v813 = vadd.f32 %v810, %v812
        %v814 = vstv %s323
        %v815 = vmul.f32 %v814, %v702
        %v816 = vadd.f32 %v807, %v815
        %v817 = vstv %s395
        %v818 = vmul.f32 %v817, %v685
        %v819 = vadd.f32 %v816, %v818
        %v820 = vstv %s315
        %v821 = vmul.f32 %v820, %v705
        %v822 = vadd.f32 %v813, %v821
        %v823 = vstv %s387
        %v824 = vmul.f32 %v823, %v696
        %v825 = vadd.f32 %v822, %v824
        %v826 = vstv %s324
        %v827 = vmul.f32 %v826, %v705
        %v828 = vadd.f32 %v819, %v827
        %v829 = vstv %s396
        %v830 = vmul.f32 %v829, %v696
        %v831 = vadd.f32 %v828, %v830
        %v832 = vtanh.pop %v825
        %v833 = vmul.f32 %v831, 0.5
        %v834 = vtanh.pop %v833
        %v835 = vmul.f32 %v834, 0.5
        %v836 = vadd.f32 %v835, 0.5
        %v837 = vmul.f32 %v832, %v836
        %v838 = vstv %s466
        %v839 = vmul.f32 %v838, %v749
        %v840 = vstv %s487
        %v841 = vadd.f32 %v840, %v839
        %v842 = vstv %s467
        %v843 = vmul.f32 %v842, %v793
        %v844 = vadd.f32 %v841, %v843
        %v845 = vstv %s468
        %v846 = vmul.f32 %v845, %v837
        %v847 = vadd.f32 %v844, %v846
        %v848 = vadd.f32 %v847, %v674
        %v849 = vstv %s469
        %v850 = vmul.f32 %v849, %v749
        %v851 = vstv %s488
        %v852 = vadd.f32 %v851, %v850
        %v853 = vstv %s470
        %v854 = vmul.f32 %v853, %v793
        %v855 = vadd.f32 %v852, %v854
        %v856 = vstv %s471
        %v857 = vmul.f32 %v856, %v837
        %v858 = vadd.f32 %v855, %v857
        %v859 = vadd.f32 %v858, %v685
        %v860 = vstv %s472
        %v861 = vmul.f32 %v860, %v749
        %v862 = vstv %s489
        %v863 = vadd.f32 %v862, %v861
        %v864 = vstv %s473
        %v865 = vmul.f32 %v864, %v793
        %v866 = vadd.f32 %v863, %v865
        %v867 = vstv %s474
        %v868 = vmul.f32 %v867, %v837
        %v869 = vadd.f32 %v866, %v868
        %v870 = vadd.f32 %v869, %v696
        %v871 = vsel %vm508, 0.0, %v848
        %872 = vrot.lane.b32.xlu0 %v871, 1
        %v873 = vpop.permute.xlu0 %872
        %v874 = vsel %vm508, 0.0, %v859
        %875 = vrot.lane.b32.xlu0 %v874, 1
        %v876 = vpop.permute.xlu0 %875
        %v877 = vsel %vm508, 0.0, %v870
        %878 = vrot.lane.b32.xlu0 %v877, 1
        %v879 = vpop.permute.xlu0 %878
        %v880 = vstv %s325
        %v881 = vmul.f32 %v880, %v873
        %v882 = vstv %s445
        %v883 = vadd.f32 %v882, %v881
        %v884 = vstv %s397
        %v885 = vmul.f32 %v884, %v848
        %v886 = vadd.f32 %v883, %v885
        %v887 = vstv %s334
        %v888 = vmul.f32 %v887, %v873
        %v889 = vstv %s448
        %v890 = vadd.f32 %v889, %v888
        %v891 = vstv %s406
        %v892 = vmul.f32 %v891, %v848
        %v893 = vadd.f32 %v890, %v892
        %v894 = vstv %s326
        %v895 = vmul.f32 %v894, %v876
        %v896 = vadd.f32 %v886, %v895
        %v897 = vstv %s398
        %v898 = vmul.f32 %v897, %v859
        %v899 = vadd.f32 %v896, %v898
        %v900 = vstv %s335
        %v901 = vmul.f32 %v900, %v876
        %v902 = vadd.f32 %v893, %v901
        %v903 = vstv %s407
        %v904 = vmul.f32 %v903, %v859
        %v905 = vadd.f32 %v902, %v904
        %v906 = vstv %s327
        %v907 = vmul.f32 %v906, %v879
        %v908 = vadd.f32 %v899, %v907
        %v909 = vstv %s399
        %v910 = vmul.f32 %v909, %v870
        %v911 = vadd.f32 %v908, %v910
        %v912 = vstv %s336
        %v913 = vmul.f32 %v912, %v879
        %v914 = vadd.f32 %v905, %v913
        %v915 = vstv %s408
        %v916 = vmul.f32 %v915, %v870
        %v917 = vadd.f32 %v914, %v916
        %v918 = vtanh.pop %v911
        %v919 = vmul.f32 %v917, 0.5
        %v920 = vtanh.pop %v919
        %v921 = vmul.f32 %v920, 0.5
        %v922 = vadd.f32 %v921, 0.5
        %v923 = vmul.f32 %v918, %v922
        %v924 = vstv %s328
        %v925 = vmul.f32 %v924, %v873
        %v926 = vstv %s446
        %v927 = vadd.f32 %v926, %v925
        %v928 = vstv %s400
        %v929 = vmul.f32 %v928, %v848
        %v930 = vadd.f32 %v927, %v929
        %v931 = vstv %s337
        %v932 = vmul.f32 %v931, %v873
        %v933 = vstv %s449
        %v934 = vadd.f32 %v933, %v932
        %v935 = vstv %s409
        %v936 = vmul.f32 %v935, %v848
        %v937 = vadd.f32 %v934, %v936
        %v938 = vstv %s329
        %v939 = vmul.f32 %v938, %v876
        %v940 = vadd.f32 %v930, %v939
        %v941 = vstv %s401
        %v942 = vmul.f32 %v941, %v859
        %v943 = vadd.f32 %v940, %v942
        %v944 = vstv %s338
        %v945 = vmul.f32 %v944, %v876
        %v946 = vadd.f32 %v937, %v945
        %v947 = vstv %s410
        %v948 = vmul.f32 %v947, %v859
        %v949 = vadd.f32 %v946, %v948
        %v950 = vstv %s330
        %v951 = vmul.f32 %v950, %v879
        %v952 = vadd.f32 %v943, %v951
        %v953 = vstv %s402
        %v954 = vmul.f32 %v953, %v870
        %v955 = vadd.f32 %v952, %v954
        %v956 = vstv %s339
        %v957 = vmul.f32 %v956, %v879
        %v958 = vadd.f32 %v949, %v957
        %v959 = vstv %s411
        %v960 = vmul.f32 %v959, %v870
        %v961 = vadd.f32 %v958, %v960
        %v962 = vtanh.pop %v955
        %v963 = vmul.f32 %v961, 0.5
        %v964 = vtanh.pop %v963
        %v965 = vmul.f32 %v964, 0.5
        %v966 = vadd.f32 %v965, 0.5
        %v967 = vmul.f32 %v962, %v966
        %v968 = vstv %s331
        %v969 = vmul.f32 %v968, %v873
        %v970 = vstv %s447
        %v971 = vadd.f32 %v970, %v969
        %v972 = vstv %s403
        %v973 = vmul.f32 %v972, %v848
        %v974 = vadd.f32 %v971, %v973
        %v975 = vstv %s340
        %v976 = vmul.f32 %v975, %v873
        %v977 = vstv %s450
        %v978 = vadd.f32 %v977, %v976
        %v979 = vstv %s412
        %v980 = vmul.f32 %v979, %v848
        %v981 = vadd.f32 %v978, %v980
        %v982 = vstv %s332
        %v983 = vmul.f32 %v982, %v876
        %v984 = vadd.f32 %v974, %v983
        %v985 = vstv %s404
        %v986 = vmul.f32 %v985, %v859
        %v987 = vadd.f32 %v984, %v986
        %v988 = vstv %s341
        %v989 = vmul.f32 %v988, %v876
        %v990 = vadd.f32 %v981, %v989
        %v991 = vstv %s413
        %v992 = vmul.f32 %v991, %v859
        %v993 = vadd.f32 %v990, %v992
        %v994 = vstv %s333
        %v995 = vmul.f32 %v994, %v879
        %v996 = vadd.f32 %v987, %v995
        %v997 = vstv %s405
        %v998 = vmul.f32 %v997, %v870
        %v999 = vadd.f32 %v996, %v998
        %v1000 = vstv %s342
        %v1001 = vmul.f32 %v1000, %v879
        %v1002 = vadd.f32 %v993, %v1001
        %v1003 = vstv %s414
        %v1004 = vmul.f32 %v1003, %v870
        %v1005 = vadd.f32 %v1002, %v1004
        %v1006 = vtanh.pop %v999
        %v1007 = vmul.f32 %v1005, 0.5
        %v1008 = vtanh.pop %v1007
        %v1009 = vmul.f32 %v1008, 0.5
        %v1010 = vadd.f32 %v1009, 0.5
        %v1011 = vmul.f32 %v1006, %v1010
        %v1012 = vstv %s475
        %v1013 = vmul.f32 %v1012, %v923
        %v1014 = vstv %s490
        %v1015 = vadd.f32 %v1014, %v1013
        %v1016 = vstv %s476
        %v1017 = vmul.f32 %v1016, %v967
        %v1018 = vadd.f32 %v1015, %v1017
        %v1019 = vstv %s477
        %v1020 = vmul.f32 %v1019, %v1011
        %v1021 = vadd.f32 %v1018, %v1020
        %v1022 = vadd.f32 %v1021, %v848
        %v1023 = vstv %s478
        %v1024 = vmul.f32 %v1023, %v923
        %v1025 = vstv %s491
        %v1026 = vadd.f32 %v1025, %v1024
        %v1027 = vstv %s479
        %v1028 = vmul.f32 %v1027, %v967
        %v1029 = vadd.f32 %v1026, %v1028
        %v1030 = vstv %s480
        %v1031 = vmul.f32 %v1030, %v1011
        %v1032 = vadd.f32 %v1029, %v1031
        %v1033 = vadd.f32 %v1032, %v859
        %v1034 = vstv %s481
        %v1035 = vmul.f32 %v1034, %v923
        %v1036 = vstv %s492
        %v1037 = vadd.f32 %v1036, %v1035
        %v1038 = vstv %s482
        %v1039 = vmul.f32 %v1038, %v967
        %v1040 = vadd.f32 %v1037, %v1039
        %v1041 = vstv %s483
        %v1042 = vmul.f32 %v1041, %v1011
        %v1043 = vadd.f32 %v1040, %v1042
        %v1044 = vadd.f32 %v1043, %v870
        %p1045 = scmp.gt.s32.totalorder %s20, 0
        %s1046 = scalar_select %p1045, 1, 0
        %s1047 = scvt.s32.f32 %s1046
        %v1048 = vstv %s1047
        %v1049 = vmul.f32 %v514, %v1048
        %v1050 = vmul.f32 %v518, %v1048
        %v1051 = vmul.f32 %v522, %v1048
        %v1052 = vmul.f32 %v674, %v1048
        %v1053 = vmul.f32 %v685, %v1048
        %v1054 = vmul.f32 %v696, %v1048
        %v1055 = vmul.f32 %v848, %v1048
        %v1056 = vmul.f32 %v859, %v1048
        %v1057 = vmul.f32 %v870, %v1048
        %v1058 = vmul.f32 %v1022, %v1048
        %v1059 = vmul.f32 %v1033, %v1048
        %v1060 = vmul.f32 %v1044, %v1048
        %v1061 = vld [vmem:[%s255] sm:$0xff]
        %v1062 = vmul.f32 %v511, %v1061
        %v1063 = vadd.f32 %v1062, %v513
        %v1064 = vmul.f32 %v515, %v1061
        %v1065 = vadd.f32 %v1064, %v517
        %v1066 = vmul.f32 %v519, %v1061
        %v1067 = vadd.f32 %v1066, %v521
        %v1068 = vsel %vm508, %v1049, %v1063
        %1069 = vrot.lane.b32.xlu0 %v1068, 1
        %v1070 = vpop.permute.xlu0 %1069
        %v1071 = vsel %vm508, %v1050, %v1065
        %1072 = vrot.lane.b32.xlu0 %v1071, 1
        %v1073 = vpop.permute.xlu0 %1072
        %v1074 = vsel %vm508, %v1051, %v1067
        %1075 = vrot.lane.b32.xlu0 %v1074, 1
        %v1076 = vpop.permute.xlu0 %1075
        %v1077 = vmul.f32 %v532, %v1070
        %v1078 = vadd.f32 %v534, %v1077
        %v1079 = vmul.f32 %v536, %v1063
        %v1080 = vadd.f32 %v1078, %v1079
        %v1081 = vmul.f32 %v539, %v1070
        %v1082 = vadd.f32 %v541, %v1081
        %v1083 = vmul.f32 %v543, %v1063
        %v1084 = vadd.f32 %v1082, %v1083
        %v1085 = vmul.f32 %v546, %v1073
        %v1086 = vadd.f32 %v1080, %v1085
        %v1087 = vmul.f32 %v549, %v1065
        %v1088 = vadd.f32 %v1086, %v1087
        %v1089 = vmul.f32 %v552, %v1073
        %v1090 = vadd.f32 %v1084, %v1089
        %v1091 = vmul.f32 %v555, %v1065
        %v1092 = vadd.f32 %v1090, %v1091
        %v1093 = vmul.f32 %v558, %v1076
        %v1094 = vadd.f32 %v1088, %v1093
        %v1095 = vmul.f32 %v561, %v1067
        %v1096 = vadd.f32 %v1094, %v1095
        %v1097 = vmul.f32 %v564, %v1076
        %v1098 = vadd.f32 %v1092, %v1097
        %v1099 = vmul.f32 %v567, %v1067
        %v1100 = vadd.f32 %v1098, %v1099
        %v1101 = vtanh.pop %v1096
        %v1102 = vmul.f32 %v1100, 0.5
        %v1103 = vtanh.pop %v1102
        %v1104 = vmul.f32 %v1103, 0.5
        %v1105 = vadd.f32 %v1104, 0.5
        %v1106 = vmul.f32 %v1101, %v1105
        %v1107 = vstv %s493
        %v1108 = vmul.f32 %v1107, %v1106
        %v1109 = vstv %s505
        %v1110 = vadd.f32 %v1109, %v1108
        %v1111 = vmul.f32 %v576, %v1070
        %v1112 = vadd.f32 %v578, %v1111
        %v1113 = vmul.f32 %v580, %v1063
        %v1114 = vadd.f32 %v1112, %v1113
        %v1115 = vmul.f32 %v583, %v1070
        %v1116 = vadd.f32 %v585, %v1115
        %v1117 = vmul.f32 %v587, %v1063
        %v1118 = vadd.f32 %v1116, %v1117
        %v1119 = vmul.f32 %v590, %v1073
        %v1120 = vadd.f32 %v1114, %v1119
        %v1121 = vmul.f32 %v593, %v1065
        %v1122 = vadd.f32 %v1120, %v1121
        %v1123 = vmul.f32 %v596, %v1073
        %v1124 = vadd.f32 %v1118, %v1123
        %v1125 = vmul.f32 %v599, %v1065
        %v1126 = vadd.f32 %v1124, %v1125
        %v1127 = vmul.f32 %v602, %v1076
        %v1128 = vadd.f32 %v1122, %v1127
        %v1129 = vmul.f32 %v605, %v1067
        %v1130 = vadd.f32 %v1128, %v1129
        %v1131 = vmul.f32 %v608, %v1076
        %v1132 = vadd.f32 %v1126, %v1131
        %v1133 = vmul.f32 %v611, %v1067
        %v1134 = vadd.f32 %v1132, %v1133
        %v1135 = vtanh.pop %v1130
        %v1136 = vmul.f32 %v1134, 0.5
        %v1137 = vtanh.pop %v1136
        %v1138 = vmul.f32 %v1137, 0.5
        %v1139 = vadd.f32 %v1138, 0.5
        %v1140 = vmul.f32 %v1135, %v1139
        %v1141 = vstv %s494
        %v1142 = vmul.f32 %v1141, %v1140
        %v1143 = vadd.f32 %v1110, %v1142
        %v1144 = vmul.f32 %v620, %v1070
        %v1145 = vadd.f32 %v622, %v1144
        %v1146 = vmul.f32 %v624, %v1063
        %v1147 = vadd.f32 %v1145, %v1146
        %v1148 = vmul.f32 %v627, %v1070
        %v1149 = vadd.f32 %v629, %v1148
        %v1150 = vmul.f32 %v631, %v1063
        %v1151 = vadd.f32 %v1149, %v1150
        %v1152 = vmul.f32 %v634, %v1073
        %v1153 = vadd.f32 %v1147, %v1152
        %v1154 = vmul.f32 %v637, %v1065
        %v1155 = vadd.f32 %v1153, %v1154
        %v1156 = vmul.f32 %v640, %v1073
        %v1157 = vadd.f32 %v1151, %v1156
        %v1158 = vmul.f32 %v643, %v1065
        %v1159 = vadd.f32 %v1157, %v1158
        %v1160 = vmul.f32 %v646, %v1076
        %v1161 = vadd.f32 %v1155, %v1160
        %v1162 = vmul.f32 %v649, %v1067
        %v1163 = vadd.f32 %v1161, %v1162
        %v1164 = vmul.f32 %v652, %v1076
        %v1165 = vadd.f32 %v1159, %v1164
        %v1166 = vmul.f32 %v655, %v1067
        %v1167 = vadd.f32 %v1165, %v1166
        %v1168 = vtanh.pop %v1163
        %v1169 = vmul.f32 %v1167, 0.5
        %v1170 = vtanh.pop %v1169
        %v1171 = vmul.f32 %v1170, 0.5
        %v1172 = vadd.f32 %v1171, 0.5
        %v1173 = vmul.f32 %v1168, %v1172
        %v1174 = vstv %s495
        %v1175 = vmul.f32 %v1174, %v1173
        %v1176 = vadd.f32 %v1143, %v1175
        %v1177 = vmul.f32 %v664, %v1106
        %v1178 = vadd.f32 %v666, %v1177
        %v1179 = vmul.f32 %v668, %v1140
        %v1180 = vadd.f32 %v1178, %v1179
        %v1181 = vmul.f32 %v671, %v1173
        %v1182 = vadd.f32 %v1180, %v1181
        %v1183 = vadd.f32 %v1182, %v1063
        %v1184 = vmul.f32 %v675, %v1106
        %v1185 = vadd.f32 %v677, %v1184
        %v1186 = vmul.f32 %v679, %v1140
        %v1187 = vadd.f32 %v1185, %v1186
        %v1188 = vmul.f32 %v682, %v1173
        %v1189 = vadd.f32 %v1187, %v1188
        %v1190 = vadd.f32 %v1189, %v1065
        %v1191 = vmul.f32 %v686, %v1106
        %v1192 = vadd.f32 %v688, %v1191
        %v1193 = vmul.f32 %v690, %v1140
        %v1194 = vadd.f32 %v1192, %v1193
        %v1195 = vmul.f32 %v693, %v1173
        %v1196 = vadd.f32 %v1194, %v1195
        %v1197 = vadd.f32 %v1196, %v1067
        %v1198 = vsel %vm509, %v1052, %v1183
        %1199 = vrot.lane.b32.xlu0 %v1198, 2
        %v1200 = vpop.permute.xlu0 %1199
        %v1201 = vsel %vm509, %v1053, %v1190
        %1202 = vrot.lane.b32.xlu0 %v1201, 2
        %v1203 = vpop.permute.xlu0 %1202
        %v1204 = vsel %vm509, %v1054, %v1197
        %1205 = vrot.lane.b32.xlu0 %v1204, 2
        %v1206 = vpop.permute.xlu0 %1205
        %v1207 = vmul.f32 %v706, %v1200
        %v1208 = vadd.f32 %v708, %v1207
        %v1209 = vmul.f32 %v710, %v1183
        %v1210 = vadd.f32 %v1208, %v1209
        %v1211 = vmul.f32 %v713, %v1200
        %v1212 = vadd.f32 %v715, %v1211
        %v1213 = vmul.f32 %v717, %v1183
        %v1214 = vadd.f32 %v1212, %v1213
        %v1215 = vmul.f32 %v720, %v1203
        %v1216 = vadd.f32 %v1210, %v1215
        %v1217 = vmul.f32 %v723, %v1190
        %v1218 = vadd.f32 %v1216, %v1217
        %v1219 = vmul.f32 %v726, %v1203
        %v1220 = vadd.f32 %v1214, %v1219
        %v1221 = vmul.f32 %v729, %v1190
        %v1222 = vadd.f32 %v1220, %v1221
        %v1223 = vmul.f32 %v732, %v1206
        %v1224 = vadd.f32 %v1218, %v1223
        %v1225 = vmul.f32 %v735, %v1197
        %v1226 = vadd.f32 %v1224, %v1225
        %v1227 = vmul.f32 %v738, %v1206
        %v1228 = vadd.f32 %v1222, %v1227
        %v1229 = vmul.f32 %v741, %v1197
        %v1230 = vadd.f32 %v1228, %v1229
        %v1231 = vtanh.pop %v1226
        %v1232 = vmul.f32 %v1230, 0.5
        %v1233 = vtanh.pop %v1232
        %v1234 = vmul.f32 %v1233, 0.5
        %v1235 = vadd.f32 %v1234, 0.5
        %v1236 = vmul.f32 %v1231, %v1235
        %v1237 = vstv %s496
        %v1238 = vmul.f32 %v1237, %v1236
        %v1239 = vadd.f32 %v1176, %v1238
        %v1240 = vmul.f32 %v750, %v1200
        %v1241 = vadd.f32 %v752, %v1240
        %v1242 = vmul.f32 %v754, %v1183
        %v1243 = vadd.f32 %v1241, %v1242
        %v1244 = vmul.f32 %v757, %v1200
        %v1245 = vadd.f32 %v759, %v1244
        %v1246 = vmul.f32 %v761, %v1183
        %v1247 = vadd.f32 %v1245, %v1246
        %v1248 = vmul.f32 %v764, %v1203
        %v1249 = vadd.f32 %v1243, %v1248
        %v1250 = vmul.f32 %v767, %v1190
        %v1251 = vadd.f32 %v1249, %v1250
        %v1252 = vmul.f32 %v770, %v1203
        %v1253 = vadd.f32 %v1247, %v1252
        %v1254 = vmul.f32 %v773, %v1190
        %v1255 = vadd.f32 %v1253, %v1254
        %v1256 = vmul.f32 %v776, %v1206
        %v1257 = vadd.f32 %v1251, %v1256
        %v1258 = vmul.f32 %v779, %v1197
        %v1259 = vadd.f32 %v1257, %v1258
        %v1260 = vmul.f32 %v782, %v1206
        %v1261 = vadd.f32 %v1255, %v1260
        %v1262 = vmul.f32 %v785, %v1197
        %v1263 = vadd.f32 %v1261, %v1262
        %v1264 = vtanh.pop %v1259
        %v1265 = vmul.f32 %v1263, 0.5
        %v1266 = vtanh.pop %v1265
        %v1267 = vmul.f32 %v1266, 0.5
        %v1268 = vadd.f32 %v1267, 0.5
        %v1269 = vmul.f32 %v1264, %v1268
        %v1270 = vstv %s497
        %v1271 = vmul.f32 %v1270, %v1269
        %v1272 = vadd.f32 %v1239, %v1271
        %v1273 = vmul.f32 %v794, %v1200
        %v1274 = vadd.f32 %v796, %v1273
        %v1275 = vmul.f32 %v798, %v1183
        %v1276 = vadd.f32 %v1274, %v1275
        %v1277 = vmul.f32 %v801, %v1200
        %v1278 = vadd.f32 %v803, %v1277
        %v1279 = vmul.f32 %v805, %v1183
        %v1280 = vadd.f32 %v1278, %v1279
        %v1281 = vmul.f32 %v808, %v1203
        %v1282 = vadd.f32 %v1276, %v1281
        %v1283 = vmul.f32 %v811, %v1190
        %v1284 = vadd.f32 %v1282, %v1283
        %v1285 = vmul.f32 %v814, %v1203
        %v1286 = vadd.f32 %v1280, %v1285
        %v1287 = vmul.f32 %v817, %v1190
        %v1288 = vadd.f32 %v1286, %v1287
        %v1289 = vmul.f32 %v820, %v1206
        %v1290 = vadd.f32 %v1284, %v1289
        %v1291 = vmul.f32 %v823, %v1197
        %v1292 = vadd.f32 %v1290, %v1291
        %v1293 = vmul.f32 %v826, %v1206
        %v1294 = vadd.f32 %v1288, %v1293
        %v1295 = vmul.f32 %v829, %v1197
        %v1296 = vadd.f32 %v1294, %v1295
        %v1297 = vtanh.pop %v1292
        %v1298 = vmul.f32 %v1296, 0.5
        %v1299 = vtanh.pop %v1298
        %v1300 = vmul.f32 %v1299, 0.5
        %v1301 = vadd.f32 %v1300, 0.5
        %v1302 = vmul.f32 %v1297, %v1301
        %v1303 = vstv %s498
        %v1304 = vmul.f32 %v1303, %v1302
        %v1305 = vadd.f32 %v1272, %v1304
        %v1306 = vmul.f32 %v838, %v1236
        %v1307 = vadd.f32 %v840, %v1306
        %v1308 = vmul.f32 %v842, %v1269
        %v1309 = vadd.f32 %v1307, %v1308
        %v1310 = vmul.f32 %v845, %v1302
        %v1311 = vadd.f32 %v1309, %v1310
        %v1312 = vadd.f32 %v1311, %v1183
        %v1313 = vmul.f32 %v849, %v1236
        %v1314 = vadd.f32 %v851, %v1313
        %v1315 = vmul.f32 %v853, %v1269
        %v1316 = vadd.f32 %v1314, %v1315
        %v1317 = vmul.f32 %v856, %v1302
        %v1318 = vadd.f32 %v1316, %v1317
        %v1319 = vadd.f32 %v1318, %v1190
        %v1320 = vmul.f32 %v860, %v1236
        %v1321 = vadd.f32 %v862, %v1320
        %v1322 = vmul.f32 %v864, %v1269
        %v1323 = vadd.f32 %v1321, %v1322
        %v1324 = vmul.f32 %v867, %v1302
        %v1325 = vadd.f32 %v1323, %v1324
        %v1326 = vadd.f32 %v1325, %v1197
        %v1327 = vsel %vm508, %v1055, %v1312
        %1328 = vrot.lane.b32.xlu0 %v1327, 1
        %v1329 = vpop.permute.xlu0 %1328
        %v1330 = vsel %vm508, %v1056, %v1319
        %1331 = vrot.lane.b32.xlu0 %v1330, 1
        %v1332 = vpop.permute.xlu0 %1331
        %v1333 = vsel %vm508, %v1057, %v1326
        %1334 = vrot.lane.b32.xlu0 %v1333, 1
        %v1335 = vpop.permute.xlu0 %1334
        %v1336 = vmul.f32 %v880, %v1329
        %v1337 = vadd.f32 %v882, %v1336
        %v1338 = vmul.f32 %v884, %v1312
        %v1339 = vadd.f32 %v1337, %v1338
        %v1340 = vmul.f32 %v887, %v1329
        %v1341 = vadd.f32 %v889, %v1340
        %v1342 = vmul.f32 %v891, %v1312
        %v1343 = vadd.f32 %v1341, %v1342
        %v1344 = vmul.f32 %v894, %v1332
        %v1345 = vadd.f32 %v1339, %v1344
        %v1346 = vmul.f32 %v897, %v1319
        %v1347 = vadd.f32 %v1345, %v1346
        %v1348 = vmul.f32 %v900, %v1332
        %v1349 = vadd.f32 %v1343, %v1348
        %v1350 = vmul.f32 %v903, %v1319
        %v1351 = vadd.f32 %v1349, %v1350
        %v1352 = vmul.f32 %v906, %v1335
        %v1353 = vadd.f32 %v1347, %v1352
        %v1354 = vmul.f32 %v909, %v1326
        %v1355 = vadd.f32 %v1353, %v1354
        %v1356 = vmul.f32 %v912, %v1335
        %v1357 = vadd.f32 %v1351, %v1356
        %v1358 = vmul.f32 %v915, %v1326
        %v1359 = vadd.f32 %v1357, %v1358
        %v1360 = vtanh.pop %v1355
        %v1361 = vmul.f32 %v1359, 0.5
        %v1362 = vtanh.pop %v1361
        %v1363 = vmul.f32 %v1362, 0.5
        %v1364 = vadd.f32 %v1363, 0.5
        %v1365 = vmul.f32 %v1360, %v1364
        %v1366 = vstv %s499
        %v1367 = vmul.f32 %v1366, %v1365
        %v1368 = vadd.f32 %v1305, %v1367
        %v1369 = vmul.f32 %v924, %v1329
        %v1370 = vadd.f32 %v926, %v1369
        %v1371 = vmul.f32 %v928, %v1312
        %v1372 = vadd.f32 %v1370, %v1371
        %v1373 = vmul.f32 %v931, %v1329
        %v1374 = vadd.f32 %v933, %v1373
        %v1375 = vmul.f32 %v935, %v1312
        %v1376 = vadd.f32 %v1374, %v1375
        %v1377 = vmul.f32 %v938, %v1332
        %v1378 = vadd.f32 %v1372, %v1377
        %v1379 = vmul.f32 %v941, %v1319
        %v1380 = vadd.f32 %v1378, %v1379
        %v1381 = vmul.f32 %v944, %v1332
        %v1382 = vadd.f32 %v1376, %v1381
        %v1383 = vmul.f32 %v947, %v1319
        %v1384 = vadd.f32 %v1382, %v1383
        %v1385 = vmul.f32 %v950, %v1335
        %v1386 = vadd.f32 %v1380, %v1385
        %v1387 = vmul.f32 %v953, %v1326
        %v1388 = vadd.f32 %v1386, %v1387
        %v1389 = vmul.f32 %v956, %v1335
        %v1390 = vadd.f32 %v1384, %v1389
        %v1391 = vmul.f32 %v959, %v1326
        %v1392 = vadd.f32 %v1390, %v1391
        %v1393 = vtanh.pop %v1388
        %v1394 = vmul.f32 %v1392, 0.5
        %v1395 = vtanh.pop %v1394
        %v1396 = vmul.f32 %v1395, 0.5
        %v1397 = vadd.f32 %v1396, 0.5
        %v1398 = vmul.f32 %v1393, %v1397
        %v1399 = vstv %s500
        %v1400 = vmul.f32 %v1399, %v1398
        %v1401 = vadd.f32 %v1368, %v1400
        %v1402 = vmul.f32 %v968, %v1329
        %v1403 = vadd.f32 %v970, %v1402
        %v1404 = vmul.f32 %v972, %v1312
        %v1405 = vadd.f32 %v1403, %v1404
        %v1406 = vmul.f32 %v975, %v1329
        %v1407 = vadd.f32 %v977, %v1406
        %v1408 = vmul.f32 %v979, %v1312
        %v1409 = vadd.f32 %v1407, %v1408
        %v1410 = vmul.f32 %v982, %v1332
        %v1411 = vadd.f32 %v1405, %v1410
        %v1412 = vmul.f32 %v985, %v1319
        %v1413 = vadd.f32 %v1411, %v1412
        %v1414 = vmul.f32 %v988, %v1332
        %v1415 = vadd.f32 %v1409, %v1414
        %v1416 = vmul.f32 %v991, %v1319
        %v1417 = vadd.f32 %v1415, %v1416
        %v1418 = vmul.f32 %v994, %v1335
        %v1419 = vadd.f32 %v1413, %v1418
        %v1420 = vmul.f32 %v997, %v1326
        %v1421 = vadd.f32 %v1419, %v1420
        %v1422 = vmul.f32 %v1000, %v1335
        %v1423 = vadd.f32 %v1417, %v1422
        %v1424 = vmul.f32 %v1003, %v1326
        %v1425 = vadd.f32 %v1423, %v1424
        %v1426 = vtanh.pop %v1421
        %v1427 = vmul.f32 %v1425, 0.5
        %v1428 = vtanh.pop %v1427
        %v1429 = vmul.f32 %v1428, 0.5
        %v1430 = vadd.f32 %v1429, 0.5
        %v1431 = vmul.f32 %v1426, %v1430
        %v1432 = vstv %s501
        %v1433 = vmul.f32 %v1432, %v1431
        %v1434 = vadd.f32 %v1401, %v1433
        %v1435 = vmul.f32 %v1012, %v1365
        %v1436 = vadd.f32 %v1014, %v1435
        %v1437 = vmul.f32 %v1016, %v1398
        %v1438 = vadd.f32 %v1436, %v1437
        %v1439 = vmul.f32 %v1019, %v1431
        %v1440 = vadd.f32 %v1438, %v1439
        %v1441 = vadd.f32 %v1440, %v1312
        %v1442 = vmul.f32 %v1023, %v1365
        %v1443 = vadd.f32 %v1025, %v1442
        %v1444 = vmul.f32 %v1027, %v1398
        %v1445 = vadd.f32 %v1443, %v1444
        %v1446 = vmul.f32 %v1030, %v1431
        %v1447 = vadd.f32 %v1445, %v1446
        %v1448 = vadd.f32 %v1447, %v1319
        %v1449 = vmul.f32 %v1034, %v1365
        %v1450 = vadd.f32 %v1036, %v1449
        %v1451 = vmul.f32 %v1038, %v1398
        %v1452 = vadd.f32 %v1450, %v1451
        %v1453 = vmul.f32 %v1041, %v1431
        %v1454 = vadd.f32 %v1452, %v1453
        %v1455 = vadd.f32 %v1454, %v1326
        %v1456 = vsel %vm509, %v1058, %v1441
        %1457 = vrot.lane.b32.xlu0 %v1456, 2
        %v1458 = vpop.permute.xlu0 %1457
        %v1459 = vsel %vm509, %v1059, %v1448
        %1460 = vrot.lane.b32.xlu0 %v1459, 2
        %v1461 = vpop.permute.xlu0 %1460
        %v1462 = vsel %vm509, %v1060, %v1455
        %1463 = vrot.lane.b32.xlu0 %v1462, 2
        %v1464 = vpop.permute.xlu0 %1463
        %v1465 = vstv %s343
        %v1466 = vmul.f32 %v1465, %v1458
        %v1467 = vstv %s451
        %v1468 = vadd.f32 %v1467, %v1466
        %v1469 = vstv %s415
        %v1470 = vmul.f32 %v1469, %v1441
        %v1471 = vadd.f32 %v1468, %v1470
        %v1472 = vstv %s352
        %v1473 = vmul.f32 %v1472, %v1458
        %v1474 = vstv %s454
        %v1475 = vadd.f32 %v1474, %v1473
        %v1476 = vstv %s424
        %v1477 = vmul.f32 %v1476, %v1441
        %v1478 = vadd.f32 %v1475, %v1477
        %v1479 = vstv %s344
        %v1480 = vmul.f32 %v1479, %v1461
        %v1481 = vadd.f32 %v1471, %v1480
        %v1482 = vstv %s416
        %v1483 = vmul.f32 %v1482, %v1448
        %v1484 = vadd.f32 %v1481, %v1483
        %v1485 = vstv %s353
        %v1486 = vmul.f32 %v1485, %v1461
        %v1487 = vadd.f32 %v1478, %v1486
        %v1488 = vstv %s425
        %v1489 = vmul.f32 %v1488, %v1448
        %v1490 = vadd.f32 %v1487, %v1489
        %v1491 = vstv %s345
        %v1492 = vmul.f32 %v1491, %v1464
        %v1493 = vadd.f32 %v1484, %v1492
        %v1494 = vstv %s417
        %v1495 = vmul.f32 %v1494, %v1455
        %v1496 = vadd.f32 %v1493, %v1495
        %v1497 = vstv %s354
        %v1498 = vmul.f32 %v1497, %v1464
        %v1499 = vadd.f32 %v1490, %v1498
        %v1500 = vstv %s426
        %v1501 = vmul.f32 %v1500, %v1455
        %v1502 = vadd.f32 %v1499, %v1501
        %v1503 = vtanh.pop %v1496
        %v1504 = vmul.f32 %v1502, 0.5
        %v1505 = vtanh.pop %v1504
        %v1506 = vmul.f32 %v1505, 0.5
        %v1507 = vadd.f32 %v1506, 0.5
        %v1508 = vmul.f32 %v1503, %v1507
        %v1509 = vstv %s502
        %v1510 = vmul.f32 %v1509, %v1508
        %v1511 = vadd.f32 %v1434, %v1510
        %v1512 = vstv %s346
        %v1513 = vmul.f32 %v1512, %v1458
        %v1514 = vstv %s452
        %v1515 = vadd.f32 %v1514, %v1513
        %v1516 = vstv %s418
        %v1517 = vmul.f32 %v1516, %v1441
        %v1518 = vadd.f32 %v1515, %v1517
        %v1519 = vstv %s355
        %v1520 = vmul.f32 %v1519, %v1458
        %v1521 = vstv %s455
        %v1522 = vadd.f32 %v1521, %v1520
        %v1523 = vstv %s427
        %v1524 = vmul.f32 %v1523, %v1441
        %v1525 = vadd.f32 %v1522, %v1524
        %v1526 = vstv %s347
        %v1527 = vmul.f32 %v1526, %v1461
        %v1528 = vadd.f32 %v1518, %v1527
        %v1529 = vstv %s419
        %v1530 = vmul.f32 %v1529, %v1448
        %v1531 = vadd.f32 %v1528, %v1530
        %v1532 = vstv %s356
        %v1533 = vmul.f32 %v1532, %v1461
        %v1534 = vadd.f32 %v1525, %v1533
        %v1535 = vstv %s428
        %v1536 = vmul.f32 %v1535, %v1448
        %v1537 = vadd.f32 %v1534, %v1536
        %v1538 = vstv %s348
        %v1539 = vmul.f32 %v1538, %v1464
        %v1540 = vadd.f32 %v1531, %v1539
        %v1541 = vstv %s420
        %v1542 = vmul.f32 %v1541, %v1455
        %v1543 = vadd.f32 %v1540, %v1542
        %v1544 = vstv %s357
        %v1545 = vmul.f32 %v1544, %v1464
        %v1546 = vadd.f32 %v1537, %v1545
        %v1547 = vstv %s429
        %v1548 = vmul.f32 %v1547, %v1455
        %v1549 = vadd.f32 %v1546, %v1548
        %v1550 = vtanh.pop %v1543
        %v1551 = vmul.f32 %v1549, 0.5
        %v1552 = vtanh.pop %v1551
        %v1553 = vmul.f32 %v1552, 0.5
        %v1554 = vadd.f32 %v1553, 0.5
        %v1555 = vmul.f32 %v1550, %v1554
        %v1556 = vstv %s503
        %v1557 = vmul.f32 %v1556, %v1555
        %v1558 = vadd.f32 %v1511, %v1557
        %v1559 = vstv %s349
        %v1560 = vmul.f32 %v1559, %v1458
        %v1561 = vstv %s453
        %v1562 = vadd.f32 %v1561, %v1560
        %v1563 = vstv %s421
        %v1564 = vmul.f32 %v1563, %v1441
        %v1565 = vadd.f32 %v1562, %v1564
        %v1566 = vstv %s358
        %v1567 = vmul.f32 %v1566, %v1458
        %v1568 = vstv %s456
        %v1569 = vadd.f32 %v1568, %v1567
        %v1570 = vstv %s430
        %v1571 = vmul.f32 %v1570, %v1441
        %v1572 = vadd.f32 %v1569, %v1571
        %v1573 = vstv %s350
        %v1574 = vmul.f32 %v1573, %v1461
        %v1575 = vadd.f32 %v1565, %v1574
        %v1576 = vstv %s422
        %v1577 = vmul.f32 %v1576, %v1448
        %v1578 = vadd.f32 %v1575, %v1577
        %v1579 = vstv %s359
        %v1580 = vmul.f32 %v1579, %v1461
        %v1581 = vadd.f32 %v1572, %v1580
        %v1582 = vstv %s431
        %v1583 = vmul.f32 %v1582, %v1448
        %v1584 = vadd.f32 %v1581, %v1583
        %v1585 = vstv %s351
        %v1586 = vmul.f32 %v1585, %v1464
        %v1587 = vadd.f32 %v1578, %v1586
        %v1588 = vstv %s423
        %v1589 = vmul.f32 %v1588, %v1455
        %v1590 = vadd.f32 %v1587, %v1589
        %v1591 = vstv %s360
        %v1592 = vmul.f32 %v1591, %v1464
        %v1593 = vadd.f32 %v1584, %v1592
        %v1594 = vstv %s432
        %v1595 = vmul.f32 %v1594, %v1455
        %v1596 = vadd.f32 %v1593, %v1595
        %v1597 = vtanh.pop %v1590
        %v1598 = vmul.f32 %v1596, 0.5
        %v1599 = vtanh.pop %v1598
        %v1600 = vmul.f32 %v1599, 0.5
        %v1601 = vadd.f32 %v1600, 0.5
        %v1602 = vmul.f32 %v1597, %v1601
        %v1603 = vstv %s504
        %v1604 = vmul.f32 %v1603, %v1602
        %v1605 = vadd.f32 %v1558, %v1604
        %1606 = vst [vmem:[%s281] sm:$0xff] %v1605
        %s1607 = scalar_lea.vmem %s255, 8
        %v1608 = vld [vmem:[%s1607] sm:$0xff]
        %v1609 = vmul.f32 %v511, %v1608
        %v1610 = vadd.f32 %v1609, %v513
        %v1611 = vmul.f32 %v515, %v1608
        %v1612 = vadd.f32 %v1611, %v517
        %v1613 = vmul.f32 %v519, %v1608
        %v1614 = vadd.f32 %v1613, %v521
        %v1615 = vsel %vm508, %v1063, %v1610
        %1616 = vrot.lane.b32.xlu0 %v1615, 1
        %v1617 = vpop.permute.xlu0 %1616
        %v1618 = vsel %vm508, %v1065, %v1612
        %1619 = vrot.lane.b32.xlu0 %v1618, 1
        %v1620 = vpop.permute.xlu0 %1619
        %v1621 = vsel %vm508, %v1067, %v1614
        %1622 = vrot.lane.b32.xlu0 %v1621, 1
        %v1623 = vpop.permute.xlu0 %1622
        %v1624 = vmul.f32 %v532, %v1617
        %v1625 = vadd.f32 %v534, %v1624
        %v1626 = vmul.f32 %v536, %v1610
        %v1627 = vadd.f32 %v1625, %v1626
        %v1628 = vmul.f32 %v539, %v1617
        %v1629 = vadd.f32 %v541, %v1628
        %v1630 = vmul.f32 %v543, %v1610
        %v1631 = vadd.f32 %v1629, %v1630
        %v1632 = vmul.f32 %v546, %v1620
        %v1633 = vadd.f32 %v1627, %v1632
        %v1634 = vmul.f32 %v549, %v1612
        %v1635 = vadd.f32 %v1633, %v1634
        %v1636 = vmul.f32 %v552, %v1620
        %v1637 = vadd.f32 %v1631, %v1636
        %v1638 = vmul.f32 %v555, %v1612
        %v1639 = vadd.f32 %v1637, %v1638
        %v1640 = vmul.f32 %v558, %v1623
        %v1641 = vadd.f32 %v1635, %v1640
        %v1642 = vmul.f32 %v561, %v1614
        %v1643 = vadd.f32 %v1641, %v1642
        %v1644 = vmul.f32 %v564, %v1623
        %v1645 = vadd.f32 %v1639, %v1644
        %v1646 = vmul.f32 %v567, %v1614
        %v1647 = vadd.f32 %v1645, %v1646
        %v1648 = vtanh.pop %v1643
        %v1649 = vmul.f32 %v1647, 0.5
        %v1650 = vtanh.pop %v1649
        %v1651 = vmul.f32 %v1650, 0.5
        %v1652 = vadd.f32 %v1651, 0.5
        %v1653 = vmul.f32 %v1648, %v1652
        %v1654 = vmul.f32 %v1107, %v1653
        %v1655 = vadd.f32 %v1109, %v1654
        %v1656 = vmul.f32 %v576, %v1617
        %v1657 = vadd.f32 %v578, %v1656
        %v1658 = vmul.f32 %v580, %v1610
        %v1659 = vadd.f32 %v1657, %v1658
        %v1660 = vmul.f32 %v583, %v1617
        %v1661 = vadd.f32 %v585, %v1660
        %v1662 = vmul.f32 %v587, %v1610
        %v1663 = vadd.f32 %v1661, %v1662
        %v1664 = vmul.f32 %v590, %v1620
        %v1665 = vadd.f32 %v1659, %v1664
        %v1666 = vmul.f32 %v593, %v1612
        %v1667 = vadd.f32 %v1665, %v1666
        %v1668 = vmul.f32 %v596, %v1620
        %v1669 = vadd.f32 %v1663, %v1668
        %v1670 = vmul.f32 %v599, %v1612
        %v1671 = vadd.f32 %v1669, %v1670
        %v1672 = vmul.f32 %v602, %v1623
        %v1673 = vadd.f32 %v1667, %v1672
        %v1674 = vmul.f32 %v605, %v1614
        %v1675 = vadd.f32 %v1673, %v1674
        %v1676 = vmul.f32 %v608, %v1623
        %v1677 = vadd.f32 %v1671, %v1676
        %v1678 = vmul.f32 %v611, %v1614
        %v1679 = vadd.f32 %v1677, %v1678
        %v1680 = vtanh.pop %v1675
        %v1681 = vmul.f32 %v1679, 0.5
        %v1682 = vtanh.pop %v1681
        %v1683 = vmul.f32 %v1682, 0.5
        %v1684 = vadd.f32 %v1683, 0.5
        %v1685 = vmul.f32 %v1680, %v1684
        %v1686 = vmul.f32 %v1141, %v1685
        %v1687 = vadd.f32 %v1655, %v1686
        %v1688 = vmul.f32 %v620, %v1617
        %v1689 = vadd.f32 %v622, %v1688
        %v1690 = vmul.f32 %v624, %v1610
        %v1691 = vadd.f32 %v1689, %v1690
        %v1692 = vmul.f32 %v627, %v1617
        %v1693 = vadd.f32 %v629, %v1692
        %v1694 = vmul.f32 %v631, %v1610
        %v1695 = vadd.f32 %v1693, %v1694
        %v1696 = vmul.f32 %v634, %v1620
        %v1697 = vadd.f32 %v1691, %v1696
        %v1698 = vmul.f32 %v637, %v1612
        %v1699 = vadd.f32 %v1697, %v1698
        %v1700 = vmul.f32 %v640, %v1620
        %v1701 = vadd.f32 %v1695, %v1700
        %v1702 = vmul.f32 %v643, %v1612
        %v1703 = vadd.f32 %v1701, %v1702
        %v1704 = vmul.f32 %v646, %v1623
        %v1705 = vadd.f32 %v1699, %v1704
        %v1706 = vmul.f32 %v649, %v1614
        %v1707 = vadd.f32 %v1705, %v1706
        %v1708 = vmul.f32 %v652, %v1623
        %v1709 = vadd.f32 %v1703, %v1708
        %v1710 = vmul.f32 %v655, %v1614
        %v1711 = vadd.f32 %v1709, %v1710
        %v1712 = vtanh.pop %v1707
        %v1713 = vmul.f32 %v1711, 0.5
        %v1714 = vtanh.pop %v1713
        %v1715 = vmul.f32 %v1714, 0.5
        %v1716 = vadd.f32 %v1715, 0.5
        %v1717 = vmul.f32 %v1712, %v1716
        %v1718 = vmul.f32 %v1174, %v1717
        %v1719 = vadd.f32 %v1687, %v1718
        %v1720 = vmul.f32 %v664, %v1653
        %v1721 = vadd.f32 %v666, %v1720
        %v1722 = vmul.f32 %v668, %v1685
        %v1723 = vadd.f32 %v1721, %v1722
        %v1724 = vmul.f32 %v671, %v1717
        %v1725 = vadd.f32 %v1723, %v1724
        %v1726 = vadd.f32 %v1725, %v1610
        %v1727 = vmul.f32 %v675, %v1653
        %v1728 = vadd.f32 %v677, %v1727
        %v1729 = vmul.f32 %v679, %v1685
        %v1730 = vadd.f32 %v1728, %v1729
        %v1731 = vmul.f32 %v682, %v1717
        %v1732 = vadd.f32 %v1730, %v1731
        %v1733 = vadd.f32 %v1732, %v1612
        %v1734 = vmul.f32 %v686, %v1653
        %v1735 = vadd.f32 %v688, %v1734
        %v1736 = vmul.f32 %v690, %v1685
        %v1737 = vadd.f32 %v1735, %v1736
        %v1738 = vmul.f32 %v693, %v1717
        %v1739 = vadd.f32 %v1737, %v1738
        %v1740 = vadd.f32 %v1739, %v1614
        %v1741 = vsel %vm509, %v1183, %v1726
        %1742 = vrot.lane.b32.xlu0 %v1741, 2
        %v1743 = vpop.permute.xlu0 %1742
        %v1744 = vsel %vm509, %v1190, %v1733
        %1745 = vrot.lane.b32.xlu0 %v1744, 2
        %v1746 = vpop.permute.xlu0 %1745
        %v1747 = vsel %vm509, %v1197, %v1740
        %1748 = vrot.lane.b32.xlu0 %v1747, 2
        %v1749 = vpop.permute.xlu0 %1748
        %v1750 = vmul.f32 %v706, %v1743
        %v1751 = vadd.f32 %v708, %v1750
        %v1752 = vmul.f32 %v710, %v1726
        %v1753 = vadd.f32 %v1751, %v1752
        %v1754 = vmul.f32 %v713, %v1743
        %v1755 = vadd.f32 %v715, %v1754
        %v1756 = vmul.f32 %v717, %v1726
        %v1757 = vadd.f32 %v1755, %v1756
        %v1758 = vmul.f32 %v720, %v1746
        %v1759 = vadd.f32 %v1753, %v1758
        %v1760 = vmul.f32 %v723, %v1733
        %v1761 = vadd.f32 %v1759, %v1760
        %v1762 = vmul.f32 %v726, %v1746
        %v1763 = vadd.f32 %v1757, %v1762
        %v1764 = vmul.f32 %v729, %v1733
        %v1765 = vadd.f32 %v1763, %v1764
        %v1766 = vmul.f32 %v732, %v1749
        %v1767 = vadd.f32 %v1761, %v1766
        %v1768 = vmul.f32 %v735, %v1740
        %v1769 = vadd.f32 %v1767, %v1768
        %v1770 = vmul.f32 %v738, %v1749
        %v1771 = vadd.f32 %v1765, %v1770
        %v1772 = vmul.f32 %v741, %v1740
        %v1773 = vadd.f32 %v1771, %v1772
        %v1774 = vtanh.pop %v1769
        %v1775 = vmul.f32 %v1773, 0.5
        %v1776 = vtanh.pop %v1775
        %v1777 = vmul.f32 %v1776, 0.5
        %v1778 = vadd.f32 %v1777, 0.5
        %v1779 = vmul.f32 %v1774, %v1778
        %v1780 = vmul.f32 %v1237, %v1779
        %v1781 = vadd.f32 %v1719, %v1780
        %v1782 = vmul.f32 %v750, %v1743
        %v1783 = vadd.f32 %v752, %v1782
        %v1784 = vmul.f32 %v754, %v1726
        %v1785 = vadd.f32 %v1783, %v1784
        %v1786 = vmul.f32 %v757, %v1743
        %v1787 = vadd.f32 %v759, %v1786
        %v1788 = vmul.f32 %v761, %v1726
        %v1789 = vadd.f32 %v1787, %v1788
        %v1790 = vmul.f32 %v764, %v1746
        %v1791 = vadd.f32 %v1785, %v1790
        %v1792 = vmul.f32 %v767, %v1733
        %v1793 = vadd.f32 %v1791, %v1792
        %v1794 = vmul.f32 %v770, %v1746
        %v1795 = vadd.f32 %v1789, %v1794
        %v1796 = vmul.f32 %v773, %v1733
        %v1797 = vadd.f32 %v1795, %v1796
        %v1798 = vmul.f32 %v776, %v1749
        %v1799 = vadd.f32 %v1793, %v1798
        %v1800 = vmul.f32 %v779, %v1740
        %v1801 = vadd.f32 %v1799, %v1800
        %v1802 = vmul.f32 %v782, %v1749
        %v1803 = vadd.f32 %v1797, %v1802
        %v1804 = vmul.f32 %v785, %v1740
        %v1805 = vadd.f32 %v1803, %v1804
        %v1806 = vtanh.pop %v1801
        %v1807 = vmul.f32 %v1805, 0.5
        %v1808 = vtanh.pop %v1807
        %v1809 = vmul.f32 %v1808, 0.5
        %v1810 = vadd.f32 %v1809, 0.5
        %v1811 = vmul.f32 %v1806, %v1810
        %v1812 = vmul.f32 %v1270, %v1811
        %v1813 = vadd.f32 %v1781, %v1812
        %v1814 = vmul.f32 %v794, %v1743
        %v1815 = vadd.f32 %v796, %v1814
        %v1816 = vmul.f32 %v798, %v1726
        %v1817 = vadd.f32 %v1815, %v1816
        %v1818 = vmul.f32 %v801, %v1743
        %v1819 = vadd.f32 %v803, %v1818
        %v1820 = vmul.f32 %v805, %v1726
        %v1821 = vadd.f32 %v1819, %v1820
        %v1822 = vmul.f32 %v808, %v1746
        %v1823 = vadd.f32 %v1817, %v1822
        %v1824 = vmul.f32 %v811, %v1733
        %v1825 = vadd.f32 %v1823, %v1824
        %v1826 = vmul.f32 %v814, %v1746
        %v1827 = vadd.f32 %v1821, %v1826
        %v1828 = vmul.f32 %v817, %v1733
        %v1829 = vadd.f32 %v1827, %v1828
        %v1830 = vmul.f32 %v820, %v1749
        %v1831 = vadd.f32 %v1825, %v1830
        %v1832 = vmul.f32 %v823, %v1740
        %v1833 = vadd.f32 %v1831, %v1832
        %v1834 = vmul.f32 %v826, %v1749
        %v1835 = vadd.f32 %v1829, %v1834
        %v1836 = vmul.f32 %v829, %v1740
        %v1837 = vadd.f32 %v1835, %v1836
        %v1838 = vtanh.pop %v1833
        %v1839 = vmul.f32 %v1837, 0.5
        %v1840 = vtanh.pop %v1839
        %v1841 = vmul.f32 %v1840, 0.5
        %v1842 = vadd.f32 %v1841, 0.5
        %v1843 = vmul.f32 %v1838, %v1842
        %v1844 = vmul.f32 %v1303, %v1843
        %v1845 = vadd.f32 %v1813, %v1844
        %v1846 = vmul.f32 %v838, %v1779
        %v1847 = vadd.f32 %v840, %v1846
        %v1848 = vmul.f32 %v842, %v1811
        %v1849 = vadd.f32 %v1847, %v1848
        %v1850 = vmul.f32 %v845, %v1843
        %v1851 = vadd.f32 %v1849, %v1850
        %v1852 = vadd.f32 %v1851, %v1726
        %v1853 = vmul.f32 %v849, %v1779
        %v1854 = vadd.f32 %v851, %v1853
        %v1855 = vmul.f32 %v853, %v1811
        %v1856 = vadd.f32 %v1854, %v1855
        %v1857 = vmul.f32 %v856, %v1843
        %v1858 = vadd.f32 %v1856, %v1857
        %v1859 = vadd.f32 %v1858, %v1733
        %v1860 = vmul.f32 %v860, %v1779
        %v1861 = vadd.f32 %v862, %v1860
        %v1862 = vmul.f32 %v864, %v1811
        %v1863 = vadd.f32 %v1861, %v1862
        %v1864 = vmul.f32 %v867, %v1843
        %v1865 = vadd.f32 %v1863, %v1864
        %v1866 = vadd.f32 %v1865, %v1740
        %v1867 = vsel %vm508, %v1312, %v1852
        %1868 = vrot.lane.b32.xlu0 %v1867, 1
        %v1869 = vpop.permute.xlu0 %1868
        %v1870 = vsel %vm508, %v1319, %v1859
        %1871 = vrot.lane.b32.xlu0 %v1870, 1
        %v1872 = vpop.permute.xlu0 %1871
        %v1873 = vsel %vm508, %v1326, %v1866
        %1874 = vrot.lane.b32.xlu0 %v1873, 1
        %v1875 = vpop.permute.xlu0 %1874
        %v1876 = vmul.f32 %v880, %v1869
        %v1877 = vadd.f32 %v882, %v1876
        %v1878 = vmul.f32 %v884, %v1852
        %v1879 = vadd.f32 %v1877, %v1878
        %v1880 = vmul.f32 %v887, %v1869
        %v1881 = vadd.f32 %v889, %v1880
        %v1882 = vmul.f32 %v891, %v1852
        %v1883 = vadd.f32 %v1881, %v1882
        %v1884 = vmul.f32 %v894, %v1872
        %v1885 = vadd.f32 %v1879, %v1884
        %v1886 = vmul.f32 %v897, %v1859
        %v1887 = vadd.f32 %v1885, %v1886
        %v1888 = vmul.f32 %v900, %v1872
        %v1889 = vadd.f32 %v1883, %v1888
        %v1890 = vmul.f32 %v903, %v1859
        %v1891 = vadd.f32 %v1889, %v1890
        %v1892 = vmul.f32 %v906, %v1875
        %v1893 = vadd.f32 %v1887, %v1892
        %v1894 = vmul.f32 %v909, %v1866
        %v1895 = vadd.f32 %v1893, %v1894
        %v1896 = vmul.f32 %v912, %v1875
        %v1897 = vadd.f32 %v1891, %v1896
        %v1898 = vmul.f32 %v915, %v1866
        %v1899 = vadd.f32 %v1897, %v1898
        %v1900 = vtanh.pop %v1895
        %v1901 = vmul.f32 %v1899, 0.5
        %v1902 = vtanh.pop %v1901
        %v1903 = vmul.f32 %v1902, 0.5
        %v1904 = vadd.f32 %v1903, 0.5
        %v1905 = vmul.f32 %v1900, %v1904
        %v1906 = vmul.f32 %v1366, %v1905
        %v1907 = vadd.f32 %v1845, %v1906
        %v1908 = vmul.f32 %v924, %v1869
        %v1909 = vadd.f32 %v926, %v1908
        %v1910 = vmul.f32 %v928, %v1852
        %v1911 = vadd.f32 %v1909, %v1910
        %v1912 = vmul.f32 %v931, %v1869
        %v1913 = vadd.f32 %v933, %v1912
        %v1914 = vmul.f32 %v935, %v1852
        %v1915 = vadd.f32 %v1913, %v1914
        %v1916 = vmul.f32 %v938, %v1872
        %v1917 = vadd.f32 %v1911, %v1916
        %v1918 = vmul.f32 %v941, %v1859
        %v1919 = vadd.f32 %v1917, %v1918
        %v1920 = vmul.f32 %v944, %v1872
        %v1921 = vadd.f32 %v1915, %v1920
        %v1922 = vmul.f32 %v947, %v1859
        %v1923 = vadd.f32 %v1921, %v1922
        %v1924 = vmul.f32 %v950, %v1875
        %v1925 = vadd.f32 %v1919, %v1924
        %v1926 = vmul.f32 %v953, %v1866
        %v1927 = vadd.f32 %v1925, %v1926
        %v1928 = vmul.f32 %v956, %v1875
        %v1929 = vadd.f32 %v1923, %v1928
        %v1930 = vmul.f32 %v959, %v1866
        %v1931 = vadd.f32 %v1929, %v1930
        %v1932 = vtanh.pop %v1927
        %v1933 = vmul.f32 %v1931, 0.5
        %v1934 = vtanh.pop %v1933
        %v1935 = vmul.f32 %v1934, 0.5
        %v1936 = vadd.f32 %v1935, 0.5
        %v1937 = vmul.f32 %v1932, %v1936
        %v1938 = vmul.f32 %v1399, %v1937
        %v1939 = vadd.f32 %v1907, %v1938
        %v1940 = vmul.f32 %v968, %v1869
        %v1941 = vadd.f32 %v970, %v1940
        %v1942 = vmul.f32 %v972, %v1852
        %v1943 = vadd.f32 %v1941, %v1942
        %v1944 = vmul.f32 %v975, %v1869
        %v1945 = vadd.f32 %v977, %v1944
        %v1946 = vmul.f32 %v979, %v1852
        %v1947 = vadd.f32 %v1945, %v1946
        %v1948 = vmul.f32 %v982, %v1872
        %v1949 = vadd.f32 %v1943, %v1948
        %v1950 = vmul.f32 %v985, %v1859
        %v1951 = vadd.f32 %v1949, %v1950
        %v1952 = vmul.f32 %v988, %v1872
        %v1953 = vadd.f32 %v1947, %v1952
        %v1954 = vmul.f32 %v991, %v1859
        %v1955 = vadd.f32 %v1953, %v1954
        %v1956 = vmul.f32 %v994, %v1875
        %v1957 = vadd.f32 %v1951, %v1956
        %v1958 = vmul.f32 %v997, %v1866
        %v1959 = vadd.f32 %v1957, %v1958
        %v1960 = vmul.f32 %v1000, %v1875
        %v1961 = vadd.f32 %v1955, %v1960
        %v1962 = vmul.f32 %v1003, %v1866
        %v1963 = vadd.f32 %v1961, %v1962
        %v1964 = vtanh.pop %v1959
        %v1965 = vmul.f32 %v1963, 0.5
        %v1966 = vtanh.pop %v1965
        %v1967 = vmul.f32 %v1966, 0.5
        %v1968 = vadd.f32 %v1967, 0.5
        %v1969 = vmul.f32 %v1964, %v1968
        %v1970 = vmul.f32 %v1432, %v1969
        %v1971 = vadd.f32 %v1939, %v1970
        %v1972 = vmul.f32 %v1012, %v1905
        %v1973 = vadd.f32 %v1014, %v1972
        %v1974 = vmul.f32 %v1016, %v1937
        %v1975 = vadd.f32 %v1973, %v1974
        %v1976 = vmul.f32 %v1019, %v1969
        %v1977 = vadd.f32 %v1975, %v1976
        %v1978 = vadd.f32 %v1977, %v1852
        %v1979 = vmul.f32 %v1023, %v1905
        %v1980 = vadd.f32 %v1025, %v1979
        %v1981 = vmul.f32 %v1027, %v1937
        %v1982 = vadd.f32 %v1980, %v1981
        %v1983 = vmul.f32 %v1030, %v1969
        %v1984 = vadd.f32 %v1982, %v1983
        %v1985 = vadd.f32 %v1984, %v1859
        %v1986 = vmul.f32 %v1034, %v1905
        %v1987 = vadd.f32 %v1036, %v1986
        %v1988 = vmul.f32 %v1038, %v1937
        %v1989 = vadd.f32 %v1987, %v1988
        %v1990 = vmul.f32 %v1041, %v1969
        %v1991 = vadd.f32 %v1989, %v1990
        %v1992 = vadd.f32 %v1991, %v1866
        %v1993 = vsel %vm509, %v1441, %v1978
        %1994 = vrot.lane.b32.xlu0 %v1993, 2
        %v1995 = vpop.permute.xlu0 %1994
        %v1996 = vsel %vm509, %v1448, %v1985
        %1997 = vrot.lane.b32.xlu0 %v1996, 2
        %v1998 = vpop.permute.xlu0 %1997
        %v1999 = vsel %vm509, %v1455, %v1992
        %2000 = vrot.lane.b32.xlu0 %v1999, 2
        %v2001 = vpop.permute.xlu0 %2000
        %v2002 = vmul.f32 %v1465, %v1995
        %v2003 = vadd.f32 %v1467, %v2002
        %v2004 = vmul.f32 %v1469, %v1978
        %v2005 = vadd.f32 %v2003, %v2004
        %v2006 = vmul.f32 %v1472, %v1995
        %v2007 = vadd.f32 %v1474, %v2006
        %v2008 = vmul.f32 %v1476, %v1978
        %v2009 = vadd.f32 %v2007, %v2008
        %v2010 = vmul.f32 %v1479, %v1998
        %v2011 = vadd.f32 %v2005, %v2010
        %v2012 = vmul.f32 %v1482, %v1985
        %v2013 = vadd.f32 %v2011, %v2012
        %v2014 = vmul.f32 %v1485, %v1998
        %v2015 = vadd.f32 %v2009, %v2014
        %v2016 = vmul.f32 %v1488, %v1985
        %v2017 = vadd.f32 %v2015, %v2016
        %v2018 = vmul.f32 %v1491, %v2001
        %v2019 = vadd.f32 %v2013, %v2018
        %v2020 = vmul.f32 %v1494, %v1992
        %v2021 = vadd.f32 %v2019, %v2020
        %v2022 = vmul.f32 %v1497, %v2001
        %v2023 = vadd.f32 %v2017, %v2022
        %v2024 = vmul.f32 %v1500, %v1992
        %v2025 = vadd.f32 %v2023, %v2024
        %v2026 = vtanh.pop %v2021
        %v2027 = vmul.f32 %v2025, 0.5
        %v2028 = vtanh.pop %v2027
        %v2029 = vmul.f32 %v2028, 0.5
        %v2030 = vadd.f32 %v2029, 0.5
        %v2031 = vmul.f32 %v2026, %v2030
        %v2032 = vmul.f32 %v1509, %v2031
        %v2033 = vadd.f32 %v1971, %v2032
        %v2034 = vmul.f32 %v1512, %v1995
        %v2035 = vadd.f32 %v1514, %v2034
        %v2036 = vmul.f32 %v1516, %v1978
        %v2037 = vadd.f32 %v2035, %v2036
        %v2038 = vmul.f32 %v1519, %v1995
        %v2039 = vadd.f32 %v1521, %v2038
        %v2040 = vmul.f32 %v1523, %v1978
        %v2041 = vadd.f32 %v2039, %v2040
        %v2042 = vmul.f32 %v1526, %v1998
        %v2043 = vadd.f32 %v2037, %v2042
        %v2044 = vmul.f32 %v1529, %v1985
        %v2045 = vadd.f32 %v2043, %v2044
        %v2046 = vmul.f32 %v1532, %v1998
        %v2047 = vadd.f32 %v2041, %v2046
        %v2048 = vmul.f32 %v1535, %v1985
        %v2049 = vadd.f32 %v2047, %v2048
        %v2050 = vmul.f32 %v1538, %v2001
        %v2051 = vadd.f32 %v2045, %v2050
        %v2052 = vmul.f32 %v1541, %v1992
        %v2053 = vadd.f32 %v2051, %v2052
        %v2054 = vmul.f32 %v1544, %v2001
        %v2055 = vadd.f32 %v2049, %v2054
        %v2056 = vmul.f32 %v1547, %v1992
        %v2057 = vadd.f32 %v2055, %v2056
        %v2058 = vtanh.pop %v2053
        %v2059 = vmul.f32 %v2057, 0.5
        %v2060 = vtanh.pop %v2059
        %v2061 = vmul.f32 %v2060, 0.5
        %v2062 = vadd.f32 %v2061, 0.5
        %v2063 = vmul.f32 %v2058, %v2062
        %v2064 = vmul.f32 %v1556, %v2063
        %v2065 = vadd.f32 %v2033, %v2064
        %v2066 = vmul.f32 %v1559, %v1995
        %v2067 = vadd.f32 %v1561, %v2066
        %v2068 = vmul.f32 %v1563, %v1978
        %v2069 = vadd.f32 %v2067, %v2068
        %v2070 = vmul.f32 %v1566, %v1995
        %v2071 = vadd.f32 %v1568, %v2070
        %v2072 = vmul.f32 %v1570, %v1978
        %v2073 = vadd.f32 %v2071, %v2072
        %v2074 = vmul.f32 %v1573, %v1998
        %v2075 = vadd.f32 %v2069, %v2074
        %v2076 = vmul.f32 %v1576, %v1985
        %v2077 = vadd.f32 %v2075, %v2076
        %v2078 = vmul.f32 %v1579, %v1998
        %v2079 = vadd.f32 %v2073, %v2078
        %v2080 = vmul.f32 %v1582, %v1985
        %v2081 = vadd.f32 %v2079, %v2080
        %v2082 = vmul.f32 %v1585, %v2001
        %v2083 = vadd.f32 %v2077, %v2082
        %v2084 = vmul.f32 %v1588, %v1992
        %v2085 = vadd.f32 %v2083, %v2084
        %v2086 = vmul.f32 %v1591, %v2001
        %v2087 = vadd.f32 %v2081, %v2086
        %v2088 = vmul.f32 %v1594, %v1992
        %v2089 = vadd.f32 %v2087, %v2088
        %v2090 = vtanh.pop %v2085
        %v2091 = vmul.f32 %v2089, 0.5
        %v2092 = vtanh.pop %v2091
        %v2093 = vmul.f32 %v2092, 0.5
        %v2094 = vadd.f32 %v2093, 0.5
        %v2095 = vmul.f32 %v2090, %v2094
        %v2096 = vmul.f32 %v1603, %v2095
        %v2097 = vadd.f32 %v2065, %v2096
        %s2098 = scalar_lea.vmem %s281, 8
        %2099 = vst [vmem:[%s2098] sm:$0xff] %v2097
        %s2100 = smul.u32 2, %s20
        %p2101 = scmp.lt.s32.totalorder %s19, 0
        %s2102 = scalar_select %p2101, %s19, 0
        %p2103 = scmp.lt.s32.totalorder %s2100, 5
        %s2104 = scalar_select %p2103, %s2100, 5
        %s2105 = smul.addr %s2102, 6
        %s2106 = sadd.s32 %s2104, %s2105
        %s2107 = smul.addr %s2106, 8
        %s2108 = scalar_lea.vmem %s3, %s2107
        // Predicated region
        $region37: #{wavenet_forward.1} parent=31 // pred_check
          %p2109 = pneg %p132
        $region38: #{wavenet_forward.1} parent=31 // pred_check_branch
          %2111 = sbr.rel (%p2109) target = $region40
        $region39: #{wavenet_forward.1} parent=31 // pred_region
          %s2112 = smul.u32 2, %s20
        $region40: #{wavenet_forward.1} parent=31 // pred_fallthru
          _
      $region32: #{wavenet_forward.1} parent=5 // pred_fallthru
        _
      %p2113 = scmp.le.s32.totalorder 2, %s10
      // Predicated region
      $region41: #{wavenet_forward.1} parent=5 // pred_check
        %p2114 = pneg %p2113
      $region42: #{wavenet_forward.1} parent=5 // pred_check_branch
        %2116 = sbr.rel (%p2114) target = $region44
      $region43: #{wavenet_forward.1} parent=5 // pred_region
        %s2117 = ssub.s32 %s10, 2
        // Predicated region
        $region45: #{wavenet_forward.1} parent=43 // pred_check
          %p2118 = pneg %p138
        $region46: #{wavenet_forward.1} parent=43 // pred_check_branch
          %2120 = sbr.rel (%p2118) target = $region48
        $region47: #{wavenet_forward.1} parent=43 // pred_region
          %s2121 = smul.u32 2, %s22
          %p2122 = scmp.lt.s32.totalorder %s21, 0
          %s2123 = scalar_select %p2122, %s21, 0
          %p2124 = scmp.lt.s32.totalorder %s2121, 5
          %s2125 = scalar_select %p2124, %s2121, 5
          %s2126 = smul.addr %s2123, 6
          %s2127 = sadd.s32 %s2125, %s2126
          %s2128 = smul.addr %s2127, 8
          %s2129 = scalar_lea.vmem %s3, %s2128
        $region48: #{wavenet_forward.1} parent=43 // pred_fallthru
          _
      $region44: #{wavenet_forward.1} parent=5 // pred_fallthru
        _
    $region6: #{wavenet_forward.1} parent=1 // loop_footer
      %s14 = sadd.s32 1, %s10
    $region7: #{wavenet_forward.1} parent=1 // loop_footer_branch
      %9 = sbr.rel target = $region3
    $region8: #{wavenet_forward.1} parent=1 // loop_exit
      _
    %2130 = vsyncpa [#allocation3], 1
    %s2131 = scalar_lea.sflag [#allocation3], 1
    %2132 = vsyncpa %s2131, 1

</llo_original>
